<compile_context>
chip_gen: v6e
topology: v6e:2x2x1
jax: 0.10.0
libtpu: 0.0.40
codegen_flags: <defaults>
</compile_context>

<pallas_src>
import functools

import jax
import jax.numpy as jnp
import numpy as np
from jax import lax
from jax.experimental import pallas as pl
from jax.experimental.pallas import tpu as pltpu


def _round_up(x, m):
    return ((x + m - 1) // m) * m


# ----------------------- batched matmul + bias kernel ---------------------- #
def _matmul_bias_kernel(x_ref, w_ref, b_ref, o_ref):
    o_ref[...] = (
        jnp.dot(x_ref[...], w_ref[...], preferred_element_type=jnp.float32)
        + b_ref[...]
    )


def matmul_bias_pallas(x, w, b, *, max_tm=128, max_tn=256):
    """(M, K) @ (K, N) + (1, N) -> (M, N) f32.  Tiled over M and N, fully
    parallel.  Tiles are (8, 128)-aligned; M / N are zero-padded up to a tile
    multiple (no silent full-extent fallback), result is sliced back."""
    M, K = x.shape
    K2, N = w.shape
    assert K == K2 and b.shape == (1, N)
    assert max_tm % 8 == 0 and max_tn % 128 == 0

    tm = min(max_tm, _round_up(M, 8))
    tn = min(max_tn, _round_up(N, 128))
    Mp = _round_up(M, tm)
    Np = _round_up(N, tn)
    if Mp != M:
        x = jnp.pad(x, ((0, Mp - M), (0, 0)))
    if Np != N:
        w = jnp.pad(w, ((0, 0), (0, Np - N)))
        b = jnp.pad(b, ((0, 0), (0, Np - N)))

    out = pl.pallas_call(
        _matmul_bias_kernel,
        out_shape=jax.ShapeDtypeStruct((Mp, Np), jnp.float32),
        grid=(Mp // tm, Np // tn),
        in_specs=[
            pl.BlockSpec((tm, K), lambda i, j: (i, 0)),   # activation rows
            pl.BlockSpec((K, tn), lambda i, j: (0, j)),   # weight cols
            pl.BlockSpec((1, tn), lambda i, j: (0, j)),   # bias cols
        ],
        out_specs=pl.BlockSpec((tm, tn), lambda i, j: (i, j)),
        compiler_params=pltpu.CompilerParams(
            dimension_semantics=("parallel", "parallel")
        ),
    )(x, w, b)
    if Mp != M or Np != N:
        out = out[:M, :N]
    return out


# ----------------- fused input-projection + LSTM recurrence ----------------- #
def _fused_lstm_kernel(x_ref, wih_ref, whh_ref, bg_ref, h_seq_ref, gx_ref, *,
                       hidden_size, seq_len, batch):
    """Single invocation: parallel pre-gate dot, then serial time loop.

    x_ref:     (T*B, E)   bf16  time-major inputs
    wih_ref:   (E, 4H)    bf16  input weight (transposed)
    whh_ref:   (H, 4H)    f32   recurrent weight (transposed)
    bg_ref:    (1, 4H)    f32   b_ih + b_hh
    h_seq_ref: (T, B, H)  f32   output hidden states (time-major)
    gx_ref:    (T, B, 4H) f32   VMEM scratch: pre-gates for all timesteps
    """
    H, B, T = hidden_size, batch, seq_len

    # Stage 1 (fused, parallel): pre-gates for ALL timesteps in one MXU dot.
    gx = jnp.dot(x_ref[...], wih_ref[...], preferred_element_type=jnp.float32)
    gx_ref[...] = (gx + bg_ref[...]).reshape(T, B, 4 * H)

    # Stage 2 (serial): only h @ W_hh^T + gate math on the critical path.
    # TODO(synk): stage W_hh in MXU weight registers across steps via
    # pltpu.matmul_push_rhs / matmul_acc_lhs / matmul_pop (column-tile width is
    # chip-generation dependent); jnp.dot re-pushes identical weights each step.
    def step(t, carry):
        h, c = carry
        gates = gx_ref[t] + jnp.dot(h, whh_ref[...],
                                    preferred_element_type=jnp.float32)
        # PyTorch gate order: i, f, g, o  (H % 128 == 0 -> lane-aligned slices)
        i_g = jax.nn.sigmoid(gates[:, 0 * H:1 * H])
        f_g = jax.nn.sigmoid(gates[:, 1 * H:2 * H])
        g_g = jnp.tanh(gates[:, 2 * H:3 * H])
        o_g = jax.nn.sigmoid(gates[:, 3 * H:4 * H])
        c_new = f_g * c + i_g * g_g
        h_new = o_g * jnp.tanh(c_new)
        h_seq_ref[t] = h_new
        return (h_new, c_new)

    h0 = jnp.zeros((B, H), jnp.float32)
    c0 = jnp.zeros((B, H), jnp.float32)
    # Full unroll only for short sequences; bounded unroll keeps instruction
    # count / vreg live ranges in check for realistic caption lengths.
    unroll = True if T <= 16 else 2
    lax.fori_loop(0, T, step, (h0, c0), unroll=unroll)


def fused_lstm_pallas(x2d, w_ih_t, w_hh_t, b_gates, *, seq_len, batch):
    """x2d: (T*B, E) bf16 time-major.  Returns h_seq (T, B, H) f32."""
    TB, E = x2d.shape
    H = w_hh_t.shape[0]
    assert TB == seq_len * batch
    assert w_ih_t.shape == (E, 4 * H) and w_hh_t.shape == (H, 4 * H)
    assert H % 128 == 0, "gate slices assume lane-aligned H"
    kernel = functools.partial(_fused_lstm_kernel, hidden_size=H,
                               seq_len=seq_len, batch=batch)
    return pl.pallas_call(
        kernel,
        out_shape=jax.ShapeDtypeStruct((seq_len, batch, H), jnp.float32),
        grid=(1,),
        in_specs=[
            pl.BlockSpec((TB, E), lambda i: (0, 0)),
            pl.BlockSpec((E, 4 * H), lambda i: (0, 0)),
            pl.BlockSpec((H, 4 * H), lambda i: (0, 0)),
            pl.BlockSpec((1, 4 * H), lambda i: (0, 0)),
        ],
        out_specs=pl.BlockSpec((seq_len, batch, H), lambda i: (0, 0, 0)),
        scratch_shapes=[pltpu.VMEM((seq_len, batch, 4 * H), jnp.float32)],
        compiler_params=pltpu.CompilerParams(
            dimension_semantics=("arbitrary",)   # recurrence is sequential
        ),
    )(x2d, w_ih_t, w_hh_t, b_gates)


# ------------------------- DecoderRNN forward (JAX) ------------------------ #
def decoder_rnn_forward(params, features, captions):
    """features: (B, E) f32, captions: (B, L) int32 -> logits (B, L, V) f32."""
    B, E = features.shape
    T = captions.shape[1]                       # seq length after cat(features, emb)
    H = params["w_hh_t"].shape[0]
    V = params["w_lin_t"].shape[1]

    # Embedding lookup built TIME-major directly (no separate transpose pass).
    # TODO(synk): fold this gather into the fused kernel via scalar-prefetched
    # caption ids + per-row DMA gather from the embedding table in HBM.
    captions_wo_end = captions[:, :-1]                                   # (B, T-1)
    emb_tm = jnp.take(params["embedding"], captions_wo_end.T, axis=0)    # (T-1, B, E)
    x_tbe = jnp.concatenate([features[None, :, :], emb_tm], axis=0)      # (T, B, E)
    x2d = x_tbe.reshape(T * B, E).astype(jnp.bfloat16)

    # Stages 1+2 fused: pre-gates (parallel MXU dot) + recurrence in ONE kernel.
    h_seq = fused_lstm_pallas(x2d,
                              params["w_ih_t"].astype(jnp.bfloat16),
                              params["w_hh_t"],
                              params["b_gates"],
                              seq_len=T, batch=B)                        # (T, B, H)

    # Layout transpose on the SMALL tensor (h_seq), not on the logits.
    h_bt = jnp.transpose(h_seq, (1, 0, 2)).reshape(B * T, H)             # (B*T, H)

    # Stage 3 (parallel): batched output projection, bf16 inputs, f32 accum.
    # max_tm=32 / max_tn=128 -> grid (2, 2) at these sizes, so both v7x
    # TensorCores get work (no effect on v5e/v6e).
    logits2d = matmul_bias_pallas(h_bt.astype(jnp.bfloat16),
                                  params["w_lin_t"].astype(jnp.bfloat16),
                                  params["b_lin"],
                                  max_tm=32, max_tn=128)                 # (B*T, V)
    return logits2d.reshape(B, T, V)


# ----------------------------- JAX reference ------------------------------- #
def decoder_rnn_reference(params, features, captions):
    captions_wo_end = captions[:, :-1]
    emb = jnp.take(params["embedding"], captions_wo_end, axis=0)
    inputs = jnp.concatenate([features[:, None, :], emb], axis=1)  # (B, T, E)
    B, T, E = inputs.shape
    H = params["w_hh_t"].shape[0]

    def step(carry, x_t):
        h, c = carry
        gates = x_t @ params["w_ih_t"] + h @ params["w_hh_t"] + params["b_gates"][0]
        i = jax.nn.sigmoid(gates[:, 0 * H:1 * H])
        f = jax.nn.sigmoid(gates[:, 1 * H:2 * H])
        g = jnp.tanh(gates[:, 2 * H:3 * H])
        o = jax.nn.sigmoid(gates[:, 3 * H:4 * H])
        c = f * c + i * g
        h = o * jnp.tanh(c)
        return (h, c), h

    h0 = jnp.zeros((B, H), jnp.float32)
    c0 = jnp.zeros((B, H), jnp.float32)
    _, hs = jax.lax.scan(step, (h0, c0), jnp.transpose(inputs, (1, 0, 2)))
    hs = jnp.transpose(hs, (1, 0, 2))                              # (B, T, H)
    return hs @ params["w_lin_t"] + params["b_lin"][0]


# ---------------------------------- main ----------------------------------- #
if __name__ == "__main__":
    # Small, hardware-friendly sizes (lane dim multiples of 128 where it matters)
    BATCH = 8
    EMBED = 128
    HIDDEN = 128
    VOCAB = 256
    CAP_LEN = 8          # caption length L; LSTM runs T = L timesteps

    key = jax.random.PRNGKey(0)
    k = jax.random.split(key, 10)

    scale = 0.05
    params = {
        "embedding": scale * jax.random.normal(k[0], (VOCAB, EMBED), jnp.float32),
        # PyTorch LSTM weights W_ih: (4H, E), W_hh: (4H, H); stored transposed.
        "w_ih_t": scale * jax.random.normal(k[1], (EMBED, 4 * HIDDEN), jnp.float32),
        "w_hh_t": scale * jax.random.normal(k[2], (HIDDEN, 4 * HIDDEN), jnp.float32),
        # b_ih + b_hh folded together, kept 2D for VMEM layout.
        "b_gates": (scale * jax.random.normal(k[3], (4 * HIDDEN,), jnp.float32)
                    + scale * jax.random.normal(k[4], (4 * HIDDEN,), jnp.float32)
                    )[None, :],
        # Linear: (V, H) in PyTorch; stored transposed (H, V).
        "w_lin_t": scale * jax.random.normal(k[5], (HIDDEN, VOCAB), jnp.float32),
        "b_lin": (scale * jax.random.normal(k[6], (VOCAB,), jnp.float32))[None, :],
    }

    features = jax.random.normal(k[7], (BATCH, EMBED), jnp.float32)
    captions = jax.random.randint(k[8], (BATCH, CAP_LEN), 0, VOCAB, jnp.int32)

    out = decoder_rnn_forward(params, features, captions)
    out = jax.block_until_ready(out)

    ref = decoder_rnn_reference(params, features, captions)
    ref = jax.block_until_ready(ref)

    assert out.shape == (BATCH, CAP_LEN, VOCAB), out.shape
    # bf16 MXU inputs (f32 accumulation) in the kernels vs. f32 XLA reference:
    # tolerance relaxed accordingly.
    np.testing.assert_allclose(np.asarray(out), np.asarray(ref),
                               rtol=2e-2, atol=1e-2)

    # TODO(synk): DecoderRNN.sample() (greedy host-side decode loop) is not
    # implemented as a kernel; only forward() is covered.
    print("KERNEL_OK")
</pallas_src>

<mosaic_0001>
module attributes {stable_mosaic.version = 11 : i64} {
  func.func @_fused_lstm_kernel(%arg0: i32, %arg1: memref<64x128xbf16, #tpu.memory_space<vmem>>, %arg2: memref<128x512xbf16, #tpu.memory_space<vmem>>, %arg3: memref<128x512xf32, #tpu.memory_space<vmem>>, %arg4: memref<1x512xf32, #tpu.memory_space<vmem>>, %arg5: memref<8x8x128xf32, #tpu.memory_space<vmem>>, %arg6: memref<8x8x512xf32, #tpu.memory_space<vmem>>) attributes {dimension_semantics = [#tpu.dimension_semantics<arbitrary>], iteration_bounds = array<i64: 1>, scalar_prefetch = 0 : i64, scratch_operands = 1 : i64, tpu.core_type = #tpu.core_type<tc>, window_params = [{pipeline_mode = #tpu.pipeline_mode<synchronous>, transform_indices = @transform_0, window_bounds = array<i64: 64, 128>}, {pipeline_mode = #tpu.pipeline_mode<synchronous>, transform_indices = @transform_1, window_bounds = array<i64: 128, 512>}, {pipeline_mode = #tpu.pipeline_mode<synchronous>, transform_indices = @transform_2, window_bounds = array<i64: 128, 512>}, {pipeline_mode = #tpu.pipeline_mode<synchronous>, transform_indices = @transform_3, window_bounds = array<i64: 1, 512>}, {pipeline_mode = #tpu.pipeline_mode<synchronous>, transform_indices = @transform_4, window_bounds = array<i64: 8, 8, 128>}]} {
    %c0 = arith.constant 0 : index
    %c0_0 = arith.constant 0 : index
    %0 = vector.load %arg1[%c0, %c0_0] : memref<64x128xbf16, #tpu.memory_space<vmem>>, vector<64x128xbf16>
    %c0_1 = arith.constant 0 : index
    %c0_2 = arith.constant 0 : index
    %1 = vector.load %arg2[%c0_1, %c0_2] : memref<128x512xbf16, #tpu.memory_space<vmem>>, vector<128x512xbf16>
    %cst = arith.constant dense<0.000000e+00> : vector<64x512xf32>
    %2 = tpu.matmul %0, %1, %cst {dimension_numbers = #tpu.dot_dimension_numbers<[1], [0], [0], [1], [0, 0, 1, 1], [], []>} : vector<64x128xbf16>, vector<128x512xbf16>, vector<64x512xf32> -> vector<64x512xf32>
    %c0_3 = arith.constant 0 : index
    %c0_4 = arith.constant 0 : index
    %3 = vector.load %arg4[%c0_3, %c0_4] : memref<1x512xf32, #tpu.memory_space<vmem>>, vector<1x512xf32>
    %4 = vector.broadcast %3 : vector<1x512xf32> to vector<64x512xf32>
    %5 = arith.addf %2, %4 : vector<64x512xf32>
    %6 = vector.shape_cast %5 : vector<64x512xf32> to vector<8x8x512xf32>
    %c0_5 = arith.constant 0 : index
    %c0_6 = arith.constant 0 : index
    %c0_7 = arith.constant 0 : index
    %7 = vector.load %arg6[%c0_5, %c0_6, %c0_7] : memref<8x8x512xf32, #tpu.memory_space<vmem>>, vector<8x8x512xf32>
    tpu.vector_store %arg6[%c0_5, %c0_6, %c0_7], %6 {strides = array<i32>} : memref<8x8x512xf32, #tpu.memory_space<vmem>>, vector<8x8x512xf32>,
    %cst_8 = arith.constant 0.000000e+00 : f32
    %8 = vector.broadcast %cst_8 : f32 to vector<8x128xf32>
    %cst_9 = arith.constant 0.000000e+00 : f32
    %9 = vector.broadcast %cst_9 : f32 to vector<8x128xf32>
    %c0_i32 = arith.constant 0 : i32
    %10 = arith.index_cast %c0_i32 : i32 to index
    %c0_10 = arith.constant 0 : index
    %c0_11 = arith.constant 0 : index
    %11 = vector.load %arg6[%10, %c0_10, %c0_11] : memref<8x8x512xf32, #tpu.memory_space<vmem>>, vector<1x8x512xf32>
    %12 = vector.shape_cast %11 : vector<1x8x512xf32> to vector<8x512xf32>
    %c0_12 = arith.constant 0 : index
    %c0_13 = arith.constant 0 : index
    %13 = vector.load %arg3[%c0_12, %c0_13] : memref<128x512xf32, #tpu.memory_space<vmem>>, vector<128x512xf32>
    %cst_14 = arith.constant dense<0.000000e+00> : vector<8x512xf32>
    %14 = tpu.matmul %8, %13, %cst_14 {dimension_numbers = #tpu.dot_dimension_numbers<[1], [0], [0], [1], [0, 0, 1, 1], [], []>} : vector<8x128xf32>, vector<128x512xf32>, vector<8x512xf32> -> vector<8x512xf32>
    %15 = arith.addf %12, %14 : vector<8x512xf32>
    %16 = vector.extract_strided_slice %15 {offsets = [0, 0], sizes = [8, 128], strides = [1, 1]} : vector<8x512xf32> to vector<8x128xf32>
    %17 = arith.negf %16 : vector<8x128xf32>
    %18 = math.exp %17 : vector<8x128xf32>
    %cst_15 = arith.constant 1.000000e+00 : f32
    %19 = vector.broadcast %cst_15 : f32 to vector<8x128xf32>
    %20 = arith.addf %19, %18 : vector<8x128xf32>
    %21 = arith.divf %19, %20 : vector<8x128xf32>
    %22 = vector.extract_strided_slice %15 {offsets = [0, 128], sizes = [8, 128], strides = [1, 1]} : vector<8x512xf32> to vector<8x128xf32>
    %23 = arith.negf %22 : vector<8x128xf32>
    %24 = math.exp %23 : vector<8x128xf32>
    %cst_16 = arith.constant 1.000000e+00 : f32
    %25 = vector.broadcast %cst_16 : f32 to vector<8x128xf32>
    %26 = arith.addf %25, %24 : vector<8x128xf32>
    %27 = arith.divf %25, %26 : vector<8x128xf32>
    %28 = vector.extract_strided_slice %15 {offsets = [0, 256], sizes = [8, 128], strides = [1, 1]} : vector<8x512xf32> to vector<8x128xf32>
    %29 = math.tanh %28 : vector<8x128xf32>
    %30 = vector.extract_strided_slice %15 {offsets = [0, 384], sizes = [8, 128], strides = [1, 1]} : vector<8x512xf32> to vector<8x128xf32>
    %31 = arith.negf %30 : vector<8x128xf32>
    %32 = math.exp %31 : vector<8x128xf32>
    %cst_17 = arith.constant 1.000000e+00 : f32
    %33 = vector.broadcast %cst_17 : f32 to vector<8x128xf32>
    %34 = arith.addf %33, %32 : vector<8x128xf32>
    %35 = arith.divf %33, %34 : vector<8x128xf32>
    %36 = arith.mulf %27, %9 : vector<8x128xf32>
    %37 = arith.mulf %21, %29 : vector<8x128xf32>
    %38 = arith.addf %36, %37 : vector<8x128xf32>
    %39 = math.tanh %38 : vector<8x128xf32>
    %40 = arith.mulf %35, %39 : vector<8x128xf32>
    %41 = arith.index_cast %c0_i32 : i32 to index
    %c0_18 = arith.constant 0 : index
    %c0_19 = arith.constant 0 : index
    %42 = vector.load %arg5[%41, %c0_18, %c0_19] : memref<8x8x128xf32, #tpu.memory_space<vmem>>, vector<1x8x128xf32>
    %43 = vector.shape_cast %42 : vector<1x8x128xf32> to vector<8x128xf32>
    %44 = vector.shape_cast %40 : vector<8x128xf32> to vector<1x8x128xf32>
    tpu.vector_store %arg5[%41, %c0_18, %c0_19], %44 {strides = array<i32>} : memref<8x8x128xf32, #tpu.memory_space<vmem>>, vector<1x8x128xf32>,
    %c1_i32 = arith.constant 1 : i32
    %45 = arith.index_cast %c1_i32 : i32 to index
    %c0_20 = arith.constant 0 : index
    %c0_21 = arith.constant 0 : index
    %46 = vector.load %arg6[%45, %c0_20, %c0_21] : memref<8x8x512xf32, #tpu.memory_space<vmem>>, vector<1x8x512xf32>
    %47 = vector.shape_cast %46 : vector<1x8x512xf32> to vector<8x512xf32>
    %c0_22 = arith.constant 0 : index
    %c0_23 = arith.constant 0 : index
    %48 = vector.load %arg3[%c0_22, %c0_23] : memref<128x512xf32, #tpu.memory_space<vmem>>, vector<128x512xf32>
    %cst_24 = arith.constant dense<0.000000e+00> : vector<8x512xf32>
    %49 = tpu.matmul %40, %48, %cst_24 {dimension_numbers = #tpu.dot_dimension_numbers<[1], [0], [0], [1], [0, 0, 1, 1], [], []>} : vector<8x128xf32>, vector<128x512xf32>, vector<8x512xf32> -> vector<8x512xf32>
    %50 = arith.addf %47, %49 : vector<8x512xf32>
    %51 = vector.extract_strided_slice %50 {offsets = [0, 0], sizes = [8, 128], strides = [1, 1]} : vector<8x512xf32> to vector<8x128xf32>
    %52 = arith.negf %51 : vector<8x128xf32>
    %53 = math.exp %52 : vector<8x128xf32>
    %cst_25 = arith.constant 1.000000e+00 : f32
    %54 = vector.broadcast %cst_25 : f32 to vector<8x128xf32>
    %55 = arith.addf %54, %53 : vector<8x128xf32>
    %56 = arith.divf %54, %55 : vector<8x128xf32>
    %57 = vector.extract_strided_slice %50 {offsets = [0, 128], sizes = [8, 128], strides = [1, 1]} : vector<8x512xf32> to vector<8x128xf32>
    %58 = arith.negf %57 : vector<8x128xf32>
    %59 = math.exp %58 : vector<8x128xf32>
    %cst_26 = arith.constant 1.000000e+00 : f32
    %60 = vector.broadcast %cst_26 : f32 to vector<8x128xf32>
    %61 = arith.addf %60, %59 : vector<8x128xf32>
    %62 = arith.divf %60, %61 : vector<8x128xf32>
    %63 = vector.extract_strided_slice %50 {offsets = [0, 256], sizes = [8, 128], strides = [1, 1]} : vector<8x512xf32> to vector<8x128xf32>
    %64 = math.tanh %63 : vector<8x128xf32>
    %65 = vector.extract_strided_slice %50 {offsets = [0, 384], sizes = [8, 128], strides = [1, 1]} : vector<8x512xf32> to vector<8x128xf32>
    %66 = arith.negf %65 : vector<8x128xf32>
    %67 = math.exp %66 : vector<8x128xf32>
    %cst_27 = arith.constant 1.000000e+00 : f32
    %68 = vector.broadcast %cst_27 : f32 to vector<8x128xf32>
    %69 = arith.addf %68, %67 : vector<8x128xf32>
    %70 = arith.divf %68, %69 : vector<8x128xf32>
    %71 = arith.mulf %62, %38 : vector<8x128xf32>
    %72 = arith.mulf %56, %64 : vector<8x128xf32>
    %73 = arith.addf %71, %72 : vector<8x128xf32>
    %74 = math.tanh %73 : vector<8x128xf32>
    %75 = arith.mulf %70, %74 : vector<8x128xf32>
    %76 = arith.index_cast %c1_i32 : i32 to index
    %c0_28 = arith.constant 0 : index
    %c0_29 = arith.constant 0 : index
    %77 = vector.load %arg5[%76, %c0_28, %c0_29] : memref<8x8x128xf32, #tpu.memory_space<vmem>>, vector<1x8x128xf32>
    %78 = vector.shape_cast %77 : vector<1x8x128xf32> to vector<8x128xf32>
    %79 = vector.shape_cast %75 : vector<8x128xf32> to vector<1x8x128xf32>
    tpu.vector_store %arg5[%76, %c0_28, %c0_29], %79 {strides = array<i32>} : memref<8x8x128xf32, #tpu.memory_space<vmem>>, vector<1x8x128xf32>,
    %c2_i32 = arith.constant 2 : i32
    %80 = arith.index_cast %c2_i32 : i32 to index
    %c0_30 = arith.constant 0 : index
    %c0_31 = arith.constant 0 : index
    %81 = vector.load %arg6[%80, %c0_30, %c0_31] : memref<8x8x512xf32, #tpu.memory_space<vmem>>, vector<1x8x512xf32>
    %82 = vector.shape_cast %81 : vector<1x8x512xf32> to vector<8x512xf32>
    %c0_32 = arith.constant 0 : index
    %c0_33 = arith.constant 0 : index
    %83 = vector.load %arg3[%c0_32, %c0_33] : memref<128x512xf32, #tpu.memory_space<vmem>>, vector<128x512xf32>
    %cst_34 = arith.constant dense<0.000000e+00> : vector<8x512xf32>
    %84 = tpu.matmul %75, %83, %cst_34 {dimension_numbers = #tpu.dot_dimension_numbers<[1], [0], [0], [1], [0, 0, 1, 1], [], []>} : vector<8x128xf32>, vector<128x512xf32>, vector<8x512xf32> -> vector<8x512xf32>
    %85 = arith.addf %82, %84 : vector<8x512xf32>
    %86 = vector.extract_strided_slice %85 {offsets = [0, 0], sizes = [8, 128], strides = [1, 1]} : vector<8x512xf32> to vector<8x128xf32>
    %87 = arith.negf %86 : vector<8x128xf32>
    %88 = math.exp %87 : vector<8x128xf32>
    %cst_35 = arith.constant 1.000000e+00 : f32
    %89 = vector.broadcast %cst_35 : f32 to vector<8x128xf32>
    %90 = arith.addf %89, %88 : vector<8x128xf32>
    %91 = arith.divf %89, %90 : vector<8x128xf32>
    %92 = vector.extract_strided_slice %85 {offsets = [0, 128], sizes = [8, 128], strides = [1, 1]} : vector<8x512xf32> to vector<8x128xf32>
    %93 = arith.negf %92 : vector<8x128xf32>
    %94 = math.exp %93 : vector<8x128xf32>
    %cst_36 = arith.constant 1.000000e+00 : f32
    %95 = vector.broadcast %cst_36 : f32 to vector<8x128xf32>
    %96 = arith.addf %95, %94 : vector<8x128xf32>
    %97 = arith.divf %95, %96 : vector<8x128xf32>
    %98 = vector.extract_strided_slice %85 {offsets = [0, 256], sizes = [8, 128], strides = [1, 1]} : vector<8x512xf32> to vector<8x128xf32>
    %99 = math.tanh %98 : vector<8x128xf32>
    %100 = vector.extract_strided_slice %85 {offsets = [0, 384], sizes = [8, 128], strides = [1, 1]} : vector<8x512xf32> to vector<8x128xf32>
    %101 = arith.negf %100 : vector<8x128xf32>
    %102 = math.exp %101 : vector<8x128xf32>
    %cst_37 = arith.constant 1.000000e+00 : f32
    %103 = vector.broadcast %cst_37 : f32 to vector<8x128xf32>
    %104 = arith.addf %103, %102 : vector<8x128xf32>
    %105 = arith.divf %103, %104 : vector<8x128xf32>
    %106 = arith.mulf %97, %73 : vector<8x128xf32>
    %107 = arith.mulf %91, %99 : vector<8x128xf32>
    %108 = arith.addf %106, %107 : vector<8x128xf32>
    %109 = math.tanh %108 : vector<8x128xf32>
    %110 = arith.mulf %105, %109 : vector<8x128xf32>
    %111 = arith.index_cast %c2_i32 : i32 to index
    %c0_38 = arith.constant 0 : index
    %c0_39 = arith.constant 0 : index
    %112 = vector.load %arg5[%111, %c0_38, %c0_39] : memref<8x8x128xf32, #tpu.memory_space<vmem>>, vector<1x8x128xf32>
    %113 = vector.shape_cast %112 : vector<1x8x128xf32> to vector<8x128xf32>
    %114 = vector.shape_cast %110 : vector<8x128xf32> to vector<1x8x128xf32>
    tpu.vector_store %arg5[%111, %c0_38, %c0_39], %114 {strides = array<i32>} : memref<8x8x128xf32, #tpu.memory_space<vmem>>, vector<1x8x128xf32>,
    %c3_i32 = arith.constant 3 : i32
    %115 = arith.index_cast %c3_i32 : i32 to index
    %c0_40 = arith.constant 0 : index
    %c0_41 = arith.constant 0 : index
    %116 = vector.load %arg6[%115, %c0_40, %c0_41] : memref<8x8x512xf32, #tpu.memory_space<vmem>>, vector<1x8x512xf32>
    %117 = vector.shape_cast %116 : vector<1x8x512xf32> to vector<8x512xf32>
    %c0_42 = arith.constant 0 : index
    %c0_43 = arith.constant 0 : index
    %118 = vector.load %arg3[%c0_42, %c0_43] : memref<128x512xf32, #tpu.memory_space<vmem>>, vector<128x512xf32>
    %cst_44 = arith.constant dense<0.000000e+00> : vector<8x512xf32>
    %119 = tpu.matmul %110, %118, %cst_44 {dimension_numbers = #tpu.dot_dimension_numbers<[1], [0], [0], [1], [0, 0, 1, 1], [], []>} : vector<8x128xf32>, vector<128x512xf32>, vector<8x512xf32> -> vector<8x512xf32>
    %120 = arith.addf %117, %119 : vector<8x512xf32>
    %121 = vector.extract_strided_slice %120 {offsets = [0, 0], sizes = [8, 128], strides = [1, 1]} : vector<8x512xf32> to vector<8x128xf32>
    %122 = arith.negf %121 : vector<8x128xf32>
    %123 = math.exp %122 : vector<8x128xf32>
    %cst_45 = arith.constant 1.000000e+00 : f32
    %124 = vector.broadcast %cst_45 : f32 to vector<8x128xf32>
    %125 = arith.addf %124, %123 : vector<8x128xf32>
    %126 = arith.divf %124, %125 : vector<8x128xf32>
    %127 = vector.extract_strided_slice %120 {offsets = [0, 128], sizes = [8, 128], strides = [1, 1]} : vector<8x512xf32> to vector<8x128xf32>
    %128 = arith.negf %127 : vector<8x128xf32>
    %129 = math.exp %128 : vector<8x128xf32>
    %cst_46 = arith.constant 1.000000e+00 : f32
    %130 = vector.broadcast %cst_46 : f32 to vector<8x128xf32>
    %131 = arith.addf %130, %129 : vector<8x128xf32>
    %132 = arith.divf %130, %131 : vector<8x128xf32>
    %133 = vector.extract_strided_slice %120 {offsets = [0, 256], sizes = [8, 128], strides = [1, 1]} : vector<8x512xf32> to vector<8x128xf32>
    %134 = math.tanh %133 : vector<8x128xf32>
    %135 = vector.extract_strided_slice %120 {offsets = [0, 384], sizes = [8, 128], strides = [1, 1]} : vector<8x512xf32> to vector<8x128xf32>
    %136 = arith.negf %135 : vector<8x128xf32>
    %137 = math.exp %136 : vector<8x128xf32>
    %cst_47 = arith.constant 1.000000e+00 : f32
    %138 = vector.broadcast %cst_47 : f32 to vector<8x128xf32>
    %139 = arith.addf %138, %137 : vector<8x128xf32>
    %140 = arith.divf %138, %139 : vector<8x128xf32>
    %141 = arith.mulf %132, %108 : vector<8x128xf32>
    %142 = arith.mulf %126, %134 : vector<8x128xf32>
    %143 = arith.addf %141, %142 : vector<8x128xf32>
    %144 = math.tanh %143 : vector<8x128xf32>
    %145 = arith.mulf %140, %144 : vector<8x128xf32>
    %146 = arith.index_cast %c3_i32 : i32 to index
    %c0_48 = arith.constant 0 : index
    %c0_49 = arith.constant 0 : index
    %147 = vector.load %arg5[%146, %c0_48, %c0_49] : memref<8x8x128xf32, #tpu.memory_space<vmem>>, vector<1x8x128xf32>
    %148 = vector.shape_cast %147 : vector<1x8x128xf32> to vector<8x128xf32>
    %149 = vector.shape_cast %145 : vector<8x128xf32> to vector<1x8x128xf32>
    tpu.vector_store %arg5[%146, %c0_48, %c0_49], %149 {strides = array<i32>} : memref<8x8x128xf32, #tpu.memory_space<vmem>>, vector<1x8x128xf32>,
    %c4_i32 = arith.constant 4 : i32
    %150 = arith.index_cast %c4_i32 : i32 to index
    %c0_50 = arith.constant 0 : index
    %c0_51 = arith.constant 0 : index
    %151 = vector.load %arg6[%150, %c0_50, %c0_51] : memref<8x8x512xf32, #tpu.memory_space<vmem>>, vector<1x8x512xf32>
    %152 = vector.shape_cast %151 : vector<1x8x512xf32> to vector<8x512xf32>
    %c0_52 = arith.constant 0 : index
    %c0_53 = arith.constant 0 : index
    %153 = vector.load %arg3[%c0_52, %c0_53] : memref<128x512xf32, #tpu.memory_space<vmem>>, vector<128x512xf32>
    %cst_54 = arith.constant dense<0.000000e+00> : vector<8x512xf32>
    %154 = tpu.matmul %145, %153, %cst_54 {dimension_numbers = #tpu.dot_dimension_numbers<[1], [0], [0], [1], [0, 0, 1, 1], [], []>} : vector<8x128xf32>, vector<128x512xf32>, vector<8x512xf32> -> vector<8x512xf32>
    %155 = arith.addf %152, %154 : vector<8x512xf32>
    %156 = vector.extract_strided_slice %155 {offsets = [0, 0], sizes = [8, 128], strides = [1, 1]} : vector<8x512xf32> to vector<8x128xf32>
    %157 = arith.negf %156 : vector<8x128xf32>
    %158 = math.exp %157 : vector<8x128xf32>
    %cst_55 = arith.constant 1.000000e+00 : f32
    %159 = vector.broadcast %cst_55 : f32 to vector<8x128xf32>
    %160 = arith.addf %159, %158 : vector<8x128xf32>
    %161 = arith.divf %159, %160 : vector<8x128xf32>
    %162 = vector.extract_strided_slice %155 {offsets = [0, 128], sizes = [8, 128], strides = [1, 1]} : vector<8x512xf32> to vector<8x128xf32>
    %163 = arith.negf %162 : vector<8x128xf32>
    %164 = math.exp %163 : vector<8x128xf32>
    %cst_56 = arith.constant 1.000000e+00 : f32
    %165 = vector.broadcast %cst_56 : f32 to vector<8x128xf32>
    %166 = arith.addf %165, %164 : vector<8x128xf32>
    %167 = arith.divf %165, %166 : vector<8x128xf32>
    %168 = vector.extract_strided_slice %155 {offsets = [0, 256], sizes = [8, 128], strides = [1, 1]} : vector<8x512xf32> to vector<8x128xf32>
    %169 = math.tanh %168 : vector<8x128xf32>
    %170 = vector.extract_strided_slice %155 {offsets = [0, 384], sizes = [8, 128], strides = [1, 1]} : vector<8x512xf32> to vector<8x128xf32>
    %171 = arith.negf %170 : vector<8x128xf32>
    %172 = math.exp %171 : vector<8x128xf32>
    %cst_57 = arith.constant 1.000000e+00 : f32
    %173 = vector.broadcast %cst_57 : f32 to vector<8x128xf32>
    %174 = arith.addf %173, %172 : vector<8x128xf32>
    %175 = arith.divf %173, %174 : vector<8x128xf32>
    %176 = arith.mulf %167, %143 : vector<8x128xf32>
    %177 = arith.mulf %161, %169 : vector<8x128xf32>
    %178 = arith.addf %176, %177 : vector<8x128xf32>
    %179 = math.tanh %178 : vector<8x128xf32>
    %180 = arith.mulf %175, %179 : vector<8x128xf32>
    %181 = arith.index_cast %c4_i32 : i32 to index
    %c0_58 = arith.constant 0 : index
    %c0_59 = arith.constant 0 : index
    %182 = vector.load %arg5[%181, %c0_58, %c0_59] : memref<8x8x128xf32, #tpu.memory_space<vmem>>, vector<1x8x128xf32>
    %183 = vector.shape_cast %182 : vector<1x8x128xf32> to vector<8x128xf32>
    %184 = vector.shape_cast %180 : vector<8x128xf32> to vector<1x8x128xf32>
    tpu.vector_store %arg5[%181, %c0_58, %c0_59], %184 {strides = array<i32>} : memref<8x8x128xf32, #tpu.memory_space<vmem>>, vector<1x8x128xf32>,
    %c5_i32 = arith.constant 5 : i32
    %185 = arith.index_cast %c5_i32 : i32 to index
    %c0_60 = arith.constant 0 : index
    %c0_61 = arith.constant 0 : index
    %186 = vector.load %arg6[%185, %c0_60, %c0_61] : memref<8x8x512xf32, #tpu.memory_space<vmem>>, vector<1x8x512xf32>
    %187 = vector.shape_cast %186 : vector<1x8x512xf32> to vector<8x512xf32>
    %c0_62 = arith.constant 0 : index
    %c0_63 = arith.constant 0 : index
    %188 = vector.load %arg3[%c0_62, %c0_63] : memref<128x512xf32, #tpu.memory_space<vmem>>, vector<128x512xf32>
    %cst_64 = arith.constant dense<0.000000e+00> : vector<8x512xf32>
    %189 = tpu.matmul %180, %188, %cst_64 {dimension_numbers = #tpu.dot_dimension_numbers<[1], [0], [0], [1], [0, 0, 1, 1], [], []>} : vector<8x128xf32>, vector<128x512xf32>, vector<8x512xf32> -> vector<8x512xf32>
    %190 = arith.addf %187, %189 : vector<8x512xf32>
    %191 = vector.extract_strided_slice %190 {offsets = [0, 0], sizes = [8, 128], strides = [1, 1]} : vector<8x512xf32> to vector<8x128xf32>
    %192 = arith.negf %191 : vector<8x128xf32>
    %193 = math.exp %192 : vector<8x128xf32>
    %cst_65 = arith.constant 1.000000e+00 : f32
    %194 = vector.broadcast %cst_65 : f32 to vector<8x128xf32>
    %195 = arith.addf %194, %193 : vector<8x128xf32>
    %196 = arith.divf %194, %195 : vector<8x128xf32>
    %197 = vector.extract_strided_slice %190 {offsets = [0, 128], sizes = [8, 128], strides = [1, 1]} : vector<8x512xf32> to vector<8x128xf32>
    %198 = arith.negf %197 : vector<8x128xf32>
    %199 = math.exp %198 : vector<8x128xf32>
    %cst_66 = arith.constant 1.000000e+00 : f32
    %200 = vector.broadcast %cst_66 : f32 to vector<8x128xf32>
    %201 = arith.addf %200, %199 : vector<8x128xf32>
    %202 = arith.divf %200, %201 : vector<8x128xf32>
    %203 = vector.extract_strided_slice %190 {offsets = [0, 256], sizes = [8, 128], strides = [1, 1]} : vector<8x512xf32> to vector<8x128xf32>
    %204 = math.tanh %203 : vector<8x128xf32>
    %205 = vector.extract_strided_slice %190 {offsets = [0, 384], sizes = [8, 128], strides = [1, 1]} : vector<8x512xf32> to vector<8x128xf32>
    %206 = arith.negf %205 : vector<8x128xf32>
    %207 = math.exp %206 : vector<8x128xf32>
    %cst_67 = arith.constant 1.000000e+00 : f32
    %208 = vector.broadcast %cst_67 : f32 to vector<8x128xf32>
    %209 = arith.addf %208, %207 : vector<8x128xf32>
    %210 = arith.divf %208, %209 : vector<8x128xf32>
    %211 = arith.mulf %202, %178 : vector<8x128xf32>
    %212 = arith.mulf %196, %204 : vector<8x128xf32>
    %213 = arith.addf %211, %212 : vector<8x128xf32>
    %214 = math.tanh %213 : vector<8x128xf32>
    %215 = arith.mulf %210, %214 : vector<8x128xf32>
    %216 = arith.index_cast %c5_i32 : i32 to index
    %c0_68 = arith.constant 0 : index
    %c0_69 = arith.constant 0 : index
    %217 = vector.load %arg5[%216, %c0_68, %c0_69] : memref<8x8x128xf32, #tpu.memory_space<vmem>>, vector<1x8x128xf32>
    %218 = vector.shape_cast %217 : vector<1x8x128xf32> to vector<8x128xf32>
    %219 = vector.shape_cast %215 : vector<8x128xf32> to vector<1x8x128xf32>
    tpu.vector_store %arg5[%216, %c0_68, %c0_69], %219 {strides = array<i32>} : memref<8x8x128xf32, #tpu.memory_space<vmem>>, vector<1x8x128xf32>,
    %c6_i32 = arith.constant 6 : i32
    %220 = arith.index_cast %c6_i32 : i32 to index
    %c0_70 = arith.constant 0 : index
    %c0_71 = arith.constant 0 : index
    %221 = vector.load %arg6[%220, %c0_70, %c0_71] : memref<8x8x512xf32, #tpu.memory_space<vmem>>, vector<1x8x512xf32>
    %222 = vector.shape_cast %221 : vector<1x8x512xf32> to vector<8x512xf32>
    %c0_72 = arith.constant 0 : index
    %c0_73 = arith.constant 0 : index
    %223 = vector.load %arg3[%c0_72, %c0_73] : memref<128x512xf32, #tpu.memory_space<vmem>>, vector<128x512xf32>
    %cst_74 = arith.constant dense<0.000000e+00> : vector<8x512xf32>
    %224 = tpu.matmul %215, %223, %cst_74 {dimension_numbers = #tpu.dot_dimension_numbers<[1], [0], [0], [1], [0, 0, 1, 1], [], []>} : vector<8x128xf32>, vector<128x512xf32>, vector<8x512xf32> -> vector<8x512xf32>
    %225 = arith.addf %222, %224 : vector<8x512xf32>
    %226 = vector.extract_strided_slice %225 {offsets = [0, 0], sizes = [8, 128], strides = [1, 1]} : vector<8x512xf32> to vector<8x128xf32>
    %227 = arith.negf %226 : vector<8x128xf32>
    %228 = math.exp %227 : vector<8x128xf32>
    %cst_75 = arith.constant 1.000000e+00 : f32
    %229 = vector.broadcast %cst_75 : f32 to vector<8x128xf32>
    %230 = arith.addf %229, %228 : vector<8x128xf32>
    %231 = arith.divf %229, %230 : vector<8x128xf32>
    %232 = vector.extract_strided_slice %225 {offsets = [0, 128], sizes = [8, 128], strides = [1, 1]} : vector<8x512xf32> to vector<8x128xf32>
    %233 = arith.negf %232 : vector<8x128xf32>
    %234 = math.exp %233 : vector<8x128xf32>
    %cst_76 = arith.constant 1.000000e+00 : f32
    %235 = vector.broadcast %cst_76 : f32 to vector<8x128xf32>
    %236 = arith.addf %235, %234 : vector<8x128xf32>
    %237 = arith.divf %235, %236 : vector<8x128xf32>
    %238 = vector.extract_strided_slice %225 {offsets = [0, 256], sizes = [8, 128], strides = [1, 1]} : vector<8x512xf32> to vector<8x128xf32>
    %239 = math.tanh %238 : vector<8x128xf32>
    %240 = vector.extract_strided_slice %225 {offsets = [0, 384], sizes = [8, 128], strides = [1, 1]} : vector<8x512xf32> to vector<8x128xf32>
    %241 = arith.negf %240 : vector<8x128xf32>
    %242 = math.exp %241 : vector<8x128xf32>
    %cst_77 = arith.constant 1.000000e+00 : f32
    %243 = vector.broadcast %cst_77 : f32 to vector<8x128xf32>
    %244 = arith.addf %243, %242 : vector<8x128xf32>
    %245 = arith.divf %243, %244 : vector<8x128xf32>
    %246 = arith.mulf %237, %213 : vector<8x128xf32>
    %247 = arith.mulf %231, %239 : vector<8x128xf32>
    %248 = arith.addf %246, %247 : vector<8x128xf32>
    %249 = math.tanh %248 : vector<8x128xf32>
    %250 = arith.mulf %245, %249 : vector<8x128xf32>
    %251 = arith.index_cast %c6_i32 : i32 to index
    %c0_78 = arith.constant 0 : index
    %c0_79 = arith.constant 0 : index
    %252 = vector.load %arg5[%251, %c0_78, %c0_79] : memref<8x8x128xf32, #tpu.memory_space<vmem>>, vector<1x8x128xf32>
    %253 = vector.shape_cast %252 : vector<1x8x128xf32> to vector<8x128xf32>
    %254 = vector.shape_cast %250 : vector<8x128xf32> to vector<1x8x128xf32>
    tpu.vector_store %arg5[%251, %c0_78, %c0_79], %254 {strides = array<i32>} : memref<8x8x128xf32, #tpu.memory_space<vmem>>, vector<1x8x128xf32>,
    %c7_i32 = arith.constant 7 : i32
    %255 = arith.index_cast %c7_i32 : i32 to index
    %c0_80 = arith.constant 0 : index
    %c0_81 = arith.constant 0 : index
    %256 = vector.load %arg6[%255, %c0_80, %c0_81] : memref<8x8x512xf32, #tpu.memory_space<vmem>>, vector<1x8x512xf32>
    %257 = vector.shape_cast %256 : vector<1x8x512xf32> to vector<8x512xf32>
    %c0_82 = arith.constant 0 : index
    %c0_83 = arith.constant 0 : index
    %258 = vector.load %arg3[%c0_82, %c0_83] : memref<128x512xf32, #tpu.memory_space<vmem>>, vector<128x512xf32>
    %cst_84 = arith.constant dense<0.000000e+00> : vector<8x512xf32>
    %259 = tpu.matmul %250, %258, %cst_84 {dimension_numbers = #tpu.dot_dimension_numbers<[1], [0], [0], [1], [0, 0, 1, 1], [], []>} : vector<8x128xf32>, vector<128x512xf32>, vector<8x512xf32> -> vector<8x512xf32>
    %260 = arith.addf %257, %259 : vector<8x512xf32>
    %261 = vector.extract_strided_slice %260 {offsets = [0, 0], sizes = [8, 128], strides = [1, 1]} : vector<8x512xf32> to vector<8x128xf32>
    %262 = arith.negf %261 : vector<8x128xf32>
    %263 = math.exp %262 : vector<8x128xf32>
    %cst_85 = arith.constant 1.000000e+00 : f32
    %264 = vector.broadcast %cst_85 : f32 to vector<8x128xf32>
    %265 = arith.addf %264, %263 : vector<8x128xf32>
    %266 = arith.divf %264, %265 : vector<8x128xf32>
    %267 = vector.extract_strided_slice %260 {offsets = [0, 128], sizes = [8, 128], strides = [1, 1]} : vector<8x512xf32> to vector<8x128xf32>
    %268 = arith.negf %267 : vector<8x128xf32>
    %269 = math.exp %268 : vector<8x128xf32>
    %cst_86 = arith.constant 1.000000e+00 : f32
    %270 = vector.broadcast %cst_86 : f32 to vector<8x128xf32>
    %271 = arith.addf %270, %269 : vector<8x128xf32>
    %272 = arith.divf %270, %271 : vector<8x128xf32>
    %273 = vector.extract_strided_slice %260 {offsets = [0, 256], sizes = [8, 128], strides = [1, 1]} : vector<8x512xf32> to vector<8x128xf32>
    %274 = math.tanh %273 : vector<8x128xf32>
    %275 = vector.extract_strided_slice %260 {offsets = [0, 384], sizes = [8, 128], strides = [1, 1]} : vector<8x512xf32> to vector<8x128xf32>
    %276 = arith.negf %275 : vector<8x128xf32>
    %277 = math.exp %276 : vector<8x128xf32>
    %cst_87 = arith.constant 1.000000e+00 : f32
    %278 = vector.broadcast %cst_87 : f32 to vector<8x128xf32>
    %279 = arith.addf %278, %277 : vector<8x128xf32>
    %280 = arith.divf %278, %279 : vector<8x128xf32>
    %281 = arith.mulf %272, %248 : vector<8x128xf32>
    %282 = arith.mulf %266, %274 : vector<8x128xf32>
    %283 = arith.addf %281, %282 : vector<8x128xf32>
    %284 = math.tanh %283 : vector<8x128xf32>
    %285 = arith.mulf %280, %284 : vector<8x128xf32>
    %286 = arith.index_cast %c7_i32 : i32 to index
    %c0_88 = arith.constant 0 : index
    %c0_89 = arith.constant 0 : index
    %287 = vector.load %arg5[%286, %c0_88, %c0_89] : memref<8x8x128xf32, #tpu.memory_space<vmem>>, vector<1x8x128xf32>
    %288 = vector.shape_cast %287 : vector<1x8x128xf32> to vector<8x128xf32>
    %289 = vector.shape_cast %285 : vector<8x128xf32> to vector<1x8x128xf32>
    tpu.vector_store %arg5[%286, %c0_88, %c0_89], %289 {strides = array<i32>} : memref<8x8x128xf32, #tpu.memory_space<vmem>>, vector<1x8x128xf32>,
    %c8_i32 = arith.constant 8 : i32
    return
  }
  func.func @transform_0(%arg0: i32) -> (i32, i32) {
    %c0_i32 = arith.constant 0 : i32
    %c0_i32_0 = arith.constant 0 : i32
    %c0_i32_1 = arith.constant 0 : i32
    return %c0_i32, %c0_i32_0 : i32, i32
  }
  func.func @transform_1(%arg0: i32) -> (i32, i32) {
    %c0_i32 = arith.constant 0 : i32
    %c0_i32_0 = arith.constant 0 : i32
    %c0_i32_1 = arith.constant 0 : i32
    return %c0_i32, %c0_i32_0 : i32, i32
  }
  func.func @transform_2(%arg0: i32) -> (i32, i32) {
    %c0_i32 = arith.constant 0 : i32
    %c0_i32_0 = arith.constant 0 : i32
    %c0_i32_1 = arith.constant 0 : i32
    return %c0_i32, %c0_i32_0 : i32, i32
  }
  func.func @transform_3(%arg0: i32) -> (i32, i32) {
    %c0_i32 = arith.constant 0 : i32
    %c0_i32_0 = arith.constant 0 : i32
    %c0_i32_1 = arith.constant 0 : i32
    return %c0_i32, %c0_i32_0 : i32, i32
  }
  func.func @transform_4(%arg0: i32) -> (i32, i32, i32) {
    %c0_i32 = arith.constant 0 : i32
    %c0_i32_0 = arith.constant 0 : i32
    %c0_i32_1 = arith.constant 0 : i32
    %c0_i32_2 = arith.constant 0 : i32
    return %c0_i32, %c0_i32_0, %c0_i32_1 : i32, i32, i32
  }
}

</mosaic_0001>

<llo_original>
// kernel: tpu_custom_call.1
$region0: #{tpu_custom_call.1}
  #allocation0 [shape = 'u32[]', space=smem, size = 0x4, offset = 0x4, fixed_abs, tag = 'smem constant byte address 0x4 - core index']
  #allocation1 [shape = 'u32[144,128]{1,0:T(1,128)}', space=vmem, size = 0x12000, scoped, tag = 'internal scratch']
  #allocation2 [shape = 'f32[8,8,512]{2,1,0:T(8,128)}', space=vmem, size = 0x20000, scoped, tag = 'scratch operand']
  %s0 = inlined_call_operand.hbm [shape: bf16[64,128], index: 0, kind: input, shape index: {}]
  %s1 = inlined_call_operand.hbm [shape: bf16[128,512], index: 1, kind: input, shape index: {}]
  %s2 = inlined_call_operand.hbm [shape: f32[128,512], index: 2, kind: input, shape index: {}]
  %s3 = inlined_call_operand.vmem [shape: f32[1,512], index: 3, kind: input, shape index: {}]
  %s4 = inlined_call_operand.hbm [shape: f32[8,8,128], index: 4, kind: output, shape index: {}]
  %s5 = sld [smem:[#allocation0]]
  $region38: #{tpu_custom_call.1} parent=0
    _
  %s7 = ssub.s32 1, %s5
  %s8 = scalar_select 0, %s7, %s5
  $region1: #{tpu_custom_call.1} parent=0
    #allocation3 [shape = 'u8[16384]{0}', space=vmem, size = 0x4000, scoped, tag = 'input window, operand 0, single buffered']
    #allocation4 [shape = 's32[1]{0}', space=sflag, size = 0x4, scoped, tag = 'scoped memory for tpu_custom_call.1']
    #allocation5 [shape = 's32[1]{0}', space=sflag, size = 0x4, scoped, tag = 'scoped memory for tpu_custom_call.1']
    #allocation6 [shape = 'u8[131072]{0}', space=vmem, size = 0x20000, scoped, tag = 'input window, operand 1, single buffered']
    #allocation7 [shape = 's32[1]{0}', space=sflag, size = 0x4, scoped, tag = 'scoped memory for tpu_custom_call.1']
    #allocation8 [shape = 'u8[262144]{0}', space=vmem, size = 0x40000, scoped, tag = 'input window, operand 2, single buffered']
    #allocation9 [shape = 'u8[32768]{0}', space=vmem, size = 0x8000, scoped, tag = 'output window, operand 0, single buffered']
    %9 = vsyncpa [#allocation4], 0
    %10 = vsyncpa [#allocation7], 0
    %11 = vsyncpa [#allocation5], 0
    // Predicated region
    $region2: #{tpu_custom_call.1} parent=1 // pred_check
      _
    $region3: #{tpu_custom_call.1} parent=1 // pred_check_branch
      %13 = sbr.rel (0) target = $region5
    $region4: #{tpu_custom_call.1} parent=1 // pred_region
      %s15 = ssub.s32 512, 512
      %16 = vsyncadd [#allocation4], %s15
      %s17 = sshll.u32 [#allocation3], 4
      %s18 = int_to_ptr.vmem [resolvable:$true] %s17
      %23 = dma.hbm_to_vmem [thread:$0]  %s0, 512, %s18, [#allocation4], 64, 64, 4
    $region5: #{tpu_custom_call.1} parent=1 // pred_fallthru
      _
    // Predicated region
    $region6: #{tpu_custom_call.1} parent=1 // pred_check
      _
    $region7: #{tpu_custom_call.1} parent=1 // pred_check_branch
      %25 = sbr.rel (0) target = $region9
    $region8: #{tpu_custom_call.1} parent=1 // pred_region
      %s27 = ssub.s32 4096, 4096
      %28 = vsyncadd [#allocation7], %s27
      %s29 = sshll.u32 [#allocation6], 4
      %s30 = int_to_ptr.vmem [resolvable:$true] %s29
      %35 = dma.hbm_to_vmem [thread:$0]  %s1, 4096, %s30, [#allocation7], 256, 256, 16
    $region9: #{tpu_custom_call.1} parent=1 // pred_fallthru
      _
    // Predicated region
    $region10: #{tpu_custom_call.1} parent=1 // pred_check
      _
    $region11: #{tpu_custom_call.1} parent=1 // pred_check_branch
      %37 = sbr.rel (0) target = $region13
    $region12: #{tpu_custom_call.1} parent=1 // pred_region
      %s39 = ssub.s32 8192, 8192
      %40 = vsyncadd [#allocation7], %s39
      %s41 = sshll.u32 [#allocation8], 4
      %s42 = int_to_ptr.vmem [resolvable:$true] %s41
      %47 = dma.hbm_to_vmem [thread:$0]  %s2, 8192, %s42, [#allocation7], 512, 512, 32
    $region13: #{tpu_custom_call.1} parent=1 // pred_fallthru
      _
    // Predicated region
    $region14: #{tpu_custom_call.1} parent=1 // pred_check
      _
    $region15: #{tpu_custom_call.1} parent=1 // pred_check_branch
      %49 = sbr.rel (0) target = $region17
    $region16: #{tpu_custom_call.1} parent=1 // pred_region
      _
    $region17: #{tpu_custom_call.1} parent=1 // pred_fallthru
      _
    // Predicated region
    $region18: #{tpu_custom_call.1} parent=1 // pred_check
      _
    $region19: #{tpu_custom_call.1} parent=1 // pred_check_branch
      %51 = sbr.rel (0) target = $region21
    $region20: #{tpu_custom_call.1} parent=1 // pred_region
      %52 = dma.done [#allocation4], 512
    $region21: #{tpu_custom_call.1} parent=1 // pred_fallthru
      _
    // Predicated region
    $region22: #{tpu_custom_call.1} parent=1 // pred_check
      _
    $region23: #{tpu_custom_call.1} parent=1 // pred_check_branch
      %54 = sbr.rel (0) target = $region25
    $region24: #{tpu_custom_call.1} parent=1 // pred_region
      %55 = dma.done [#allocation7], 4096
    $region25: #{tpu_custom_call.1} parent=1 // pred_fallthru
      _
    // Predicated region
    $region26: #{tpu_custom_call.1} parent=1 // pred_check
      _
    $region27: #{tpu_custom_call.1} parent=1 // pred_check_branch
      %57 = sbr.rel (0) target = $region29
    $region28: #{tpu_custom_call.1} parent=1 // pred_region
      %58 = dma.done [#allocation7], 8192
    $region29: #{tpu_custom_call.1} parent=1 // pred_fallthru
      _
    %v60 = vld [vmem:[#allocation3] sm:$0xf]
    %v61 = vld [vmem:[#allocation3 + $0x4] sm:$0xf]
    %v62 = vld [vmem:[#allocation3 + $0x8] sm:$0xf]
    %v63 = vld [vmem:[#allocation3 + $0xc] sm:$0xf]
    %v64 = vld [vmem:[#allocation3 + $0x10] sm:$0xf]
    %v65 = vld [vmem:[#allocation3 + $0x14] sm:$0xf]
    %v66 = vld [vmem:[#allocation3 + $0x18] sm:$0xf]
    %v67 = vld [vmem:[#allocation3 + $0x1c] sm:$0xf]
    %v68 = vld [vmem:[#allocation6] sm:$0xff]
    %v69 = vld [vmem:[#allocation6 + $0x8] sm:$0xff]
    %v70 = vld [vmem:[#allocation6 + $0x10] sm:$0xff]
    %v71 = vld [vmem:[#allocation6 + $0x18] sm:$0xff]
    %v72 = vld [vmem:[#allocation6 + $0x20] sm:$0xff]
    %v73 = vld [vmem:[#allocation6 + $0x28] sm:$0xff]
    %v74 = vld [vmem:[#allocation6 + $0x30] sm:$0xff]
    %v75 = vld [vmem:[#allocation6 + $0x38] sm:$0xff]
    %v76 = vld [vmem:[#allocation6 + $0x40] sm:$0xff]
    %v77 = vld [vmem:[#allocation6 + $0x48] sm:$0xff]
    %v78 = vld [vmem:[#allocation6 + $0x50] sm:$0xff]
    %v79 = vld [vmem:[#allocation6 + $0x58] sm:$0xff]
    %v80 = vld [vmem:[#allocation6 + $0x60] sm:$0xff]
    %v81 = vld [vmem:[#allocation6 + $0x68] sm:$0xff]
    %v82 = vld [vmem:[#allocation6 + $0x70] sm:$0xff]
    %v83 = vld [vmem:[#allocation6 + $0x78] sm:$0xff]
    %v84 = vld [vmem:[#allocation6 + $0x80] sm:$0xff]
    %v85 = vld [vmem:[#allocation6 + $0x88] sm:$0xff]
    %v86 = vld [vmem:[#allocation6 + $0x90] sm:$0xff]
    %v87 = vld [vmem:[#allocation6 + $0x98] sm:$0xff]
    %v88 = vld [vmem:[#allocation6 + $0xa0] sm:$0xff]
    %v89 = vld [vmem:[#allocation6 + $0xa8] sm:$0xff]
    %v90 = vld [vmem:[#allocation6 + $0xb0] sm:$0xff]
    %v91 = vld [vmem:[#allocation6 + $0xb8] sm:$0xff]
    %v92 = vld [vmem:[#allocation6 + $0xc0] sm:$0xff]
    %v93 = vld [vmem:[#allocation6 + $0xc8] sm:$0xff]
    %v94 = vld [vmem:[#allocation6 + $0xd0] sm:$0xff]
    %v95 = vld [vmem:[#allocation6 + $0xd8] sm:$0xff]
    %v96 = vld [vmem:[#allocation6 + $0xe0] sm:$0xff]
    %v97 = vld [vmem:[#allocation6 + $0xe8] sm:$0xff]
    %v98 = vld [vmem:[#allocation6 + $0xf0] sm:$0xff]
    %v99 = vld [vmem:[#allocation6 + $0xf8] sm:$0xff]
    %v100 = vld [vmem:[%s3] sm:$0xf]
    %v102 = vlaneseq
    %v103 = vshrl.u32 %v102, 7
    %v104 = vsub.s32 0, %v103
    %v105 = vrot.slane %v100, %v104
    %v106 = vlaneseq
    %v107 = vshrl.u32 %v106, 7
    %v108 = vsub.s32 1, %v107
    %v109 = vrot.slane %v100, %v108
    %v110 = vlaneseq
    %v111 = vshrl.u32 %v110, 7
    %v112 = vsub.s32 2, %v111
    %v113 = vrot.slane %v100, %v112
    %v114 = vlaneseq
    %v115 = vshrl.u32 %v114, 7
    %v116 = vsub.s32 3, %v115
    %v117 = vrot.slane %v100, %v116
    %v130 = vunpack.c.l.b16 %v60
    %v131 = vunpack.c.l.b16 %v61
    %v132 = vunpack.c.l.b16 %v62
    %v133 = vunpack.c.l.b16 %v63
    %v134 = vunpack.c.l.b16 %v64
    %v135 = vunpack.c.l.b16 %v65
    %v136 = vunpack.c.l.b16 %v66
    %v137 = vunpack.c.l.b16 %v67
    %v138 = vpack.c.b16 %v131, %v130
    %v139 = vpack.c.b16 %v133, %v132
    %v140 = vpack.c.b16 %v135, %v134
    %v141 = vpack.c.b16 %v137, %v136
    %v178 = vunpack.c.l.b16 %v68
    %v179 = vunpack.c.h.b16 %v68
    %v180 = vunpack.c.l.b16 %v69
    %v181 = vunpack.c.h.b16 %v69
    %v182 = vunpack.c.l.b16 %v70
    %v183 = vunpack.c.h.b16 %v70
    %v184 = vunpack.c.l.b16 %v71
    %v185 = vunpack.c.h.b16 %v71
    %v186 = vunpack.c.l.b16 %v72
    %v187 = vunpack.c.h.b16 %v72
    %v188 = vunpack.c.l.b16 %v73
    %v189 = vunpack.c.h.b16 %v73
    %v190 = vunpack.c.l.b16 %v74
    %v191 = vunpack.c.h.b16 %v74
    %v192 = vunpack.c.l.b16 %v75
    %v193 = vunpack.c.h.b16 %v75
    %v194 = vunpack.c.l.b16 %v76
    %v195 = vunpack.c.h.b16 %v76
    %v196 = vunpack.c.l.b16 %v77
    %v197 = vunpack.c.h.b16 %v77
    %v198 = vunpack.c.l.b16 %v78
    %v199 = vunpack.c.h.b16 %v78
    %v200 = vunpack.c.l.b16 %v79
    %v201 = vunpack.c.h.b16 %v79
    %v202 = vunpack.c.l.b16 %v80
    %v203 = vunpack.c.h.b16 %v80
    %v204 = vunpack.c.l.b16 %v81
    %v205 = vunpack.c.h.b16 %v81
    %v206 = vunpack.c.l.b16 %v82
    %v207 = vunpack.c.h.b16 %v82
    %v208 = vunpack.c.l.b16 %v83
    %v209 = vunpack.c.h.b16 %v83
    %v210 = vunpack.c.l.b16 %v84
    %v211 = vunpack.c.h.b16 %v84
    %v212 = vunpack.c.l.b16 %v85
    %v213 = vunpack.c.h.b16 %v85
    %v214 = vunpack.c.l.b16 %v86
    %v215 = vunpack.c.h.b16 %v86
    %v216 = vunpack.c.l.b16 %v87
    %v217 = vunpack.c.h.b16 %v87
    %v218 = vunpack.c.l.b16 %v88
    %v219 = vunpack.c.h.b16 %v88
    %v220 = vunpack.c.l.b16 %v89
    %v221 = vunpack.c.h.b16 %v89
    %v222 = vunpack.c.l.b16 %v90
    %v223 = vunpack.c.h.b16 %v90
    %v224 = vunpack.c.l.b16 %v91
    %v225 = vunpack.c.h.b16 %v91
    %v226 = vunpack.c.l.b16 %v92
    %v227 = vunpack.c.h.b16 %v92
    %v228 = vunpack.c.l.b16 %v93
    %v229 = vunpack.c.h.b16 %v93
    %v230 = vunpack.c.l.b16 %v94
    %v231 = vunpack.c.h.b16 %v94
    %v232 = vunpack.c.l.b16 %v95
    %v233 = vunpack.c.h.b16 %v95
    %v234 = vunpack.c.l.b16 %v96
    %v235 = vunpack.c.h.b16 %v96
    %v236 = vunpack.c.l.b16 %v97
    %v237 = vunpack.c.h.b16 %v97
    %v238 = vunpack.c.l.b16 %v98
    %v239 = vunpack.c.h.b16 %v98
    %v240 = vunpack.c.l.b16 %v99
    %v241 = vunpack.c.h.b16 %v99
    %v242 = vpack.c.b16 %v182, %v178
    %v243 = vpack.c.b16 %v183, %v179
    %v244 = vpack.c.b16 %v184, %v180
    %v245 = vpack.c.b16 %v185, %v181
    %v246 = vpack.c.b16 %v190, %v186
    %v247 = vpack.c.b16 %v191, %v187
    %v248 = vpack.c.b16 %v192, %v188
    %v249 = vpack.c.b16 %v193, %v189
    %v250 = vpack.c.b16 %v198, %v194
    %v251 = vpack.c.b16 %v199, %v195
    %v252 = vpack.c.b16 %v200, %v196
    %v253 = vpack.c.b16 %v201, %v197
    %v254 = vpack.c.b16 %v206, %v202
    %v255 = vpack.c.b16 %v207, %v203
    %v256 = vpack.c.b16 %v208, %v204
    %v257 = vpack.c.b16 %v209, %v205
    %v258 = vpack.c.b16 %v214, %v210
    %v259 = vpack.c.b16 %v215, %v211
    %v260 = vpack.c.b16 %v216, %v212
    %v261 = vpack.c.b16 %v217, %v213
    %v262 = vpack.c.b16 %v222, %v218
    %v263 = vpack.c.b16 %v223, %v219
    %v264 = vpack.c.b16 %v224, %v220
    %v265 = vpack.c.b16 %v225, %v221
    %v266 = vpack.c.b16 %v230, %v226
    %v267 = vpack.c.b16 %v231, %v227
    %v268 = vpack.c.b16 %v232, %v228
    %v269 = vpack.c.b16 %v233, %v229
    %v270 = vpack.c.b16 %v238, %v234
    %v271 = vpack.c.b16 %v239, %v235
    %v272 = vpack.c.b16 %v240, %v236
    %v273 = vpack.c.b16 %v241, %v237
    %306 = vmatprep.subr.bf16.mxu0 %v271
    %307 = vmatpush1.bf16.msra.mxu0 %v270
    %308 = vmatprep.subr.bf16.mxu0 %v267
    %309 = vmatpush1.bf16.msra.mxu0 %v266
    %310 = vmatprep.subr.bf16.mxu0 %v263
    %311 = vmatpush1.bf16.msra.mxu0 %v262
    %312 = vmatprep.subr.bf16.mxu0 %v259
    %313 = vmatpush1.bf16.msra.mxu0 %v258
    %314 = vmatprep.subr.bf16.mxu0 %v255
    %315 = vmatpush1.bf16.msra.mxu0 %v254
    %316 = vmatprep.subr.bf16.mxu0 %v251
    %317 = vmatpush1.bf16.msra.mxu0 %v250
    %318 = vmatprep.subr.bf16.mxu0 %v247
    %319 = vmatpush1.bf16.msra.mxu0 %v246
    %320 = vmatprep.subr.bf16.mxu0 %v243
    %321 = vmatpush1.bf16.msra.mxu0 %v242
    %322 = vmatprep.subr.bf16.mxu0 0
    %323 = vmatpush2.bf16.msra.mxu0 0
    %324 = vmatprep.subr.bf16.mxu0 0
    %325 = vmatpush2.bf16.msra.mxu0 0
    %326 = vmatprep.subr.bf16.mxu0 0
    %327 = vmatpush2.bf16.msra.mxu0 0
    %328 = vmatprep.subr.bf16.mxu0 0
    %329 = vmatpush2.bf16.msra.mxu0 0
    %330 = vmatprep.subr.bf16.mxu0 0
    %331 = vmatpush2.bf16.msra.mxu0 0
    %332 = vmatprep.subr.bf16.mxu0 0
    %333 = vmatpush2.bf16.msra.mxu0 0
    %334 = vmatprep.subr.bf16.mxu0 0
    %335 = vmatpush2.bf16.msra.mxu0 0
    %336 = vmatprep.subr.bf16.mxu0 0
    %337 = vmatpush2.bf16.msra.mxu0 0
    %338 = vmatprep.mubr.bf16.mxu0 0
    %339 = vmatmul.mubr.bf16.gmra.mxu0 %v138
    %v340 = vpop.f32.mrf.mxu0
    %v341 = vadd.f32 %v105, %v340
    %v342 = vpop.f32.mrf.mxu0
    %v343 = vadd.f32 %v109, %v342
    %v344 = vpop.f32.mrf.mxu0
    %v345 = vadd.f32 %v105, %v344
    %v346 = vpop.f32.mrf.mxu0
    %v347 = vadd.f32 %v109, %v346
    %348 = vmatprep.mubr.bf16.mxu0 0
    %349 = vmatmul.mubr.bf16.gmra.mxu0 %v139
    %v350 = vpop.f32.mrf.mxu0
    %v351 = vadd.f32 %v105, %v350
    %v352 = vpop.f32.mrf.mxu0
    %v353 = vadd.f32 %v109, %v352
    %v354 = vpop.f32.mrf.mxu0
    %v355 = vadd.f32 %v105, %v354
    %v356 = vpop.f32.mrf.mxu0
    %v357 = vadd.f32 %v109, %v356
    %358 = vmatprep.mubr.bf16.mxu0 0
    %359 = vmatmul.mubr.bf16.gmra.mxu0 %v140
    %v360 = vpop.f32.mrf.mxu0
    %v361 = vadd.f32 %v105, %v360
    %v362 = vpop.f32.mrf.mxu0
    %v363 = vadd.f32 %v109, %v362
    %v364 = vpop.f32.mrf.mxu0
    %v365 = vadd.f32 %v105, %v364
    %v366 = vpop.f32.mrf.mxu0
    %v367 = vadd.f32 %v109, %v366
    %368 = vmatprep.mubr.bf16.mxu0 0
    %369 = vmatmul.mubr.bf16.gmra.mxu0 %v141
    %v370 = vpop.f32.mrf.mxu0
    %v371 = vadd.f32 %v105, %v370
    %v372 = vpop.f32.mrf.mxu0
    %v373 = vadd.f32 %v109, %v372
    %v374 = vpop.f32.mrf.mxu0
    %v375 = vadd.f32 %v105, %v374
    %v376 = vpop.f32.mrf.mxu0
    %v377 = vadd.f32 %v109, %v376
    %378 = vdwg.mxu0
    %379 = vmatprep.subr.bf16.mxu0 %v273
    %380 = vmatpush1.bf16.msra.mxu0 %v272
    %381 = vmatprep.subr.bf16.mxu0 %v269
    %382 = vmatpush1.bf16.msra.mxu0 %v268
    %383 = vmatprep.subr.bf16.mxu0 %v265
    %384 = vmatpush1.bf16.msra.mxu0 %v264
    %385 = vmatprep.subr.bf16.mxu0 %v261
    %386 = vmatpush1.bf16.msra.mxu0 %v260
    %387 = vmatprep.subr.bf16.mxu0 %v257
    %388 = vmatpush1.bf16.msra.mxu0 %v256
    %389 = vmatprep.subr.bf16.mxu0 %v253
    %390 = vmatpush1.bf16.msra.mxu0 %v252
    %391 = vmatprep.subr.bf16.mxu0 %v249
    %392 = vmatpush1.bf16.msra.mxu0 %v248
    %393 = vmatprep.subr.bf16.mxu0 %v245
    %394 = vmatpush1.bf16.msra.mxu0 %v244
    %395 = vmatprep.subr.bf16.mxu0 0
    %396 = vmatpush2.bf16.msra.mxu0 0
    %397 = vmatprep.subr.bf16.mxu0 0
    %398 = vmatpush2.bf16.msra.mxu0 0
    %399 = vmatprep.subr.bf16.mxu0 0
    %400 = vmatpush2.bf16.msra.mxu0 0
    %401 = vmatprep.subr.bf16.mxu0 0
    %402 = vmatpush2.bf16.msra.mxu0 0
    %403 = vmatprep.subr.bf16.mxu0 0
    %404 = vmatpush2.bf16.msra.mxu0 0
    %405 = vmatprep.subr.bf16.mxu0 0
    %406 = vmatpush2.bf16.msra.mxu0 0
    %407 = vmatprep.subr.bf16.mxu0 0
    %408 = vmatpush2.bf16.msra.mxu0 0
    %409 = vmatprep.subr.bf16.mxu0 0
    %410 = vmatpush2.bf16.msra.mxu0 0
    %411 = vmatprep.mubr.bf16.mxu0 0
    %412 = vmatmul.mubr.bf16.gmra.mxu0 %v138
    %v413 = vpop.f32.mrf.mxu0
    %v414 = vadd.f32 %v113, %v413
    %v415 = vpop.f32.mrf.mxu0
    %v416 = vadd.f32 %v117, %v415
    %v417 = vpop.f32.mrf.mxu0
    %v418 = vadd.f32 %v113, %v417
    %v419 = vpop.f32.mrf.mxu0
    %v420 = vadd.f32 %v117, %v419
    %421 = vmatprep.mubr.bf16.mxu0 0
    %422 = vmatmul.mubr.bf16.gmra.mxu0 %v139
    %v423 = vpop.f32.mrf.mxu0
    %v424 = vadd.f32 %v113, %v423
    %v425 = vpop.f32.mrf.mxu0
    %v426 = vadd.f32 %v117, %v425
    %v427 = vpop.f32.mrf.mxu0
    %v428 = vadd.f32 %v113, %v427
    %v429 = vpop.f32.mrf.mxu0
    %v430 = vadd.f32 %v117, %v429
    %431 = vmatprep.mubr.bf16.mxu0 0
    %432 = vmatmul.mubr.bf16.gmra.mxu0 %v140
    %v433 = vpop.f32.mrf.mxu0
    %v434 = vadd.f32 %v113, %v433
    %v435 = vpop.f32.mrf.mxu0
    %v436 = vadd.f32 %v117, %v435
    %v437 = vpop.f32.mrf.mxu0
    %v438 = vadd.f32 %v113, %v437
    %v439 = vpop.f32.mrf.mxu0
    %v440 = vadd.f32 %v117, %v439
    %441 = vmatprep.mubr.bf16.mxu0 0
    %442 = vmatmul.mubr.bf16.gmra.mxu0 %v141
    %v443 = vpop.f32.mrf.mxu0
    %v444 = vadd.f32 %v113, %v443
    %v445 = vpop.f32.mrf.mxu0
    %v446 = vadd.f32 %v117, %v445
    %v447 = vpop.f32.mrf.mxu0
    %v448 = vadd.f32 %v113, %v447
    %v449 = vpop.f32.mrf.mxu0
    %v450 = vadd.f32 %v117, %v449
    %451 = vdwg.mxu0
    %452 = vst [vmem:[#allocation2] sm:$0xff] %v341
    %453 = vst [vmem:[#allocation2 + $0x8] sm:$0xff] %v343
    %454 = vst [vmem:[#allocation2 + $0x10] sm:$0xff] %v414
    %455 = vst [vmem:[#allocation2 + $0x18] sm:$0xff] %v416
    %456 = vst [vmem:[#allocation2 + $0x20] sm:$0xff] %v345
    %457 = vst [vmem:[#allocation2 + $0x28] sm:$0xff] %v347
    %458 = vst [vmem:[#allocation2 + $0x30] sm:$0xff] %v418
    %459 = vst [vmem:[#allocation2 + $0x38] sm:$0xff] %v420
    %460 = vst [vmem:[#allocation2 + $0x40] sm:$0xff] %v351
    %461 = vst [vmem:[#allocation2 + $0x48] sm:$0xff] %v353
    %462 = vst [vmem:[#allocation2 + $0x50] sm:$0xff] %v424
    %463 = vst [vmem:[#allocation2 + $0x58] sm:$0xff] %v426
    %464 = vst [vmem:[#allocation2 + $0x60] sm:$0xff] %v355
    %465 = vst [vmem:[#allocation2 + $0x68] sm:$0xff] %v357
    %466 = vst [vmem:[#allocation2 + $0x70] sm:$0xff] %v428
    %467 = vst [vmem:[#allocation2 + $0x78] sm:$0xff] %v430
    %468 = vst [vmem:[#allocation2 + $0x80] sm:$0xff] %v361
    %469 = vst [vmem:[#allocation2 + $0x88] sm:$0xff] %v363
    %470 = vst [vmem:[#allocation2 + $0x90] sm:$0xff] %v434
    %471 = vst [vmem:[#allocation2 + $0x98] sm:$0xff] %v436
    %472 = vst [vmem:[#allocation2 + $0xa0] sm:$0xff] %v365
    %473 = vst [vmem:[#allocation2 + $0xa8] sm:$0xff] %v367
    %474 = vst [vmem:[#allocation2 + $0xb0] sm:$0xff] %v438
    %475 = vst [vmem:[#allocation2 + $0xb8] sm:$0xff] %v440
    %476 = vst [vmem:[#allocation2 + $0xc0] sm:$0xff] %v371
    %477 = vst [vmem:[#allocation2 + $0xc8] sm:$0xff] %v373
    %478 = vst [vmem:[#allocation2 + $0xd0] sm:$0xff] %v444
    %479 = vst [vmem:[#allocation2 + $0xd8] sm:$0xff] %v446
    %480 = vst [vmem:[#allocation2 + $0xe0] sm:$0xff] %v375
    %481 = vst [vmem:[#allocation2 + $0xe8] sm:$0xff] %v377
    %482 = vst [vmem:[#allocation2 + $0xf0] sm:$0xff] %v448
    %483 = vst [vmem:[#allocation2 + $0xf8] sm:$0xff] %v450
    %v484 = vld [vmem:[#allocation2] sm:$0xff]
    %v485 = vld [vmem:[#allocation2 + $0x8] sm:$0xff]
    %v486 = vld [vmem:[#allocation2 + $0x10] sm:$0xff]
    %v487 = vld [vmem:[#allocation2 + $0x18] sm:$0xff]
    %v488 = vld [vmem:[#allocation8] sm:$0xff]
    %v489 = vld [vmem:[#allocation8 + $0x8] sm:$0xff]
    %v490 = vld [vmem:[#allocation8 + $0x10] sm:$0xff]
    %v491 = vld [vmem:[#allocation8 + $0x18] sm:$0xff]
    %v492 = vld [vmem:[#allocation8 + $0x20] sm:$0xff]
    %v493 = vld [vmem:[#allocation8 + $0x28] sm:$0xff]
    %v494 = vld [vmem:[#allocation8 + $0x30] sm:$0xff]
    %v495 = vld [vmem:[#allocation8 + $0x38] sm:$0xff]
    %v496 = vld [vmem:[#allocation8 + $0x40] sm:$0xff]
    %v497 = vld [vmem:[#allocation8 + $0x48] sm:$0xff]
    %v498 = vld [vmem:[#allocation8 + $0x50] sm:$0xff]
    %v499 = vld [vmem:[#allocation8 + $0x58] sm:$0xff]
    %v500 = vld [vmem:[#allocation8 + $0x60] sm:$0xff]
    %v501 = vld [vmem:[#allocation8 + $0x68] sm:$0xff]
    %v502 = vld [vmem:[#allocation8 + $0x70] sm:$0xff]
    %v503 = vld [vmem:[#allocation8 + $0x78] sm:$0xff]
    %v504 = vld [vmem:[#allocation8 + $0x80] sm:$0xff]
    %v505 = vld [vmem:[#allocation8 + $0x88] sm:$0xff]
    %v506 = vld [vmem:[#allocation8 + $0x90] sm:$0xff]
    %v507 = vld [vmem:[#allocation8 + $0x98] sm:$0xff]
    %v508 = vld [vmem:[#allocation8 + $0xa0] sm:$0xff]
    %v509 = vld [vmem:[#allocation8 + $0xa8] sm:$0xff]
    %v510 = vld [vmem:[#allocation8 + $0xb0] sm:$0xff]
    %v511 = vld [vmem:[#allocation8 + $0xb8] sm:$0xff]
    %v512 = vld [vmem:[#allocation8 + $0xc0] sm:$0xff]
    %v513 = vld [vmem:[#allocation8 + $0xc8] sm:$0xff]
    %v514 = vld [vmem:[#allocation8 + $0xd0] sm:$0xff]
    %v515 = vld [vmem:[#allocation8 + $0xd8] sm:$0xff]
    %v516 = vld [vmem:[#allocation8 + $0xe0] sm:$0xff]
    %v517 = vld [vmem:[#allocation8 + $0xe8] sm:$0xff]
    %v518 = vld [vmem:[#allocation8 + $0xf0] sm:$0xff]
    %v519 = vld [vmem:[#allocation8 + $0xf8] sm:$0xff]
    %v520 = vld [vmem:[#allocation8 + $0x100] sm:$0xff]
    %v521 = vld [vmem:[#allocation8 + $0x108] sm:$0xff]
    %v522 = vld [vmem:[#allocation8 + $0x110] sm:$0xff]
    %v523 = vld [vmem:[#allocation8 + $0x118] sm:$0xff]
    %v524 = vld [vmem:[#allocation8 + $0x120] sm:$0xff]
    %v525 = vld [vmem:[#allocation8 + $0x128] sm:$0xff]
    %v526 = vld [vmem:[#allocation8 + $0x130] sm:$0xff]
    %v527 = vld [vmem:[#allocation8 + $0x138] sm:$0xff]
    %v528 = vld [vmem:[#allocation8 + $0x140] sm:$0xff]
    %v529 = vld [vmem:[#allocation8 + $0x148] sm:$0xff]
    %v530 = vld [vmem:[#allocation8 + $0x150] sm:$0xff]
    %v531 = vld [vmem:[#allocation8 + $0x158] sm:$0xff]
    %v532 = vld [vmem:[#allocation8 + $0x160] sm:$0xff]
    %v533 = vld [vmem:[#allocation8 + $0x168] sm:$0xff]
    %v534 = vld [vmem:[#allocation8 + $0x170] sm:$0xff]
    %v535 = vld [vmem:[#allocation8 + $0x178] sm:$0xff]
    %v536 = vld [vmem:[#allocation8 + $0x180] sm:$0xff]
    %v537 = vld [vmem:[#allocation8 + $0x188] sm:$0xff]
    %v538 = vld [vmem:[#allocation8 + $0x190] sm:$0xff]
    %v539 = vld [vmem:[#allocation8 + $0x198] sm:$0xff]
    %v540 = vld [vmem:[#allocation8 + $0x1a0] sm:$0xff]
    %v541 = vld [vmem:[#allocation8 + $0x1a8] sm:$0xff]
    %v542 = vld [vmem:[#allocation8 + $0x1b0] sm:$0xff]
    %v543 = vld [vmem:[#allocation8 + $0x1b8] sm:$0xff]
    %v544 = vld [vmem:[#allocation8 + $0x1c0] sm:$0xff]
    %v545 = vld [vmem:[#allocation8 + $0x1c8] sm:$0xff]
    %v546 = vld [vmem:[#allocation8 + $0x1d0] sm:$0xff]
    %v547 = vld [vmem:[#allocation8 + $0x1d8] sm:$0xff]
    %v548 = vld [vmem:[#allocation8 + $0x1e0] sm:$0xff]
    %v549 = vld [vmem:[#allocation8 + $0x1e8] sm:$0xff]
    %v550 = vld [vmem:[#allocation8 + $0x1f0] sm:$0xff]
    %v551 = vld [vmem:[#allocation8 + $0x1f8] sm:$0xff]
    %552 = vmatprep.subr.mxu0 %v549
    %553 = vmatpush1.msra.mxu0 %v548
    %554 = vmatprep.subr.mxu0 %v545
    %555 = vmatpush1.msra.mxu0 %v544
    %556 = vmatprep.subr.mxu0 %v541
    %557 = vmatpush1.msra.mxu0 %v540
    %558 = vmatprep.subr.mxu0 %v537
    %559 = vmatpush1.msra.mxu0 %v536
    %560 = vmatprep.subr.mxu0 %v533
    %561 = vmatpush1.msra.mxu0 %v532
    %562 = vmatprep.subr.mxu0 %v529
    %563 = vmatpush1.msra.mxu0 %v528
    %564 = vmatprep.subr.mxu0 %v525
    %565 = vmatpush1.msra.mxu0 %v524
    %566 = vmatprep.subr.mxu0 %v521
    %567 = vmatpush1.msra.mxu0 %v520
    %568 = vmatprep.subr.mxu0 %v517
    %569 = vmatpush1.msra.mxu0 %v516
    %570 = vmatprep.subr.mxu0 %v513
    %571 = vmatpush1.msra.mxu0 %v512
    %572 = vmatprep.subr.mxu0 %v509
    %573 = vmatpush1.msra.mxu0 %v508
    %574 = vmatprep.subr.mxu0 %v505
    %575 = vmatpush1.msra.mxu0 %v504
    %576 = vmatprep.subr.mxu0 %v501
    %577 = vmatpush1.msra.mxu0 %v500
    %578 = vmatprep.subr.mxu0 %v497
    %579 = vmatpush1.msra.mxu0 %v496
    %580 = vmatprep.subr.mxu0 %v493
    %581 = vmatpush1.msra.mxu0 %v492
    %582 = vmatprep.subr.mxu0 %v489
    %583 = vmatpush1.msra.mxu0 %v488
    %584 = vmatprep.subr.mxu0 0.0
    %585 = vmatpush2.msra.mxu0 0.0
    %586 = vmatprep.subr.mxu0 0.0
    %587 = vmatpush2.msra.mxu0 0.0
    %588 = vmatprep.subr.mxu0 0.0
    %589 = vmatpush2.msra.mxu0 0.0
    %590 = vmatprep.subr.mxu0 0.0
    %591 = vmatpush2.msra.mxu0 0.0
    %592 = vmatprep.subr.mxu0 0.0
    %593 = vmatpush2.msra.mxu0 0.0
    %594 = vmatprep.subr.mxu0 0.0
    %595 = vmatpush2.msra.mxu0 0.0
    %596 = vmatprep.subr.mxu0 0.0
    %597 = vmatpush2.msra.mxu0 0.0
    %598 = vmatprep.subr.mxu0 0.0
    %599 = vmatpush2.msra.mxu0 0.0
    %600 = vmatprep.subr.mxu0 0.0
    %601 = vmatpush2.msra.mxu0 0.0
    %602 = vmatprep.subr.mxu0 0.0
    %603 = vmatpush2.msra.mxu0 0.0
    %604 = vmatprep.subr.mxu0 0.0
    %605 = vmatpush2.msra.mxu0 0.0
    %606 = vmatprep.subr.mxu0 0.0
    %607 = vmatpush2.msra.mxu0 0.0
    %608 = vmatprep.subr.mxu0 0.0
    %609 = vmatpush2.msra.mxu0 0.0
    %610 = vmatprep.subr.mxu0 0.0
    %611 = vmatpush2.msra.mxu0 0.0
    %612 = vmatprep.subr.mxu0 0.0
    %613 = vmatpush2.msra.mxu0 0.0
    %614 = vmatprep.subr.mxu0 0.0
    %615 = vmatpush2.msra.mxu0 0.0
    %616 = vmatprep.mubr.f32.mxu0 0.0
    %617 = vmatmul.mubr.f32.gmra.mxu0 0.0
    %v618 = vpop.f32.mrf.mxu0
    %v619 = vadd.f32 0.0, %v618
    %v620 = vpop.f32.mrf.mxu0
    %v621 = vadd.f32 0.0, %v620
    %622 = vdwg.mxu0
    %623 = vmatprep.subr.mxu0 %v551
    %624 = vmatpush1.msra.mxu0 %v550
    %625 = vmatprep.subr.mxu0 %v547
    %626 = vmatpush1.msra.mxu0 %v546
    %627 = vmatprep.subr.mxu0 %v543
    %628 = vmatpush1.msra.mxu0 %v542
    %629 = vmatprep.subr.mxu0 %v539
    %630 = vmatpush1.msra.mxu0 %v538
    %631 = vmatprep.subr.mxu0 %v535
    %632 = vmatpush1.msra.mxu0 %v534
    %633 = vmatprep.subr.mxu0 %v531
    %634 = vmatpush1.msra.mxu0 %v530
    %635 = vmatprep.subr.mxu0 %v527
    %636 = vmatpush1.msra.mxu0 %v526
    %637 = vmatprep.subr.mxu0 %v523
    %638 = vmatpush1.msra.mxu0 %v522
    %639 = vmatprep.subr.mxu0 %v519
    %640 = vmatpush1.msra.mxu0 %v518
    %641 = vmatprep.subr.mxu0 %v515
    %642 = vmatpush1.msra.mxu0 %v514
    %643 = vmatprep.subr.mxu0 %v511
    %644 = vmatpush1.msra.mxu0 %v510
    %645 = vmatprep.subr.mxu0 %v507
    %646 = vmatpush1.msra.mxu0 %v506
    %647 = vmatprep.subr.mxu0 %v503
    %648 = vmatpush1.msra.mxu0 %v502
    %649 = vmatprep.subr.mxu0 %v499
    %650 = vmatpush1.msra.mxu0 %v498
    %651 = vmatprep.subr.mxu0 %v495
    %652 = vmatpush1.msra.mxu0 %v494
    %653 = vmatprep.subr.mxu0 %v491
    %654 = vmatpush1.msra.mxu0 %v490
    %655 = vmatprep.subr.mxu0 0.0
    %656 = vmatpush2.msra.mxu0 0.0
    %657 = vmatprep.subr.mxu0 0.0
    %658 = vmatpush2.msra.mxu0 0.0
    %659 = vmatprep.subr.mxu0 0.0
    %660 = vmatpush2.msra.mxu0 0.0
    %661 = vmatprep.subr.mxu0 0.0
    %662 = vmatpush2.msra.mxu0 0.0
    %663 = vmatprep.subr.mxu0 0.0
    %664 = vmatpush2.msra.mxu0 0.0
    %665 = vmatprep.subr.mxu0 0.0
    %666 = vmatpush2.msra.mxu0 0.0
    %667 = vmatprep.subr.mxu0 0.0
    %668 = vmatpush2.msra.mxu0 0.0
    %669 = vmatprep.subr.mxu0 0.0
    %670 = vmatpush2.msra.mxu0 0.0
    %671 = vmatprep.subr.mxu0 0.0
    %672 = vmatpush2.msra.mxu0 0.0
    %673 = vmatprep.subr.mxu0 0.0
    %674 = vmatpush2.msra.mxu0 0.0
    %675 = vmatprep.subr.mxu0 0.0
    %676 = vmatpush2.msra.mxu0 0.0
    %677 = vmatprep.subr.mxu0 0.0
    %678 = vmatpush2.msra.mxu0 0.0
    %679 = vmatprep.subr.mxu0 0.0
    %680 = vmatpush2.msra.mxu0 0.0
    %681 = vmatprep.subr.mxu0 0.0
    %682 = vmatpush2.msra.mxu0 0.0
    %683 = vmatprep.subr.mxu0 0.0
    %684 = vmatpush2.msra.mxu0 0.0
    %685 = vmatprep.subr.mxu0 0.0
    %686 = vmatpush2.msra.mxu0 0.0
    %687 = vmatprep.mubr.f32.mxu0 0.0
    %688 = vmatmul.mubr.f32.gmra.mxu0 0.0
    %v689 = vpop.f32.mrf.mxu0
    %v690 = vadd.f32 0.0, %v689
    %v691 = vpop.f32.mrf.mxu0
    %v692 = vadd.f32 0.0, %v691
    %693 = vdwg.mxu0
    %v694 = vadd.f32 %v484, %v619
    %v695 = vadd.f32 %v485, %v621
    %v696 = vadd.f32 %v486, %v690
    %v697 = vadd.f32 %v487, %v692
    %v698 = vxor.u32 %v694, 2147483648
    %v699 = vmul.f32 %v698, 1.442695
    %v700 = vpow.pop %v699
    %v701 = vadd.f32 %v700, 1.0
    %v702 = vrcp.pop %v701
    %v703 = vmul.f32 1.0, %v702
    %v704 = vxor.u32 %v695, 2147483648
    %v705 = vmul.f32 %v704, 1.442695
    %v706 = vpow.pop %v705
    %v707 = vadd.f32 %v706, 1.0
    %v708 = vrcp.pop %v707
    %v709 = vmul.f32 1.0, %v708
    %v710 = vtanh.pop %v696
    %v711 = vxor.u32 %v697, 2147483648
    %v712 = vmul.f32 %v711, 1.442695
    %v713 = vpow.pop %v712
    %v714 = vadd.f32 %v713, 1.0
    %v715 = vrcp.pop %v714
    %v716 = vmul.f32 1.0, %v715
    %v717 = vmul.f32 %v709, 0.0
    %v718 = vmul.f32 %v703, %v710
    %v719 = vadd.f32 %v717, %v718
    %v720 = vtanh.pop %v719
    %v721 = vmul.f32 %v716, %v720
    %722 = vst [vmem:[#allocation9] sm:$0xff] %v721
    %s723 = scalar_lea.vmem [#allocation2], 32
    %v724 = vld [vmem:[%s723] sm:$0xff]
    %v725 = vld [vmem:[%s723 + $0x8] sm:$0xff]
    %v726 = vld [vmem:[%s723 + $0x10] sm:$0xff]
    %v727 = vld [vmem:[%s723 + $0x18] sm:$0xff]
    %v728 = vld [vmem:[#allocation8] sm:$0xff]
    %v729 = vld [vmem:[#allocation8 + $0x8] sm:$0xff]
    %v730 = vld [vmem:[#allocation8 + $0x10] sm:$0xff]
    %v731 = vld [vmem:[#allocation8 + $0x18] sm:$0xff]
    %v732 = vld [vmem:[#allocation8 + $0x20] sm:$0xff]
    %v733 = vld [vmem:[#allocation8 + $0x28] sm:$0xff]
    %v734 = vld [vmem:[#allocation8 + $0x30] sm:$0xff]
    %v735 = vld [vmem:[#allocation8 + $0x38] sm:$0xff]
    %v736 = vld [vmem:[#allocation8 + $0x40] sm:$0xff]
    %v737 = vld [vmem:[#allocation8 + $0x48] sm:$0xff]
    %v738 = vld [vmem:[#allocation8 + $0x50] sm:$0xff]
    %v739 = vld [vmem:[#allocation8 + $0x58] sm:$0xff]
    %v740 = vld [vmem:[#allocation8 + $0x60] sm:$0xff]
    %v741 = vld [vmem:[#allocation8 + $0x68] sm:$0xff]
    %v742 = vld [vmem:[#allocation8 + $0x70] sm:$0xff]
    %v743 = vld [vmem:[#allocation8 + $0x78] sm:$0xff]
    %v744 = vld [vmem:[#allocation8 + $0x80] sm:$0xff]
    %v745 = vld [vmem:[#allocation8 + $0x88] sm:$0xff]
    %v746 = vld [vmem:[#allocation8 + $0x90] sm:$0xff]
    %v747 = vld [vmem:[#allocation8 + $0x98] sm:$0xff]
    %v748 = vld [vmem:[#allocation8 + $0xa0] sm:$0xff]
    %v749 = vld [vmem:[#allocation8 + $0xa8] sm:$0xff]
    %v750 = vld [vmem:[#allocation8 + $0xb0] sm:$0xff]
    %v751 = vld [vmem:[#allocation8 + $0xb8] sm:$0xff]
    %v752 = vld [vmem:[#allocation8 + $0xc0] sm:$0xff]
    %v753 = vld [vmem:[#allocation8 + $0xc8] sm:$0xff]
    %v754 = vld [vmem:[#allocation8 + $0xd0] sm:$0xff]
    %v755 = vld [vmem:[#allocation8 + $0xd8] sm:$0xff]
    %v756 = vld [vmem:[#allocation8 + $0xe0] sm:$0xff]
    %v757 = vld [vmem:[#allocation8 + $0xe8] sm:$0xff]
    %v758 = vld [vmem:[#allocation8 + $0xf0] sm:$0xff]
    %v759 = vld [vmem:[#allocation8 + $0xf8] sm:$0xff]
    %v760 = vld [vmem:[#allocation8 + $0x100] sm:$0xff]
    %v761 = vld [vmem:[#allocation8 + $0x108] sm:$0xff]
    %v762 = vld [vmem:[#allocation8 + $0x110] sm:$0xff]
    %v763 = vld [vmem:[#allocation8 + $0x118] sm:$0xff]
    %v764 = vld [vmem:[#allocation8 + $0x120] sm:$0xff]
    %v765 = vld [vmem:[#allocation8 + $0x128] sm:$0xff]
    %v766 = vld [vmem:[#allocation8 + $0x130] sm:$0xff]
    %v767 = vld [vmem:[#allocation8 + $0x138] sm:$0xff]
    %v768 = vld [vmem:[#allocation8 + $0x140] sm:$0xff]
    %v769 = vld [vmem:[#allocation8 + $0x148] sm:$0xff]
    %v770 = vld [vmem:[#allocation8 + $0x150] sm:$0xff]
    %v771 = vld [vmem:[#allocation8 + $0x158] sm:$0xff]
    %v772 = vld [vmem:[#allocation8 + $0x160] sm:$0xff]
    %v773 = vld [vmem:[#allocation8 + $0x168] sm:$0xff]
    %v774 = vld [vmem:[#allocation8 + $0x170] sm:$0xff]
    %v775 = vld [vmem:[#allocation8 + $0x178] sm:$0xff]
    %v776 = vld [vmem:[#allocation8 + $0x180] sm:$0xff]
    %v777 = vld [vmem:[#allocation8 + $0x188] sm:$0xff]
    %v778 = vld [vmem:[#allocation8 + $0x190] sm:$0xff]
    %v779 = vld [vmem:[#allocation8 + $0x198] sm:$0xff]
    %v780 = vld [vmem:[#allocation8 + $0x1a0] sm:$0xff]
    %v781 = vld [vmem:[#allocation8 + $0x1a8] sm:$0xff]
    %v782 = vld [vmem:[#allocation8 + $0x1b0] sm:$0xff]
    %v783 = vld [vmem:[#allocation8 + $0x1b8] sm:$0xff]
    %v784 = vld [vmem:[#allocation8 + $0x1c0] sm:$0xff]
    %v785 = vld [vmem:[#allocation8 + $0x1c8] sm:$0xff]
    %v786 = vld [vmem:[#allocation8 + $0x1d0] sm:$0xff]
    %v787 = vld [vmem:[#allocation8 + $0x1d8] sm:$0xff]
    %v788 = vld [vmem:[#allocation8 + $0x1e0] sm:$0xff]
    %v789 = vld [vmem:[#allocation8 + $0x1e8] sm:$0xff]
    %v790 = vld [vmem:[#allocation8 + $0x1f0] sm:$0xff]
    %v791 = vld [vmem:[#allocation8 + $0x1f8] sm:$0xff]
    %792 = vmatprep.subr.mxu0 %v789
    %793 = vmatpush1.msra.mxu0 %v788
    %794 = vmatprep.subr.mxu0 %v785
    %795 = vmatpush1.msra.mxu0 %v784
    %796 = vmatprep.subr.mxu0 %v781
    %797 = vmatpush1.msra.mxu0 %v780
    %798 = vmatprep.subr.mxu0 %v777
    %799 = vmatpush1.msra.mxu0 %v776
    %800 = vmatprep.subr.mxu0 %v773
    %801 = vmatpush1.msra.mxu0 %v772
    %802 = vmatprep.subr.mxu0 %v769
    %803 = vmatpush1.msra.mxu0 %v768
    %804 = vmatprep.subr.mxu0 %v765
    %805 = vmatpush1.msra.mxu0 %v764
    %806 = vmatprep.subr.mxu0 %v761
    %807 = vmatpush1.msra.mxu0 %v760
    %808 = vmatprep.subr.mxu0 %v757
    %809 = vmatpush1.msra.mxu0 %v756
    %810 = vmatprep.subr.mxu0 %v753
    %811 = vmatpush1.msra.mxu0 %v752
    %812 = vmatprep.subr.mxu0 %v749
    %813 = vmatpush1.msra.mxu0 %v748
    %814 = vmatprep.subr.mxu0 %v745
    %815 = vmatpush1.msra.mxu0 %v744
    %816 = vmatprep.subr.mxu0 %v741
    %817 = vmatpush1.msra.mxu0 %v740
    %818 = vmatprep.subr.mxu0 %v737
    %819 = vmatpush1.msra.mxu0 %v736
    %820 = vmatprep.subr.mxu0 %v733
    %821 = vmatpush1.msra.mxu0 %v732
    %822 = vmatprep.subr.mxu0 %v729
    %823 = vmatpush1.msra.mxu0 %v728
    %824 = vmatprep.subr.mxu0 0.0
    %825 = vmatpush2.msra.mxu0 0.0
    %826 = vmatprep.subr.mxu0 0.0
    %827 = vmatpush2.msra.mxu0 0.0
    %828 = vmatprep.subr.mxu0 0.0
    %829 = vmatpush2.msra.mxu0 0.0
    %830 = vmatprep.subr.mxu0 0.0
    %831 = vmatpush2.msra.mxu0 0.0
    %832 = vmatprep.subr.mxu0 0.0
    %833 = vmatpush2.msra.mxu0 0.0
    %834 = vmatprep.subr.mxu0 0.0
    %835 = vmatpush2.msra.mxu0 0.0
    %836 = vmatprep.subr.mxu0 0.0
    %837 = vmatpush2.msra.mxu0 0.0
    %838 = vmatprep.subr.mxu0 0.0
    %839 = vmatpush2.msra.mxu0 0.0
    %840 = vmatprep.subr.mxu0 0.0
    %841 = vmatpush2.msra.mxu0 0.0
    %842 = vmatprep.subr.mxu0 0.0
    %843 = vmatpush2.msra.mxu0 0.0
    %844 = vmatprep.subr.mxu0 0.0
    %845 = vmatpush2.msra.mxu0 0.0
    %846 = vmatprep.subr.mxu0 0.0
    %847 = vmatpush2.msra.mxu0 0.0
    %848 = vmatprep.subr.mxu0 0.0
    %849 = vmatpush2.msra.mxu0 0.0
    %850 = vmatprep.subr.mxu0 0.0
    %851 = vmatpush2.msra.mxu0 0.0
    %852 = vmatprep.subr.mxu0 0.0
    %853 = vmatpush2.msra.mxu0 0.0
    %854 = vmatprep.subr.mxu0 0.0
    %855 = vmatpush2.msra.mxu0 0.0
    %856 = vmatprep.mubr.f32.mxu0 0.0
    %857 = vmatmul.mubr.f32.gmra.mxu0 %v721
    %v858 = vpop.f32.mrf.mxu0
    %v859 = vadd.f32 0.0, %v858
    %v860 = vpop.f32.mrf.mxu0
    %v861 = vadd.f32 0.0, %v860
    %862 = vdwg.mxu0
    %863 = vmatprep.subr.mxu0 %v791
    %864 = vmatpush1.msra.mxu0 %v790
    %865 = vmatprep.subr.mxu0 %v787
    %866 = vmatpush1.msra.mxu0 %v786
    %867 = vmatprep.subr.mxu0 %v783
    %868 = vmatpush1.msra.mxu0 %v782
    %869 = vmatprep.subr.mxu0 %v779
    %870 = vmatpush1.msra.mxu0 %v778
    %871 = vmatprep.subr.mxu0 %v775
    %872 = vmatpush1.msra.mxu0 %v774
    %873 = vmatprep.subr.mxu0 %v771
    %874 = vmatpush1.msra.mxu0 %v770
    %875 = vmatprep.subr.mxu0 %v767
    %876 = vmatpush1.msra.mxu0 %v766
    %877 = vmatprep.subr.mxu0 %v763
    %878 = vmatpush1.msra.mxu0 %v762
    %879 = vmatprep.subr.mxu0 %v759
    %880 = vmatpush1.msra.mxu0 %v758
    %881 = vmatprep.subr.mxu0 %v755
    %882 = vmatpush1.msra.mxu0 %v754
    %883 = vmatprep.subr.mxu0 %v751
    %884 = vmatpush1.msra.mxu0 %v750
    %885 = vmatprep.subr.mxu0 %v747
    %886 = vmatpush1.msra.mxu0 %v746
    %887 = vmatprep.subr.mxu0 %v743
    %888 = vmatpush1.msra.mxu0 %v742
    %889 = vmatprep.subr.mxu0 %v739
    %890 = vmatpush1.msra.mxu0 %v738
    %891 = vmatprep.subr.mxu0 %v735
    %892 = vmatpush1.msra.mxu0 %v734
    %893 = vmatprep.subr.mxu0 %v731
    %894 = vmatpush1.msra.mxu0 %v730
    %895 = vmatprep.subr.mxu0 0.0
    %896 = vmatpush2.msra.mxu0 0.0
    %897 = vmatprep.subr.mxu0 0.0
    %898 = vmatpush2.msra.mxu0 0.0
    %899 = vmatprep.subr.mxu0 0.0
    %900 = vmatpush2.msra.mxu0 0.0
    %901 = vmatprep.subr.mxu0 0.0
    %902 = vmatpush2.msra.mxu0 0.0
    %903 = vmatprep.subr.mxu0 0.0
    %904 = vmatpush2.msra.mxu0 0.0
    %905 = vmatprep.subr.mxu0 0.0
    %906 = vmatpush2.msra.mxu0 0.0
    %907 = vmatprep.subr.mxu0 0.0
    %908 = vmatpush2.msra.mxu0 0.0
    %909 = vmatprep.subr.mxu0 0.0
    %910 = vmatpush2.msra.mxu0 0.0
    %911 = vmatprep.subr.mxu0 0.0
    %912 = vmatpush2.msra.mxu0 0.0
    %913 = vmatprep.subr.mxu0 0.0
    %914 = vmatpush2.msra.mxu0 0.0
    %915 = vmatprep.subr.mxu0 0.0
    %916 = vmatpush2.msra.mxu0 0.0
    %917 = vmatprep.subr.mxu0 0.0
    %918 = vmatpush2.msra.mxu0 0.0
    %919 = vmatprep.subr.mxu0 0.0
    %920 = vmatpush2.msra.mxu0 0.0
    %921 = vmatprep.subr.mxu0 0.0
    %922 = vmatpush2.msra.mxu0 0.0
    %923 = vmatprep.subr.mxu0 0.0
    %924 = vmatpush2.msra.mxu0 0.0
    %925 = vmatprep.subr.mxu0 0.0
    %926 = vmatpush2.msra.mxu0 0.0
    %927 = vmatprep.mubr.f32.mxu0 0.0
    %928 = vmatmul.mubr.f32.gmra.mxu0 %v721
    %v929 = vpop.f32.mrf.mxu0
    %v930 = vadd.f32 0.0, %v929
    %v931 = vpop.f32.mrf.mxu0
    %v932 = vadd.f32 0.0, %v931
    %933 = vdwg.mxu0
    %v934 = vadd.f32 %v724, %v859
    %v935 = vadd.f32 %v725, %v861
    %v936 = vadd.f32 %v726, %v930
    %v937 = vadd.f32 %v727, %v932
    %v938 = vxor.u32 %v934, 2147483648
    %v939 = vmul.f32 %v938, 1.442695
    %v940 = vpow.pop %v939
    %v941 = vadd.f32 %v940, 1.0
    %v942 = vrcp.pop %v941
    %v943 = vmul.f32 1.0, %v942
    %v944 = vxor.u32 %v935, 2147483648
    %v945 = vmul.f32 %v944, 1.442695
    %v946 = vpow.pop %v945
    %v947 = vadd.f32 %v946, 1.0
    %v948 = vrcp.pop %v947
    %v949 = vmul.f32 1.0, %v948
    %v950 = vtanh.pop %v936
    %v951 = vxor.u32 %v937, 2147483648
    %v952 = vmul.f32 %v951, 1.442695
    %v953 = vpow.pop %v952
    %v954 = vadd.f32 %v953, 1.0
    %v955 = vrcp.pop %v954
    %v956 = vmul.f32 1.0, %v955
    %v957 = vmul.f32 %v949, %v719
    %v958 = vmul.f32 %v943, %v950
    %v959 = vadd.f32 %v957, %v958
    %v960 = vtanh.pop %v959
    %v961 = vmul.f32 %v956, %v960
    %s962 = scalar_lea.vmem [#allocation9], 8
    %963 = vst [vmem:[%s962] sm:$0xff] %v961
    %s964 = scalar_lea.vmem [#allocation2], 64
    %v965 = vld [vmem:[%s964] sm:$0xff]
    %v966 = vld [vmem:[%s964 + $0x8] sm:$0xff]
    %v967 = vld [vmem:[%s964 + $0x10] sm:$0xff]
    %v968 = vld [vmem:[%s964 + $0x18] sm:$0xff]
    %v969 = vld [vmem:[#allocation8] sm:$0xff]
    %v970 = vld [vmem:[#allocation8 + $0x8] sm:$0xff]
    %v971 = vld [vmem:[#allocation8 + $0x10] sm:$0xff]
    %v972 = vld [vmem:[#allocation8 + $0x18] sm:$0xff]
    %v973 = vld [vmem:[#allocation8 + $0x20] sm:$0xff]
    %v974 = vld [vmem:[#allocation8 + $0x28] sm:$0xff]
    %v975 = vld [vmem:[#allocation8 + $0x30] sm:$0xff]
    %v976 = vld [vmem:[#allocation8 + $0x38] sm:$0xff]
    %v977 = vld [vmem:[#allocation8 + $0x40] sm:$0xff]
    %v978 = vld [vmem:[#allocation8 + $0x48] sm:$0xff]
    %v979 = vld [vmem:[#allocation8 + $0x50] sm:$0xff]
    %v980 = vld [vmem:[#allocation8 + $0x58] sm:$0xff]
    %v981 = vld [vmem:[#allocation8 + $0x60] sm:$0xff]
    %v982 = vld [vmem:[#allocation8 + $0x68] sm:$0xff]
    %v983 = vld [vmem:[#allocation8 + $0x70] sm:$0xff]
    %v984 = vld [vmem:[#allocation8 + $0x78] sm:$0xff]
    %v985 = vld [vmem:[#allocation8 + $0x80] sm:$0xff]
    %v986 = vld [vmem:[#allocation8 + $0x88] sm:$0xff]
    %v987 = vld [vmem:[#allocation8 + $0x90] sm:$0xff]
    %v988 = vld [vmem:[#allocation8 + $0x98] sm:$0xff]
    %v989 = vld [vmem:[#allocation8 + $0xa0] sm:$0xff]
    %v990 = vld [vmem:[#allocation8 + $0xa8] sm:$0xff]
    %v991 = vld [vmem:[#allocation8 + $0xb0] sm:$0xff]
    %v992 = vld [vmem:[#allocation8 + $0xb8] sm:$0xff]
    %v993 = vld [vmem:[#allocation8 + $0xc0] sm:$0xff]
    %v994 = vld [vmem:[#allocation8 + $0xc8] sm:$0xff]
    %v995 = vld [vmem:[#allocation8 + $0xd0] sm:$0xff]
    %v996 = vld [vmem:[#allocation8 + $0xd8] sm:$0xff]
    %v997 = vld [vmem:[#allocation8 + $0xe0] sm:$0xff]
    %v998 = vld [vmem:[#allocation8 + $0xe8] sm:$0xff]
    %v999 = vld [vmem:[#allocation8 + $0xf0] sm:$0xff]
    %v1000 = vld [vmem:[#allocation8 + $0xf8] sm:$0xff]
    %v1001 = vld [vmem:[#allocation8 + $0x100] sm:$0xff]
    %v1002 = vld [vmem:[#allocation8 + $0x108] sm:$0xff]
    %v1003 = vld [vmem:[#allocation8 + $0x110] sm:$0xff]
    %v1004 = vld [vmem:[#allocation8 + $0x118] sm:$0xff]
    %v1005 = vld [vmem:[#allocation8 + $0x120] sm:$0xff]
    %v1006 = vld [vmem:[#allocation8 + $0x128] sm:$0xff]
    %v1007 = vld [vmem:[#allocation8 + $0x130] sm:$0xff]
    %v1008 = vld [vmem:[#allocation8 + $0x138] sm:$0xff]
    %v1009 = vld [vmem:[#allocation8 + $0x140] sm:$0xff]
    %v1010 = vld [vmem:[#allocation8 + $0x148] sm:$0xff]
    %v1011 = vld [vmem:[#allocation8 + $0x150] sm:$0xff]
    %v1012 = vld [vmem:[#allocation8 + $0x158] sm:$0xff]
    %v1013 = vld [vmem:[#allocation8 + $0x160] sm:$0xff]
    %v1014 = vld [vmem:[#allocation8 + $0x168] sm:$0xff]
    %v1015 = vld [vmem:[#allocation8 + $0x170] sm:$0xff]
    %v1016 = vld [vmem:[#allocation8 + $0x178] sm:$0xff]
    %v1017 = vld [vmem:[#allocation8 + $0x180] sm:$0xff]
    %v1018 = vld [vmem:[#allocation8 + $0x188] sm:$0xff]
    %v1019 = vld [vmem:[#allocation8 + $0x190] sm:$0xff]
    %v1020 = vld [vmem:[#allocation8 + $0x198] sm:$0xff]
    %v1021 = vld [vmem:[#allocation8 + $0x1a0] sm:$0xff]
    %v1022 = vld [vmem:[#allocation8 + $0x1a8] sm:$0xff]
    %v1023 = vld [vmem:[#allocation8 + $0x1b0] sm:$0xff]
    %v1024 = vld [vmem:[#allocation8 + $0x1b8] sm:$0xff]
    %v1025 = vld [vmem:[#allocation8 + $0x1c0] sm:$0xff]
    %v1026 = vld [vmem:[#allocation8 + $0x1c8] sm:$0xff]
    %v1027 = vld [vmem:[#allocation8 + $0x1d0] sm:$0xff]
    %v1028 = vld [vmem:[#allocation8 + $0x1d8] sm:$0xff]
    %v1029 = vld [vmem:[#allocation8 + $0x1e0] sm:$0xff]
    %v1030 = vld [vmem:[#allocation8 + $0x1e8] sm:$0xff]
    %v1031 = vld [vmem:[#allocation8 + $0x1f0] sm:$0xff]
    %v1032 = vld [vmem:[#allocation8 + $0x1f8] sm:$0xff]
    %1033 = vmatprep.subr.mxu0 %v1030
    %1034 = vmatpush1.msra.mxu0 %v1029
    %1035 = vmatprep.subr.mxu0 %v1026
    %1036 = vmatpush1.msra.mxu0 %v1025
    %1037 = vmatprep.subr.mxu0 %v1022
    %1038 = vmatpush1.msra.mxu0 %v1021
    %1039 = vmatprep.subr.mxu0 %v1018
    %1040 = vmatpush1.msra.mxu0 %v1017
    %1041 = vmatprep.subr.mxu0 %v1014
    %1042 = vmatpush1.msra.mxu0 %v1013
    %1043 = vmatprep.subr.mxu0 %v1010
    %1044 = vmatpush1.msra.mxu0 %v1009
    %1045 = vmatprep.subr.mxu0 %v1006
    %1046 = vmatpush1.msra.mxu0 %v1005
    %1047 = vmatprep.subr.mxu0 %v1002
    %1048 = vmatpush1.msra.mxu0 %v1001
    %1049 = vmatprep.subr.mxu0 %v998
    %1050 = vmatpush1.msra.mxu0 %v997
    %1051 = vmatprep.subr.mxu0 %v994
    %1052 = vmatpush1.msra.mxu0 %v993
    %1053 = vmatprep.subr.mxu0 %v990
    %1054 = vmatpush1.msra.mxu0 %v989
    %1055 = vmatprep.subr.mxu0 %v986
    %1056 = vmatpush1.msra.mxu0 %v985
    %1057 = vmatprep.subr.mxu0 %v982
    %1058 = vmatpush1.msra.mxu0 %v981
    %1059 = vmatprep.subr.mxu0 %v978
    %1060 = vmatpush1.msra.mxu0 %v977
    %1061 = vmatprep.subr.mxu0 %v974
    %1062 = vmatpush1.msra.mxu0 %v973
    %1063 = vmatprep.subr.mxu0 %v970
    %1064 = vmatpush1.msra.mxu0 %v969
    %1065 = vmatprep.subr.mxu0 0.0
    %1066 = vmatpush2.msra.mxu0 0.0
    %1067 = vmatprep.subr.mxu0 0.0
    %1068 = vmatpush2.msra.mxu0 0.0
    %1069 = vmatprep.subr.mxu0 0.0
    %1070 = vmatpush2.msra.mxu0 0.0
    %1071 = vmatprep.subr.mxu0 0.0
    %1072 = vmatpush2.msra.mxu0 0.0
    %1073 = vmatprep.subr.mxu0 0.0
    %1074 = vmatpush2.msra.mxu0 0.0
    %1075 = vmatprep.subr.mxu0 0.0
    %1076 = vmatpush2.msra.mxu0 0.0
    %1077 = vmatprep.subr.mxu0 0.0
    %1078 = vmatpush2.msra.mxu0 0.0
    %1079 = vmatprep.subr.mxu0 0.0
    %1080 = vmatpush2.msra.mxu0 0.0
    %1081 = vmatprep.subr.mxu0 0.0
    %1082 = vmatpush2.msra.mxu0 0.0
    %1083 = vmatprep.subr.mxu0 0.0
    %1084 = vmatpush2.msra.mxu0 0.0
    %1085 = vmatprep.subr.mxu0 0.0
    %1086 = vmatpush2.msra.mxu0 0.0
    %1087 = vmatprep.subr.mxu0 0.0
    %1088 = vmatpush2.msra.mxu0 0.0
    %1089 = vmatprep.subr.mxu0 0.0
    %1090 = vmatpush2.msra.mxu0 0.0
    %1091 = vmatprep.subr.mxu0 0.0
    %1092 = vmatpush2.msra.mxu0 0.0
    %1093 = vmatprep.subr.mxu0 0.0
    %1094 = vmatpush2.msra.mxu0 0.0
    %1095 = vmatprep.subr.mxu0 0.0
    %1096 = vmatpush2.msra.mxu0 0.0
    %1097 = vmatprep.mubr.f32.mxu0 0.0
    %1098 = vmatmul.mubr.f32.gmra.mxu0 %v961
    %v1099 = vpop.f32.mrf.mxu0
    %v1100 = vadd.f32 0.0, %v1099
    %v1101 = vpop.f32.mrf.mxu0
    %v1102 = vadd.f32 0.0, %v1101
    %1103 = vdwg.mxu0
    %1104 = vmatprep.subr.mxu0 %v1032
    %1105 = vmatpush1.msra.mxu0 %v1031
    %1106 = vmatprep.subr.mxu0 %v1028
    %1107 = vmatpush1.msra.mxu0 %v1027
    %1108 = vmatprep.subr.mxu0 %v1024
    %1109 = vmatpush1.msra.mxu0 %v1023
    %1110 = vmatprep.subr.mxu0 %v1020
    %1111 = vmatpush1.msra.mxu0 %v1019
    %1112 = vmatprep.subr.mxu0 %v1016
    %1113 = vmatpush1.msra.mxu0 %v1015
    %1114 = vmatprep.subr.mxu0 %v1012
    %1115 = vmatpush1.msra.mxu0 %v1011
    %1116 = vmatprep.subr.mxu0 %v1008
    %1117 = vmatpush1.msra.mxu0 %v1007
    %1118 = vmatprep.subr.mxu0 %v1004
    %1119 = vmatpush1.msra.mxu0 %v1003
    %1120 = vmatprep.subr.mxu0 %v1000
    %1121 = vmatpush1.msra.mxu0 %v999
    %1122 = vmatprep.subr.mxu0 %v996
    %1123 = vmatpush1.msra.mxu0 %v995
    %1124 = vmatprep.subr.mxu0 %v992
    %1125 = vmatpush1.msra.mxu0 %v991
    %1126 = vmatprep.subr.mxu0 %v988
    %1127 = vmatpush1.msra.mxu0 %v987
    %1128 = vmatprep.subr.mxu0 %v984
    %1129 = vmatpush1.msra.mxu0 %v983
    %1130 = vmatprep.subr.mxu0 %v980
    %1131 = vmatpush1.msra.mxu0 %v979
    %1132 = vmatprep.subr.mxu0 %v976
    %1133 = vmatpush1.msra.mxu0 %v975
    %1134 = vmatprep.subr.mxu0 %v972
    %1135 = vmatpush1.msra.mxu0 %v971
    %1136 = vmatprep.subr.mxu0 0.0
    %1137 = vmatpush2.msra.mxu0 0.0
    %1138 = vmatprep.subr.mxu0 0.0
    %1139 = vmatpush2.msra.mxu0 0.0
    %1140 = vmatprep.subr.mxu0 0.0
    %1141 = vmatpush2.msra.mxu0 0.0
    %1142 = vmatprep.subr.mxu0 0.0
    %1143 = vmatpush2.msra.mxu0 0.0
    %1144 = vmatprep.subr.mxu0 0.0
    %1145 = vmatpush2.msra.mxu0 0.0
    %1146 = vmatprep.subr.mxu0 0.0
    %1147 = vmatpush2.msra.mxu0 0.0
    %1148 = vmatprep.subr.mxu0 0.0
    %1149 = vmatpush2.msra.mxu0 0.0
    %1150 = vmatprep.subr.mxu0 0.0
    %1151 = vmatpush2.msra.mxu0 0.0
    %1152 = vmatprep.subr.mxu0 0.0
    %1153 = vmatpush2.msra.mxu0 0.0
    %1154 = vmatprep.subr.mxu0 0.0
    %1155 = vmatpush2.msra.mxu0 0.0
    %1156 = vmatprep.subr.mxu0 0.0
    %1157 = vmatpush2.msra.mxu0 0.0
    %1158 = vmatprep.subr.mxu0 0.0
    %1159 = vmatpush2.msra.mxu0 0.0
    %1160 = vmatprep.subr.mxu0 0.0
    %1161 = vmatpush2.msra.mxu0 0.0
    %1162 = vmatprep.subr.mxu0 0.0
    %1163 = vmatpush2.msra.mxu0 0.0
    %1164 = vmatprep.subr.mxu0 0.0
    %1165 = vmatpush2.msra.mxu0 0.0
    %1166 = vmatprep.subr.mxu0 0.0
    %1167 = vmatpush2.msra.mxu0 0.0
    %1168 = vmatprep.mubr.f32.mxu0 0.0
    %1169 = vmatmul.mubr.f32.gmra.mxu0 %v961
    %v1170 = vpop.f32.mrf.mxu0
    %v1171 = vadd.f32 0.0, %v1170
    %v1172 = vpop.f32.mrf.mxu0
    %v1173 = vadd.f32 0.0, %v1172
    %1174 = vdwg.mxu0
    %v1175 = vadd.f32 %v965, %v1100
    %v1176 = vadd.f32 %v966, %v1102
    %v1177 = vadd.f32 %v967, %v1171
    %v1178 = vadd.f32 %v968, %v1173
    %v1179 = vxor.u32 %v1175, 2147483648
    %v1180 = vmul.f32 %v1179, 1.442695
    %v1181 = vpow.pop %v1180
    %v1182 = vadd.f32 %v1181, 1.0
    %v1183 = vrcp.pop %v1182
    %v1184 = vmul.f32 1.0, %v1183
    %v1185 = vxor.u32 %v1176, 2147483648
    %v1186 = vmul.f32 %v1185, 1.442695
    %v1187 = vpow.pop %v1186
    %v1188 = vadd.f32 %v1187, 1.0
    %v1189 = vrcp.pop %v1188
    %v1190 = vmul.f32 1.0, %v1189
    %v1191 = vtanh.pop %v1177
    %v1192 = vxor.u32 %v1178, 2147483648
    %v1193 = vmul.f32 %v1192, 1.442695
    %v1194 = vpow.pop %v1193
    %v1195 = vadd.f32 %v1194, 1.0
    %v1196 = vrcp.pop %v1195
    %v1197 = vmul.f32 1.0, %v1196
    %v1198 = vmul.f32 %v1190, %v959
    %v1199 = vmul.f32 %v1184, %v1191
    %v1200 = vadd.f32 %v1198, %v1199
    %v1201 = vtanh.pop %v1200
    %v1202 = vmul.f32 %v1197, %v1201
    %s1203 = scalar_lea.vmem [#allocation9], 16
    %1204 = vst [vmem:[%s1203] sm:$0xff] %v1202
    %s1205 = scalar_lea.vmem [#allocation2], 96
    %v1206 = vld [vmem:[%s1205] sm:$0xff]
    %v1207 = vld [vmem:[%s1205 + $0x8] sm:$0xff]
    %v1208 = vld [vmem:[%s1205 + $0x10] sm:$0xff]
    %v1209 = vld [vmem:[%s1205 + $0x18] sm:$0xff]
    %v1210 = vld [vmem:[#allocation8] sm:$0xff]
    %v1211 = vld [vmem:[#allocation8 + $0x8] sm:$0xff]
    %v1212 = vld [vmem:[#allocation8 + $0x10] sm:$0xff]
    %v1213 = vld [vmem:[#allocation8 + $0x18] sm:$0xff]
    %v1214 = vld [vmem:[#allocation8 + $0x20] sm:$0xff]
    %v1215 = vld [vmem:[#allocation8 + $0x28] sm:$0xff]
    %v1216 = vld [vmem:[#allocation8 + $0x30] sm:$0xff]
    %v1217 = vld [vmem:[#allocation8 + $0x38] sm:$0xff]
    %v1218 = vld [vmem:[#allocation8 + $0x40] sm:$0xff]
    %v1219 = vld [vmem:[#allocation8 + $0x48] sm:$0xff]
    %v1220 = vld [vmem:[#allocation8 + $0x50] sm:$0xff]
    %v1221 = vld [vmem:[#allocation8 + $0x58] sm:$0xff]
    %v1222 = vld [vmem:[#allocation8 + $0x60] sm:$0xff]
    %v1223 = vld [vmem:[#allocation8 + $0x68] sm:$0xff]
    %v1224 = vld [vmem:[#allocation8 + $0x70] sm:$0xff]
    %v1225 = vld [vmem:[#allocation8 + $0x78] sm:$0xff]
    %v1226 = vld [vmem:[#allocation8 + $0x80] sm:$0xff]
    %v1227 = vld [vmem:[#allocation8 + $0x88] sm:$0xff]
    %v1228 = vld [vmem:[#allocation8 + $0x90] sm:$0xff]
    %v1229 = vld [vmem:[#allocation8 + $0x98] sm:$0xff]
    %v1230 = vld [vmem:[#allocation8 + $0xa0] sm:$0xff]
    %v1231 = vld [vmem:[#allocation8 + $0xa8] sm:$0xff]
    %v1232 = vld [vmem:[#allocation8 + $0xb0] sm:$0xff]
    %v1233 = vld [vmem:[#allocation8 + $0xb8] sm:$0xff]
    %v1234 = vld [vmem:[#allocation8 + $0xc0] sm:$0xff]
    %v1235 = vld [vmem:[#allocation8 + $0xc8] sm:$0xff]
    %v1236 = vld [vmem:[#allocation8 + $0xd0] sm:$0xff]
    %v1237 = vld [vmem:[#allocation8 + $0xd8] sm:$0xff]
    %v1238 = vld [vmem:[#allocation8 + $0xe0] sm:$0xff]
    %v1239 = vld [vmem:[#allocation8 + $0xe8] sm:$0xff]
    %v1240 = vld [vmem:[#allocation8 + $0xf0] sm:$0xff]
    %v1241 = vld [vmem:[#allocation8 + $0xf8] sm:$0xff]
    %v1242 = vld [vmem:[#allocation8 + $0x100] sm:$0xff]
    %v1243 = vld [vmem:[#allocation8 + $0x108] sm:$0xff]
    %v1244 = vld [vmem:[#allocation8 + $0x110] sm:$0xff]
    %v1245 = vld [vmem:[#allocation8 + $0x118] sm:$0xff]
    %v1246 = vld [vmem:[#allocation8 + $0x120] sm:$0xff]
    %v1247 = vld [vmem:[#allocation8 + $0x128] sm:$0xff]
    %v1248 = vld [vmem:[#allocation8 + $0x130] sm:$0xff]
    %v1249 = vld [vmem:[#allocation8 + $0x138] sm:$0xff]
    %v1250 = vld [vmem:[#allocation8 + $0x140] sm:$0xff]
    %v1251 = vld [vmem:[#allocation8 + $0x148] sm:$0xff]
    %v1252 = vld [vmem:[#allocation8 + $0x150] sm:$0xff]
    %v1253 = vld [vmem:[#allocation8 + $0x158] sm:$0xff]
    %v1254 = vld [vmem:[#allocation8 + $0x160] sm:$0xff]
    %v1255 = vld [vmem:[#allocation8 + $0x168] sm:$0xff]
    %v1256 = vld [vmem:[#allocation8 + $0x170] sm:$0xff]
    %v1257 = vld [vmem:[#allocation8 + $0x178] sm:$0xff]
    %v1258 = vld [vmem:[#allocation8 + $0x180] sm:$0xff]
    %v1259 = vld [vmem:[#allocation8 + $0x188] sm:$0xff]
    %v1260 = vld [vmem:[#allocation8 + $0x190] sm:$0xff]
    %v1261 = vld [vmem:[#allocation8 + $0x198] sm:$0xff]
    %v1262 = vld [vmem:[#allocation8 + $0x1a0] sm:$0xff]
    %v1263 = vld [vmem:[#allocation8 + $0x1a8] sm:$0xff]
    %v1264 = vld [vmem:[#allocation8 + $0x1b0] sm:$0xff]
    %v1265 = vld [vmem:[#allocation8 + $0x1b8] sm:$0xff]
    %v1266 = vld [vmem:[#allocation8 + $0x1c0] sm:$0xff]
    %v1267 = vld [vmem:[#allocation8 + $0x1c8] sm:$0xff]
    %v1268 = vld [vmem:[#allocation8 + $0x1d0] sm:$0xff]
    %v1269 = vld [vmem:[#allocation8 + $0x1d8] sm:$0xff]
    %v1270 = vld [vmem:[#allocation8 + $0x1e0] sm:$0xff]
    %v1271 = vld [vmem:[#allocation8 + $0x1e8] sm:$0xff]
    %v1272 = vld [vmem:[#allocation8 + $0x1f0] sm:$0xff]
    %v1273 = vld [vmem:[#allocation8 + $0x1f8] sm:$0xff]
    %1274 = vmatprep.subr.mxu0 %v1271
    %1275 = vmatpush1.msra.mxu0 %v1270
    %1276 = vmatprep.subr.mxu0 %v1267
    %1277 = vmatpush1.msra.mxu0 %v1266
    %1278 = vmatprep.subr.mxu0 %v1263
    %1279 = vmatpush1.msra.mxu0 %v1262
    %1280 = vmatprep.subr.mxu0 %v1259
    %1281 = vmatpush1.msra.mxu0 %v1258
    %1282 = vmatprep.subr.mxu0 %v1255
    %1283 = vmatpush1.msra.mxu0 %v1254
    %1284 = vmatprep.subr.mxu0 %v1251
    %1285 = vmatpush1.msra.mxu0 %v1250
    %1286 = vmatprep.subr.mxu0 %v1247
    %1287 = vmatpush1.msra.mxu0 %v1246
    %1288 = vmatprep.subr.mxu0 %v1243
    %1289 = vmatpush1.msra.mxu0 %v1242
    %1290 = vmatprep.subr.mxu0 %v1239
    %1291 = vmatpush1.msra.mxu0 %v1238
    %1292 = vmatprep.subr.mxu0 %v1235
    %1293 = vmatpush1.msra.mxu0 %v1234
    %1294 = vmatprep.subr.mxu0 %v1231
    %1295 = vmatpush1.msra.mxu0 %v1230
    %1296 = vmatprep.subr.mxu0 %v1227
    %1297 = vmatpush1.msra.mxu0 %v1226
    %1298 = vmatprep.subr.mxu0 %v1223
    %1299 = vmatpush1.msra.mxu0 %v1222
    %1300 = vmatprep.subr.mxu0 %v1219
    %1301 = vmatpush1.msra.mxu0 %v1218
    %1302 = vmatprep.subr.mxu0 %v1215
    %1303 = vmatpush1.msra.mxu0 %v1214
    %1304 = vmatprep.subr.mxu0 %v1211
    %1305 = vmatpush1.msra.mxu0 %v1210
    %1306 = vmatprep.subr.mxu0 0.0
    %1307 = vmatpush2.msra.mxu0 0.0
    %1308 = vmatprep.subr.mxu0 0.0
    %1309 = vmatpush2.msra.mxu0 0.0
    %1310 = vmatprep.subr.mxu0 0.0
    %1311 = vmatpush2.msra.mxu0 0.0
    %1312 = vmatprep.subr.mxu0 0.0
    %1313 = vmatpush2.msra.mxu0 0.0
    %1314 = vmatprep.subr.mxu0 0.0
    %1315 = vmatpush2.msra.mxu0 0.0
    %1316 = vmatprep.subr.mxu0 0.0
    %1317 = vmatpush2.msra.mxu0 0.0
    %1318 = vmatprep.subr.mxu0 0.0
    %1319 = vmatpush2.msra.mxu0 0.0
    %1320 = vmatprep.subr.mxu0 0.0
    %1321 = vmatpush2.msra.mxu0 0.0
    %1322 = vmatprep.subr.mxu0 0.0
    %1323 = vmatpush2.msra.mxu0 0.0
    %1324 = vmatprep.subr.mxu0 0.0
    %1325 = vmatpush2.msra.mxu0 0.0
    %1326 = vmatprep.subr.mxu0 0.0
    %1327 = vmatpush2.msra.mxu0 0.0
    %1328 = vmatprep.subr.mxu0 0.0
    %1329 = vmatpush2.msra.mxu0 0.0
    %1330 = vmatprep.subr.mxu0 0.0
    %1331 = vmatpush2.msra.mxu0 0.0
    %1332 = vmatprep.subr.mxu0 0.0
    %1333 = vmatpush2.msra.mxu0 0.0
    %1334 = vmatprep.subr.mxu0 0.0
    %1335 = vmatpush2.msra.mxu0 0.0
    %1336 = vmatprep.subr.mxu0 0.0
    %1337 = vmatpush2.msra.mxu0 0.0
    %1338 = vmatprep.mubr.f32.mxu0 0.0
    %1339 = vmatmul.mubr.f32.gmra.mxu0 %v1202
    %v1340 = vpop.f32.mrf.mxu0
    %v1341 = vadd.f32 0.0, %v1340
    %v1342 = vpop.f32.mrf.mxu0
    %v1343 = vadd.f32 0.0, %v1342
    %1344 = vdwg.mxu0
    %1345 = vmatprep.subr.mxu0 %v1273
    %1346 = vmatpush1.msra.mxu0 %v1272
    %1347 = vmatprep.subr.mxu0 %v1269
    %1348 = vmatpush1.msra.mxu0 %v1268
    %1349 = vmatprep.subr.mxu0 %v1265
    %1350 = vmatpush1.msra.mxu0 %v1264
    %1351 = vmatprep.subr.mxu0 %v1261
    %1352 = vmatpush1.msra.mxu0 %v1260
    %1353 = vmatprep.subr.mxu0 %v1257
    %1354 = vmatpush1.msra.mxu0 %v1256
    %1355 = vmatprep.subr.mxu0 %v1253
    %1356 = vmatpush1.msra.mxu0 %v1252
    %1357 = vmatprep.subr.mxu0 %v1249
    %1358 = vmatpush1.msra.mxu0 %v1248
    %1359 = vmatprep.subr.mxu0 %v1245
    %1360 = vmatpush1.msra.mxu0 %v1244
    %1361 = vmatprep.subr.mxu0 %v1241
    %1362 = vmatpush1.msra.mxu0 %v1240
    %1363 = vmatprep.subr.mxu0 %v1237
    %1364 = vmatpush1.msra.mxu0 %v1236
    %1365 = vmatprep.subr.mxu0 %v1233
    %1366 = vmatpush1.msra.mxu0 %v1232
    %1367 = vmatprep.subr.mxu0 %v1229
    %1368 = vmatpush1.msra.mxu0 %v1228
    %1369 = vmatprep.subr.mxu0 %v1225
    %1370 = vmatpush1.msra.mxu0 %v1224
    %1371 = vmatprep.subr.mxu0 %v1221
    %1372 = vmatpush1.msra.mxu0 %v1220
    %1373 = vmatprep.subr.mxu0 %v1217
    %1374 = vmatpush1.msra.mxu0 %v1216
    %1375 = vmatprep.subr.mxu0 %v1213
    %1376 = vmatpush1.msra.mxu0 %v1212
    %1377 = vmatprep.subr.mxu0 0.0
    %1378 = vmatpush2.msra.mxu0 0.0
    %1379 = vmatprep.subr.mxu0 0.0
    %1380 = vmatpush2.msra.mxu0 0.0
    %1381 = vmatprep.subr.mxu0 0.0
    %1382 = vmatpush2.msra.mxu0 0.0
    %1383 = vmatprep.subr.mxu0 0.0
    %1384 = vmatpush2.msra.mxu0 0.0
    %1385 = vmatprep.subr.mxu0 0.0
    %1386 = vmatpush2.msra.mxu0 0.0
    %1387 = vmatprep.subr.mxu0 0.0
    %1388 = vmatpush2.msra.mxu0 0.0
    %1389 = vmatprep.subr.mxu0 0.0
    %1390 = vmatpush2.msra.mxu0 0.0
    %1391 = vmatprep.subr.mxu0 0.0
    %1392 = vmatpush2.msra.mxu0 0.0
    %1393 = vmatprep.subr.mxu0 0.0
    %1394 = vmatpush2.msra.mxu0 0.0
    %1395 = vmatprep.subr.mxu0 0.0
    %1396 = vmatpush2.msra.mxu0 0.0
    %1397 = vmatprep.subr.mxu0 0.0
    %1398 = vmatpush2.msra.mxu0 0.0
    %1399 = vmatprep.subr.mxu0 0.0
    %1400 = vmatpush2.msra.mxu0 0.0
    %1401 = vmatprep.subr.mxu0 0.0
    %1402 = vmatpush2.msra.mxu0 0.0
    %1403 = vmatprep.subr.mxu0 0.0
    %1404 = vmatpush2.msra.mxu0 0.0
    %1405 = vmatprep.subr.mxu0 0.0
    %1406 = vmatpush2.msra.mxu0 0.0
    %1407 = vmatprep.subr.mxu0 0.0
    %1408 = vmatpush2.msra.mxu0 0.0
    %1409 = vmatprep.mubr.f32.mxu0 0.0
    %1410 = vmatmul.mubr.f32.gmra.mxu0 %v1202
    %v1411 = vpop.f32.mrf.mxu0
    %v1412 = vadd.f32 0.0, %v1411
    %v1413 = vpop.f32.mrf.mxu0
    %v1414 = vadd.f32 0.0, %v1413
    %1415 = vdwg.mxu0
    %v1416 = vadd.f32 %v1206, %v1341
    %v1417 = vadd.f32 %v1207, %v1343
    %v1418 = vadd.f32 %v1208, %v1412
    %v1419 = vadd.f32 %v1209, %v1414
    %v1420 = vxor.u32 %v1416, 2147483648
    %v1421 = vmul.f32 %v1420, 1.442695
    %v1422 = vpow.pop %v1421
    %v1423 = vadd.f32 %v1422, 1.0
    %v1424 = vrcp.pop %v1423
    %v1425 = vmul.f32 1.0, %v1424
    %v1426 = vxor.u32 %v1417, 2147483648
    %v1427 = vmul.f32 %v1426, 1.442695
    %v1428 = vpow.pop %v1427
    %v1429 = vadd.f32 %v1428, 1.0
    %v1430 = vrcp.pop %v1429
    %v1431 = vmul.f32 1.0, %v1430
    %v1432 = vtanh.pop %v1418
    %v1433 = vxor.u32 %v1419, 2147483648
    %v1434 = vmul.f32 %v1433, 1.442695
    %v1435 = vpow.pop %v1434
    %v1436 = vadd.f32 %v1435, 1.0
    %v1437 = vrcp.pop %v1436
    %v1438 = vmul.f32 1.0, %v1437
    %v1439 = vmul.f32 %v1431, %v1200
    %v1440 = vmul.f32 %v1425, %v1432
    %v1441 = vadd.f32 %v1439, %v1440
    %v1442 = vtanh.pop %v1441
    %v1443 = vmul.f32 %v1438, %v1442
    %s1444 = scalar_lea.vmem [#allocation9], 24
    %1445 = vst [vmem:[%s1444] sm:$0xff] %v1443
    %s1446 = scalar_lea.vmem [#allocation2], 128
    %v1447 = vld [vmem:[%s1446] sm:$0xff]
    %v1448 = vld [vmem:[%s1446 + $0x8] sm:$0xff]
    %v1449 = vld [vmem:[%s1446 + $0x10] sm:$0xff]
    %v1450 = vld [vmem:[%s1446 + $0x18] sm:$0xff]
    %v1451 = vld [vmem:[#allocation8] sm:$0xff]
    %v1452 = vld [vmem:[#allocation8 + $0x8] sm:$0xff]
    %v1453 = vld [vmem:[#allocation8 + $0x10] sm:$0xff]
    %v1454 = vld [vmem:[#allocation8 + $0x18] sm:$0xff]
    %v1455 = vld [vmem:[#allocation8 + $0x20] sm:$0xff]
    %v1456 = vld [vmem:[#allocation8 + $0x28] sm:$0xff]
    %v1457 = vld [vmem:[#allocation8 + $0x30] sm:$0xff]
    %v1458 = vld [vmem:[#allocation8 + $0x38] sm:$0xff]
    %v1459 = vld [vmem:[#allocation8 + $0x40] sm:$0xff]
    %v1460 = vld [vmem:[#allocation8 + $0x48] sm:$0xff]
    %v1461 = vld [vmem:[#allocation8 + $0x50] sm:$0xff]
    %v1462 = vld [vmem:[#allocation8 + $0x58] sm:$0xff]
    %v1463 = vld [vmem:[#allocation8 + $0x60] sm:$0xff]
    %v1464 = vld [vmem:[#allocation8 + $0x68] sm:$0xff]
    %v1465 = vld [vmem:[#allocation8 + $0x70] sm:$0xff]
    %v1466 = vld [vmem:[#allocation8 + $0x78] sm:$0xff]
    %v1467 = vld [vmem:[#allocation8 + $0x80] sm:$0xff]
    %v1468 = vld [vmem:[#allocation8 + $0x88] sm:$0xff]
    %v1469 = vld [vmem:[#allocation8 + $0x90] sm:$0xff]
    %v1470 = vld [vmem:[#allocation8 + $0x98] sm:$0xff]
    %v1471 = vld [vmem:[#allocation8 + $0xa0] sm:$0xff]
    %v1472 = vld [vmem:[#allocation8 + $0xa8] sm:$0xff]
    %v1473 = vld [vmem:[#allocation8 + $0xb0] sm:$0xff]
    %v1474 = vld [vmem:[#allocation8 + $0xb8] sm:$0xff]
    %v1475 = vld [vmem:[#allocation8 + $0xc0] sm:$0xff]
    %v1476 = vld [vmem:[#allocation8 + $0xc8] sm:$0xff]
    %v1477 = vld [vmem:[#allocation8 + $0xd0] sm:$0xff]
    %v1478 = vld [vmem:[#allocation8 + $0xd8] sm:$0xff]
    %v1479 = vld [vmem:[#allocation8 + $0xe0] sm:$0xff]
    %v1480 = vld [vmem:[#allocation8 + $0xe8] sm:$0xff]
    %v1481 = vld [vmem:[#allocation8 + $0xf0] sm:$0xff]
    %v1482 = vld [vmem:[#allocation8 + $0xf8] sm:$0xff]
    %v1483 = vld [vmem:[#allocation8 + $0x100] sm:$0xff]
    %v1484 = vld [vmem:[#allocation8 + $0x108] sm:$0xff]
    %v1485 = vld [vmem:[#allocation8 + $0x110] sm:$0xff]
    %v1486 = vld [vmem:[#allocation8 + $0x118] sm:$0xff]
    %v1487 = vld [vmem:[#allocation8 + $0x120] sm:$0xff]
    %v1488 = vld [vmem:[#allocation8 + $0x128] sm:$0xff]
    %v1489 = vld [vmem:[#allocation8 + $0x130] sm:$0xff]
    %v1490 = vld [vmem:[#allocation8 + $0x138] sm:$0xff]
    %v1491 = vld [vmem:[#allocation8 + $0x140] sm:$0xff]
    %v1492 = vld [vmem:[#allocation8 + $0x148] sm:$0xff]
    %v1493 = vld [vmem:[#allocation8 + $0x150] sm:$0xff]
    %v1494 = vld [vmem:[#allocation8 + $0x158] sm:$0xff]
    %v1495 = vld [vmem:[#allocation8 + $0x160] sm:$0xff]
    %v1496 = vld [vmem:[#allocation8 + $0x168] sm:$0xff]
    %v1497 = vld [vmem:[#allocation8 + $0x170] sm:$0xff]
    %v1498 = vld [vmem:[#allocation8 + $0x178] sm:$0xff]
    %v1499 = vld [vmem:[#allocation8 + $0x180] sm:$0xff]
    %v1500 = vld [vmem:[#allocation8 + $0x188] sm:$0xff]
    %v1501 = vld [vmem:[#allocation8 + $0x190] sm:$0xff]
    %v1502 = vld [vmem:[#allocation8 + $0x198] sm:$0xff]
    %v1503 = vld [vmem:[#allocation8 + $0x1a0] sm:$0xff]
    %v1504 = vld [vmem:[#allocation8 + $0x1a8] sm:$0xff]
    %v1505 = vld [vmem:[#allocation8 + $0x1b0] sm:$0xff]
    %v1506 = vld [vmem:[#allocation8 + $0x1b8] sm:$0xff]
    %v1507 = vld [vmem:[#allocation8 + $0x1c0] sm:$0xff]
    %v1508 = vld [vmem:[#allocation8 + $0x1c8] sm:$0xff]
    %v1509 = vld [vmem:[#allocation8 + $0x1d0] sm:$0xff]
    %v1510 = vld [vmem:[#allocation8 + $0x1d8] sm:$0xff]
    %v1511 = vld [vmem:[#allocation8 + $0x1e0] sm:$0xff]
    %v1512 = vld [vmem:[#allocation8 + $0x1e8] sm:$0xff]
    %v1513 = vld [vmem:[#allocation8 + $0x1f0] sm:$0xff]
    %v1514 = vld [vmem:[#allocation8 + $0x1f8] sm:$0xff]
    %1515 = vmatprep.subr.mxu0 %v1512
    %1516 = vmatpush1.msra.mxu0 %v1511
    %1517 = vmatprep.subr.mxu0 %v1508
    %1518 = vmatpush1.msra.mxu0 %v1507
    %1519 = vmatprep.subr.mxu0 %v1504
    %1520 = vmatpush1.msra.mxu0 %v1503
    %1521 = vmatprep.subr.mxu0 %v1500
    %1522 = vmatpush1.msra.mxu0 %v1499
    %1523 = vmatprep.subr.mxu0 %v1496
    %1524 = vmatpush1.msra.mxu0 %v1495
    %1525 = vmatprep.subr.mxu0 %v1492
    %1526 = vmatpush1.msra.mxu0 %v1491
    %1527 = vmatprep.subr.mxu0 %v1488
    %1528 = vmatpush1.msra.mxu0 %v1487
    %1529 = vmatprep.subr.mxu0 %v1484
    %1530 = vmatpush1.msra.mxu0 %v1483
    %1531 = vmatprep.subr.mxu0 %v1480
    %1532 = vmatpush1.msra.mxu0 %v1479
    %1533 = vmatprep.subr.mxu0 %v1476
    %1534 = vmatpush1.msra.mxu0 %v1475
    %1535 = vmatprep.subr.mxu0 %v1472
    %1536 = vmatpush1.msra.mxu0 %v1471
    %1537 = vmatprep.subr.mxu0 %v1468
    %1538 = vmatpush1.msra.mxu0 %v1467
    %1539 = vmatprep.subr.mxu0 %v1464
    %1540 = vmatpush1.msra.mxu0 %v1463
    %1541 = vmatprep.subr.mxu0 %v1460
    %1542 = vmatpush1.msra.mxu0 %v1459
    %1543 = vmatprep.subr.mxu0 %v1456
    %1544 = vmatpush1.msra.mxu0 %v1455
    %1545 = vmatprep.subr.mxu0 %v1452
    %1546 = vmatpush1.msra.mxu0 %v1451
    %1547 = vmatprep.subr.mxu0 0.0
    %1548 = vmatpush2.msra.mxu0 0.0
    %1549 = vmatprep.subr.mxu0 0.0
    %1550 = vmatpush2.msra.mxu0 0.0
    %1551 = vmatprep.subr.mxu0 0.0
    %1552 = vmatpush2.msra.mxu0 0.0
    %1553 = vmatprep.subr.mxu0 0.0
    %1554 = vmatpush2.msra.mxu0 0.0
    %1555 = vmatprep.subr.mxu0 0.0
    %1556 = vmatpush2.msra.mxu0 0.0
    %1557 = vmatprep.subr.mxu0 0.0
    %1558 = vmatpush2.msra.mxu0 0.0
    %1559 = vmatprep.subr.mxu0 0.0
    %1560 = vmatpush2.msra.mxu0 0.0
    %1561 = vmatprep.subr.mxu0 0.0
    %1562 = vmatpush2.msra.mxu0 0.0
    %1563 = vmatprep.subr.mxu0 0.0
    %1564 = vmatpush2.msra.mxu0 0.0
    %1565 = vmatprep.subr.mxu0 0.0
    %1566 = vmatpush2.msra.mxu0 0.0
    %1567 = vmatprep.subr.mxu0 0.0
    %1568 = vmatpush2.msra.mxu0 0.0
    %1569 = vmatprep.subr.mxu0 0.0
    %1570 = vmatpush2.msra.mxu0 0.0
    %1571 = vmatprep.subr.mxu0 0.0
    %1572 = vmatpush2.msra.mxu0 0.0
    %1573 = vmatprep.subr.mxu0 0.0
    %1574 = vmatpush2.msra.mxu0 0.0
    %1575 = vmatprep.subr.mxu0 0.0
    %1576 = vmatpush2.msra.mxu0 0.0
    %1577 = vmatprep.subr.mxu0 0.0
    %1578 = vmatpush2.msra.mxu0 0.0
    %1579 = vmatprep.mubr.f32.mxu0 0.0
    %1580 = vmatmul.mubr.f32.gmra.mxu0 %v1443
    %v1581 = vpop.f32.mrf.mxu0
    %v1582 = vadd.f32 0.0, %v1581
    %v1583 = vpop.f32.mrf.mxu0
    %v1584 = vadd.f32 0.0, %v1583
    %1585 = vdwg.mxu0
    %1586 = vmatprep.subr.mxu0 %v1514
    %1587 = vmatpush1.msra.mxu0 %v1513
    %1588 = vmatprep.subr.mxu0 %v1510
    %1589 = vmatpush1.msra.mxu0 %v1509
    %1590 = vmatprep.subr.mxu0 %v1506
    %1591 = vmatpush1.msra.mxu0 %v1505
    %1592 = vmatprep.subr.mxu0 %v1502
    %1593 = vmatpush1.msra.mxu0 %v1501
    %1594 = vmatprep.subr.mxu0 %v1498
    %1595 = vmatpush1.msra.mxu0 %v1497
    %1596 = vmatprep.subr.mxu0 %v1494
    %1597 = vmatpush1.msra.mxu0 %v1493
    %1598 = vmatprep.subr.mxu0 %v1490
    %1599 = vmatpush1.msra.mxu0 %v1489
    %1600 = vmatprep.subr.mxu0 %v1486
    %1601 = vmatpush1.msra.mxu0 %v1485
    %1602 = vmatprep.subr.mxu0 %v1482
    %1603 = vmatpush1.msra.mxu0 %v1481
    %1604 = vmatprep.subr.mxu0 %v1478
    %1605 = vmatpush1.msra.mxu0 %v1477
    %1606 = vmatprep.subr.mxu0 %v1474
    %1607 = vmatpush1.msra.mxu0 %v1473
    %1608 = vmatprep.subr.mxu0 %v1470
    %1609 = vmatpush1.msra.mxu0 %v1469
    %1610 = vmatprep.subr.mxu0 %v1466
    %1611 = vmatpush1.msra.mxu0 %v1465
    %1612 = vmatprep.subr.mxu0 %v1462
    %1613 = vmatpush1.msra.mxu0 %v1461
    %1614 = vmatprep.subr.mxu0 %v1458
    %1615 = vmatpush1.msra.mxu0 %v1457
    %1616 = vmatprep.subr.mxu0 %v1454
    %1617 = vmatpush1.msra.mxu0 %v1453
    %1618 = vmatprep.subr.mxu0 0.0
    %1619 = vmatpush2.msra.mxu0 0.0
    %1620 = vmatprep.subr.mxu0 0.0
    %1621 = vmatpush2.msra.mxu0 0.0
    %1622 = vmatprep.subr.mxu0 0.0
    %1623 = vmatpush2.msra.mxu0 0.0
    %1624 = vmatprep.subr.mxu0 0.0
    %1625 = vmatpush2.msra.mxu0 0.0
    %1626 = vmatprep.subr.mxu0 0.0
    %1627 = vmatpush2.msra.mxu0 0.0
    %1628 = vmatprep.subr.mxu0 0.0
    %1629 = vmatpush2.msra.mxu0 0.0
    %1630 = vmatprep.subr.mxu0 0.0
    %1631 = vmatpush2.msra.mxu0 0.0
    %1632 = vmatprep.subr.mxu0 0.0
    %1633 = vmatpush2.msra.mxu0 0.0
    %1634 = vmatprep.subr.mxu0 0.0
    %1635 = vmatpush2.msra.mxu0 0.0
    %1636 = vmatprep.subr.mxu0 0.0
    %1637 = vmatpush2.msra.mxu0 0.0
    %1638 = vmatprep.subr.mxu0 0.0
    %1639 = vmatpush2.msra.mxu0 0.0
    %1640 = vmatprep.subr.mxu0 0.0
    %1641 = vmatpush2.msra.mxu0 0.0
    %1642 = vmatprep.subr.mxu0 0.0
    %1643 = vmatpush2.msra.mxu0 0.0
    %1644 = vmatprep.subr.mxu0 0.0
    %1645 = vmatpush2.msra.mxu0 0.0
    %1646 = vmatprep.subr.mxu0 0.0
    %1647 = vmatpush2.msra.mxu0 0.0
    %1648 = vmatprep.subr.mxu0 0.0
    %1649 = vmatpush2.msra.mxu0 0.0
    %1650 = vmatprep.mubr.f32.mxu0 0.0
    %1651 = vmatmul.mubr.f32.gmra.mxu0 %v1443
    %v1652 = vpop.f32.mrf.mxu0
    %v1653 = vadd.f32 0.0, %v1652
    %v1654 = vpop.f32.mrf.mxu0
    %v1655 = vadd.f32 0.0, %v1654
    %1656 = vdwg.mxu0
    %v1657 = vadd.f32 %v1447, %v1582
    %v1658 = vadd.f32 %v1448, %v1584
    %v1659 = vadd.f32 %v1449, %v1653
    %v1660 = vadd.f32 %v1450, %v1655
    %v1661 = vxor.u32 %v1657, 2147483648
    %v1662 = vmul.f32 %v1661, 1.442695
    %v1663 = vpow.pop %v1662
    %v1664 = vadd.f32 %v1663, 1.0
    %v1665 = vrcp.pop %v1664
    %v1666 = vmul.f32 1.0, %v1665
    %v1667 = vxor.u32 %v1658, 2147483648
    %v1668 = vmul.f32 %v1667, 1.442695
    %v1669 = vpow.pop %v1668
    %v1670 = vadd.f32 %v1669, 1.0
    %v1671 = vrcp.pop %v1670
    %v1672 = vmul.f32 1.0, %v1671
    %v1673 = vtanh.pop %v1659
    %v1674 = vxor.u32 %v1660, 2147483648
    %v1675 = vmul.f32 %v1674, 1.442695
    %v1676 = vpow.pop %v1675
    %v1677 = vadd.f32 %v1676, 1.0
    %v1678 = vrcp.pop %v1677
    %v1679 = vmul.f32 1.0, %v1678
    %v1680 = vmul.f32 %v1672, %v1441
    %v1681 = vmul.f32 %v1666, %v1673
    %v1682 = vadd.f32 %v1680, %v1681
    %v1683 = vtanh.pop %v1682
    %v1684 = vmul.f32 %v1679, %v1683
    %s1685 = scalar_lea.vmem [#allocation9], 32
    %1686 = vst [vmem:[%s1685] sm:$0xff] %v1684
    %s1687 = scalar_lea.vmem [#allocation2], 160
    %v1688 = vld [vmem:[%s1687] sm:$0xff]
    %v1689 = vld [vmem:[%s1687 + $0x8] sm:$0xff]
    %v1690 = vld [vmem:[%s1687 + $0x10] sm:$0xff]
    %v1691 = vld [vmem:[%s1687 + $0x18] sm:$0xff]
    %v1692 = vld [vmem:[#allocation8] sm:$0xff]
    %v1693 = vld [vmem:[#allocation8 + $0x8] sm:$0xff]
    %v1694 = vld [vmem:[#allocation8 + $0x10] sm:$0xff]
    %v1695 = vld [vmem:[#allocation8 + $0x18] sm:$0xff]
    %v1696 = vld [vmem:[#allocation8 + $0x20] sm:$0xff]
    %v1697 = vld [vmem:[#allocation8 + $0x28] sm:$0xff]
    %v1698 = vld [vmem:[#allocation8 + $0x30] sm:$0xff]
    %v1699 = vld [vmem:[#allocation8 + $0x38] sm:$0xff]
    %v1700 = vld [vmem:[#allocation8 + $0x40] sm:$0xff]
    %v1701 = vld [vmem:[#allocation8 + $0x48] sm:$0xff]
    %v1702 = vld [vmem:[#allocation8 + $0x50] sm:$0xff]
    %v1703 = vld [vmem:[#allocation8 + $0x58] sm:$0xff]
    %v1704 = vld [vmem:[#allocation8 + $0x60] sm:$0xff]
    %v1705 = vld [vmem:[#allocation8 + $0x68] sm:$0xff]
    %v1706 = vld [vmem:[#allocation8 + $0x70] sm:$0xff]
    %v1707 = vld [vmem:[#allocation8 + $0x78] sm:$0xff]
    %v1708 = vld [vmem:[#allocation8 + $0x80] sm:$0xff]
    %v1709 = vld [vmem:[#allocation8 + $0x88] sm:$0xff]
    %v1710 = vld [vmem:[#allocation8 + $0x90] sm:$0xff]
    %v1711 = vld [vmem:[#allocation8 + $0x98] sm:$0xff]
    %v1712 = vld [vmem:[#allocation8 + $0xa0] sm:$0xff]
    %v1713 = vld [vmem:[#allocation8 + $0xa8] sm:$0xff]
    %v1714 = vld [vmem:[#allocation8 + $0xb0] sm:$0xff]
    %v1715 = vld [vmem:[#allocation8 + $0xb8] sm:$0xff]
    %v1716 = vld [vmem:[#allocation8 + $0xc0] sm:$0xff]
    %v1717 = vld [vmem:[#allocation8 + $0xc8] sm:$0xff]
    %v1718 = vld [vmem:[#allocation8 + $0xd0] sm:$0xff]
    %v1719 = vld [vmem:[#allocation8 + $0xd8] sm:$0xff]
    %v1720 = vld [vmem:[#allocation8 + $0xe0] sm:$0xff]
    %v1721 = vld [vmem:[#allocation8 + $0xe8] sm:$0xff]
    %v1722 = vld [vmem:[#allocation8 + $0xf0] sm:$0xff]
    %v1723 = vld [vmem:[#allocation8 + $0xf8] sm:$0xff]
    %v1724 = vld [vmem:[#allocation8 + $0x100] sm:$0xff]
    %v1725 = vld [vmem:[#allocation8 + $0x108] sm:$0xff]
    %v1726 = vld [vmem:[#allocation8 + $0x110] sm:$0xff]
    %v1727 = vld [vmem:[#allocation8 + $0x118] sm:$0xff]
    %v1728 = vld [vmem:[#allocation8 + $0x120] sm:$0xff]
    %v1729 = vld [vmem:[#allocation8 + $0x128] sm:$0xff]
    %v1730 = vld [vmem:[#allocation8 + $0x130] sm:$0xff]
    %v1731 = vld [vmem:[#allocation8 + $0x138] sm:$0xff]
    %v1732 = vld [vmem:[#allocation8 + $0x140] sm:$0xff]
    %v1733 = vld [vmem:[#allocation8 + $0x148] sm:$0xff]
    %v1734 = vld [vmem:[#allocation8 + $0x150] sm:$0xff]
    %v1735 = vld [vmem:[#allocation8 + $0x158] sm:$0xff]
    %v1736 = vld [vmem:[#allocation8 + $0x160] sm:$0xff]
    %v1737 = vld [vmem:[#allocation8 + $0x168] sm:$0xff]
    %v1738 = vld [vmem:[#allocation8 + $0x170] sm:$0xff]
    %v1739 = vld [vmem:[#allocation8 + $0x178] sm:$0xff]
    %v1740 = vld [vmem:[#allocation8 + $0x180] sm:$0xff]
    %v1741 = vld [vmem:[#allocation8 + $0x188] sm:$0xff]
    %v1742 = vld [vmem:[#allocation8 + $0x190] sm:$0xff]
    %v1743 = vld [vmem:[#allocation8 + $0x198] sm:$0xff]
    %v1744 = vld [vmem:[#allocation8 + $0x1a0] sm:$0xff]
    %v1745 = vld [vmem:[#allocation8 + $0x1a8] sm:$0xff]
    %v1746 = vld [vmem:[#allocation8 + $0x1b0] sm:$0xff]
    %v1747 = vld [vmem:[#allocation8 + $0x1b8] sm:$0xff]
    %v1748 = vld [vmem:[#allocation8 + $0x1c0] sm:$0xff]
    %v1749 = vld [vmem:[#allocation8 + $0x1c8] sm:$0xff]
    %v1750 = vld [vmem:[#allocation8 + $0x1d0] sm:$0xff]
    %v1751 = vld [vmem:[#allocation8 + $0x1d8] sm:$0xff]
    %v1752 = vld [vmem:[#allocation8 + $0x1e0] sm:$0xff]
    %v1753 = vld [vmem:[#allocation8 + $0x1e8] sm:$0xff]
    %v1754 = vld [vmem:[#allocation8 + $0x1f0] sm:$0xff]
    %v1755 = vld [vmem:[#allocation8 + $0x1f8] sm:$0xff]
    %1756 = vmatprep.subr.mxu0 %v1753
    %1757 = vmatpush1.msra.mxu0 %v1752
    %1758 = vmatprep.subr.mxu0 %v1749
    %1759 = vmatpush1.msra.mxu0 %v1748
    %1760 = vmatprep.subr.mxu0 %v1745
    %1761 = vmatpush1.msra.mxu0 %v1744
    %1762 = vmatprep.subr.mxu0 %v1741
    %1763 = vmatpush1.msra.mxu0 %v1740
    %1764 = vmatprep.subr.mxu0 %v1737
    %1765 = vmatpush1.msra.mxu0 %v1736
    %1766 = vmatprep.subr.mxu0 %v1733
    %1767 = vmatpush1.msra.mxu0 %v1732
    %1768 = vmatprep.subr.mxu0 %v1729
    %1769 = vmatpush1.msra.mxu0 %v1728
    %1770 = vmatprep.subr.mxu0 %v1725
    %1771 = vmatpush1.msra.mxu0 %v1724
    %1772 = vmatprep.subr.mxu0 %v1721
    %1773 = vmatpush1.msra.mxu0 %v1720
    %1774 = vmatprep.subr.mxu0 %v1717
    %1775 = vmatpush1.msra.mxu0 %v1716
    %1776 = vmatprep.subr.mxu0 %v1713
    %1777 = vmatpush1.msra.mxu0 %v1712
    %1778 = vmatprep.subr.mxu0 %v1709
    %1779 = vmatpush1.msra.mxu0 %v1708
    %1780 = vmatprep.subr.mxu0 %v1705
    %1781 = vmatpush1.msra.mxu0 %v1704
    %1782 = vmatprep.subr.mxu0 %v1701
    %1783 = vmatpush1.msra.mxu0 %v1700
    %1784 = vmatprep.subr.mxu0 %v1697
    %1785 = vmatpush1.msra.mxu0 %v1696
    %1786 = vmatprep.subr.mxu0 %v1693
    %1787 = vmatpush1.msra.mxu0 %v1692
    %1788 = vmatprep.subr.mxu0 0.0
    %1789 = vmatpush2.msra.mxu0 0.0
    %1790 = vmatprep.subr.mxu0 0.0
    %1791 = vmatpush2.msra.mxu0 0.0
    %1792 = vmatprep.subr.mxu0 0.0
    %1793 = vmatpush2.msra.mxu0 0.0
    %1794 = vmatprep.subr.mxu0 0.0
    %1795 = vmatpush2.msra.mxu0 0.0
    %1796 = vmatprep.subr.mxu0 0.0
    %1797 = vmatpush2.msra.mxu0 0.0
    %1798 = vmatprep.subr.mxu0 0.0
    %1799 = vmatpush2.msra.mxu0 0.0
    %1800 = vmatprep.subr.mxu0 0.0
    %1801 = vmatpush2.msra.mxu0 0.0
    %1802 = vmatprep.subr.mxu0 0.0
    %1803 = vmatpush2.msra.mxu0 0.0
    %1804 = vmatprep.subr.mxu0 0.0
    %1805 = vmatpush2.msra.mxu0 0.0
    %1806 = vmatprep.subr.mxu0 0.0
    %1807 = vmatpush2.msra.mxu0 0.0
    %1808 = vmatprep.subr.mxu0 0.0
    %1809 = vmatpush2.msra.mxu0 0.0
    %1810 = vmatprep.subr.mxu0 0.0
    %1811 = vmatpush2.msra.mxu0 0.0
    %1812 = vmatprep.subr.mxu0 0.0
    %1813 = vmatpush2.msra.mxu0 0.0
    %1814 = vmatprep.subr.mxu0 0.0
    %1815 = vmatpush2.msra.mxu0 0.0
    %1816 = vmatprep.subr.mxu0 0.0
    %1817 = vmatpush2.msra.mxu0 0.0
    %1818 = vmatprep.subr.mxu0 0.0
    %1819 = vmatpush2.msra.mxu0 0.0
    %1820 = vmatprep.mubr.f32.mxu0 0.0
    %1821 = vmatmul.mubr.f32.gmra.mxu0 %v1684
    %v1822 = vpop.f32.mrf.mxu0
    %v1823 = vadd.f32 0.0, %v1822
    %v1824 = vpop.f32.mrf.mxu0
    %v1825 = vadd.f32 0.0, %v1824
    %1826 = vdwg.mxu0
    %1827 = vmatprep.subr.mxu0 %v1755
    %1828 = vmatpush1.msra.mxu0 %v1754
    %1829 = vmatprep.subr.mxu0 %v1751
    %1830 = vmatpush1.msra.mxu0 %v1750
    %1831 = vmatprep.subr.mxu0 %v1747
    %1832 = vmatpush1.msra.mxu0 %v1746
    %1833 = vmatprep.subr.mxu0 %v1743
    %1834 = vmatpush1.msra.mxu0 %v1742
    %1835 = vmatprep.subr.mxu0 %v1739
    %1836 = vmatpush1.msra.mxu0 %v1738
    %1837 = vmatprep.subr.mxu0 %v1735
    %1838 = vmatpush1.msra.mxu0 %v1734
    %1839 = vmatprep.subr.mxu0 %v1731
    %1840 = vmatpush1.msra.mxu0 %v1730
    %1841 = vmatprep.subr.mxu0 %v1727
    %1842 = vmatpush1.msra.mxu0 %v1726
    %1843 = vmatprep.subr.mxu0 %v1723
    %1844 = vmatpush1.msra.mxu0 %v1722
    %1845 = vmatprep.subr.mxu0 %v1719
    %1846 = vmatpush1.msra.mxu0 %v1718
    %1847 = vmatprep.subr.mxu0 %v1715
    %1848 = vmatpush1.msra.mxu0 %v1714
    %1849 = vmatprep.subr.mxu0 %v1711
    %1850 = vmatpush1.msra.mxu0 %v1710
    %1851 = vmatprep.subr.mxu0 %v1707
    %1852 = vmatpush1.msra.mxu0 %v1706
    %1853 = vmatprep.subr.mxu0 %v1703
    %1854 = vmatpush1.msra.mxu0 %v1702
    %1855 = vmatprep.subr.mxu0 %v1699
    %1856 = vmatpush1.msra.mxu0 %v1698
    %1857 = vmatprep.subr.mxu0 %v1695
    %1858 = vmatpush1.msra.mxu0 %v1694
    %1859 = vmatprep.subr.mxu0 0.0
    %1860 = vmatpush2.msra.mxu0 0.0
    %1861 = vmatprep.subr.mxu0 0.0
    %1862 = vmatpush2.msra.mxu0 0.0
    %1863 = vmatprep.subr.mxu0 0.0
    %1864 = vmatpush2.msra.mxu0 0.0
    %1865 = vmatprep.subr.mxu0 0.0
    %1866 = vmatpush2.msra.mxu0 0.0
    %1867 = vmatprep.subr.mxu0 0.0
    %1868 = vmatpush2.msra.mxu0 0.0
    %1869 = vmatprep.subr.mxu0 0.0
    %1870 = vmatpush2.msra.mxu0 0.0
    %1871 = vmatprep.subr.mxu0 0.0
    %1872 = vmatpush2.msra.mxu0 0.0
    %1873 = vmatprep.subr.mxu0 0.0
    %1874 = vmatpush2.msra.mxu0 0.0
    %1875 = vmatprep.subr.mxu0 0.0
    %1876 = vmatpush2.msra.mxu0 0.0
    %1877 = vmatprep.subr.mxu0 0.0
    %1878 = vmatpush2.msra.mxu0 0.0
    %1879 = vmatprep.subr.mxu0 0.0
    %1880 = vmatpush2.msra.mxu0 0.0
    %1881 = vmatprep.subr.mxu0 0.0
    %1882 = vmatpush2.msra.mxu0 0.0
    %1883 = vmatprep.subr.mxu0 0.0
    %1884 = vmatpush2.msra.mxu0 0.0
    %1885 = vmatprep.subr.mxu0 0.0
    %1886 = vmatpush2.msra.mxu0 0.0
    %1887 = vmatprep.subr.mxu0 0.0
    %1888 = vmatpush2.msra.mxu0 0.0
    %1889 = vmatprep.subr.mxu0 0.0
    %1890 = vmatpush2.msra.mxu0 0.0
    %1891 = vmatprep.mubr.f32.mxu0 0.0
    %1892 = vmatmul.mubr.f32.gmra.mxu0 %v1684
    %v1893 = vpop.f32.mrf.mxu0
    %v1894 = vadd.f32 0.0, %v1893
    %v1895 = vpop.f32.mrf.mxu0
    %v1896 = vadd.f32 0.0, %v1895
    %1897 = vdwg.mxu0
    %v1898 = vadd.f32 %v1688, %v1823
    %v1899 = vadd.f32 %v1689, %v1825
    %v1900 = vadd.f32 %v1690, %v1894
    %v1901 = vadd.f32 %v1691, %v1896
    %v1902 = vxor.u32 %v1898, 2147483648
    %v1903 = vmul.f32 %v1902, 1.442695
    %v1904 = vpow.pop %v1903
    %v1905 = vadd.f32 %v1904, 1.0
    %v1906 = vrcp.pop %v1905
    %v1907 = vmul.f32 1.0, %v1906
    %v1908 = vxor.u32 %v1899, 2147483648
    %v1909 = vmul.f32 %v1908, 1.442695
    %v1910 = vpow.pop %v1909
    %v1911 = vadd.f32 %v1910, 1.0
    %v1912 = vrcp.pop %v1911
    %v1913 = vmul.f32 1.0, %v1912
    %v1914 = vtanh.pop %v1900
    %v1915 = vxor.u32 %v1901, 2147483648
    %v1916 = vmul.f32 %v1915, 1.442695
    %v1917 = vpow.pop %v1916
    %v1918 = vadd.f32 %v1917, 1.0
    %v1919 = vrcp.pop %v1918
    %v1920 = vmul.f32 1.0, %v1919
    %v1921 = vmul.f32 %v1913, %v1682
    %v1922 = vmul.f32 %v1907, %v1914
    %v1923 = vadd.f32 %v1921, %v1922
    %v1924 = vtanh.pop %v1923
    %v1925 = vmul.f32 %v1920, %v1924
    %s1926 = scalar_lea.vmem [#allocation9], 40
    %1927 = vst [vmem:[%s1926] sm:$0xff] %v1925
    %s1928 = scalar_lea.vmem [#allocation2], 192
    %v1929 = vld [vmem:[%s1928] sm:$0xff]
    %v1930 = vld [vmem:[%s1928 + $0x8] sm:$0xff]
    %v1931 = vld [vmem:[%s1928 + $0x10] sm:$0xff]
    %v1932 = vld [vmem:[%s1928 + $0x18] sm:$0xff]
    %v1933 = vld [vmem:[#allocation8] sm:$0xff]
    %v1934 = vld [vmem:[#allocation8 + $0x8] sm:$0xff]
    %v1935 = vld [vmem:[#allocation8 + $0x10] sm:$0xff]
    %v1936 = vld [vmem:[#allocation8 + $0x18] sm:$0xff]
    %v1937 = vld [vmem:[#allocation8 + $0x20] sm:$0xff]
    %v1938 = vld [vmem:[#allocation8 + $0x28] sm:$0xff]
    %v1939 = vld [vmem:[#allocation8 + $0x30] sm:$0xff]
    %v1940 = vld [vmem:[#allocation8 + $0x38] sm:$0xff]
    %v1941 = vld [vmem:[#allocation8 + $0x40] sm:$0xff]
    %v1942 = vld [vmem:[#allocation8 + $0x48] sm:$0xff]
    %v1943 = vld [vmem:[#allocation8 + $0x50] sm:$0xff]
    %v1944 = vld [vmem:[#allocation8 + $0x58] sm:$0xff]
    %v1945 = vld [vmem:[#allocation8 + $0x60] sm:$0xff]
    %v1946 = vld [vmem:[#allocation8 + $0x68] sm:$0xff]
    %v1947 = vld [vmem:[#allocation8 + $0x70] sm:$0xff]
    %v1948 = vld [vmem:[#allocation8 + $0x78] sm:$0xff]
    %v1949 = vld [vmem:[#allocation8 + $0x80] sm:$0xff]
    %v1950 = vld [vmem:[#allocation8 + $0x88] sm:$0xff]
    %v1951 = vld [vmem:[#allocation8 + $0x90] sm:$0xff]
    %v1952 = vld [vmem:[#allocation8 + $0x98] sm:$0xff]
    %v1953 = vld [vmem:[#allocation8 + $0xa0] sm:$0xff]
    %v1954 = vld [vmem:[#allocation8 + $0xa8] sm:$0xff]
    %v1955 = vld [vmem:[#allocation8 + $0xb0] sm:$0xff]
    %v1956 = vld [vmem:[#allocation8 + $0xb8] sm:$0xff]
    %v1957 = vld [vmem:[#allocation8 + $0xc0] sm:$0xff]
    %v1958 = vld [vmem:[#allocation8 + $0xc8] sm:$0xff]
    %v1959 = vld [vmem:[#allocation8 + $0xd0] sm:$0xff]
    %v1960 = vld [vmem:[#allocation8 + $0xd8] sm:$0xff]
    %v1961 = vld [vmem:[#allocation8 + $0xe0] sm:$0xff]
    %v1962 = vld [vmem:[#allocation8 + $0xe8] sm:$0xff]
    %v1963 = vld [vmem:[#allocation8 + $0xf0] sm:$0xff]
    %v1964 = vld [vmem:[#allocation8 + $0xf8] sm:$0xff]
    %v1965 = vld [vmem:[#allocation8 + $0x100] sm:$0xff]
    %v1966 = vld [vmem:[#allocation8 + $0x108] sm:$0xff]
    %v1967 = vld [vmem:[#allocation8 + $0x110] sm:$0xff]
    %v1968 = vld [vmem:[#allocation8 + $0x118] sm:$0xff]
    %v1969 = vld [vmem:[#allocation8 + $0x120] sm:$0xff]
    %v1970 = vld [vmem:[#allocation8 + $0x128] sm:$0xff]
    %v1971 = vld [vmem:[#allocation8 + $0x130] sm:$0xff]
    %v1972 = vld [vmem:[#allocation8 + $0x138] sm:$0xff]
    %v1973 = vld [vmem:[#allocation8 + $0x140] sm:$0xff]
    %v1974 = vld [vmem:[#allocation8 + $0x148] sm:$0xff]
    %v1975 = vld [vmem:[#allocation8 + $0x150] sm:$0xff]
    %v1976 = vld [vmem:[#allocation8 + $0x158] sm:$0xff]
    %v1977 = vld [vmem:[#allocation8 + $0x160] sm:$0xff]
    %v1978 = vld [vmem:[#allocation8 + $0x168] sm:$0xff]
    %v1979 = vld [vmem:[#allocation8 + $0x170] sm:$0xff]
    %v1980 = vld [vmem:[#allocation8 + $0x178] sm:$0xff]
    %v1981 = vld [vmem:[#allocation8 + $0x180] sm:$0xff]
    %v1982 = vld [vmem:[#allocation8 + $0x188] sm:$0xff]
    %v1983 = vld [vmem:[#allocation8 + $0x190] sm:$0xff]
    %v1984 = vld [vmem:[#allocation8 + $0x198] sm:$0xff]
    %v1985 = vld [vmem:[#allocation8 + $0x1a0] sm:$0xff]
    %v1986 = vld [vmem:[#allocation8 + $0x1a8] sm:$0xff]
    %v1987 = vld [vmem:[#allocation8 + $0x1b0] sm:$0xff]
    %v1988 = vld [vmem:[#allocation8 + $0x1b8] sm:$0xff]
    %v1989 = vld [vmem:[#allocation8 + $0x1c0] sm:$0xff]
    %v1990 = vld [vmem:[#allocation8 + $0x1c8] sm:$0xff]
    %v1991 = vld [vmem:[#allocation8 + $0x1d0] sm:$0xff]
    %v1992 = vld [vmem:[#allocation8 + $0x1d8] sm:$0xff]
    %v1993 = vld [vmem:[#allocation8 + $0x1e0] sm:$0xff]
    %v1994 = vld [vmem:[#allocation8 + $0x1e8] sm:$0xff]
    %v1995 = vld [vmem:[#allocation8 + $0x1f0] sm:$0xff]
    %v1996 = vld [vmem:[#allocation8 + $0x1f8] sm:$0xff]
    %1997 = vmatprep.subr.mxu0 %v1994
    %1998 = vmatpush1.msra.mxu0 %v1993
    %1999 = vmatprep.subr.mxu0 %v1990
    %2000 = vmatpush1.msra.mxu0 %v1989
    %2001 = vmatprep.subr.mxu0 %v1986
    %2002 = vmatpush1.msra.mxu0 %v1985
    %2003 = vmatprep.subr.mxu0 %v1982
    %2004 = vmatpush1.msra.mxu0 %v1981
    %2005 = vmatprep.subr.mxu0 %v1978
    %2006 = vmatpush1.msra.mxu0 %v1977
    %2007 = vmatprep.subr.mxu0 %v1974
    %2008 = vmatpush1.msra.mxu0 %v1973
    %2009 = vmatprep.subr.mxu0 %v1970
    %2010 = vmatpush1.msra.mxu0 %v1969
    %2011 = vmatprep.subr.mxu0 %v1966
    %2012 = vmatpush1.msra.mxu0 %v1965
    %2013 = vmatprep.subr.mxu0 %v1962
    %2014 = vmatpush1.msra.mxu0 %v1961
    %2015 = vmatprep.subr.mxu0 %v1958
    %2016 = vmatpush1.msra.mxu0 %v1957
    %2017 = vmatprep.subr.mxu0 %v1954
    %2018 = vmatpush1.msra.mxu0 %v1953
    %2019 = vmatprep.subr.mxu0 %v1950
    %2020 = vmatpush1.msra.mxu0 %v1949
    %2021 = vmatprep.subr.mxu0 %v1946
    %2022 = vmatpush1.msra.mxu0 %v1945
    %2023 = vmatprep.subr.mxu0 %v1942
    %2024 = vmatpush1.msra.mxu0 %v1941
    %2025 = vmatprep.subr.mxu0 %v1938
    %2026 = vmatpush1.msra.mxu0 %v1937
    %2027 = vmatprep.subr.mxu0 %v1934
    %2028 = vmatpush1.msra.mxu0 %v1933
    %2029 = vmatprep.subr.mxu0 0.0
    %2030 = vmatpush2.msra.mxu0 0.0
    %2031 = vmatprep.subr.mxu0 0.0
    %2032 = vmatpush2.msra.mxu0 0.0
    %2033 = vmatprep.subr.mxu0 0.0
    %2034 = vmatpush2.msra.mxu0 0.0
    %2035 = vmatprep.subr.mxu0 0.0
    %2036 = vmatpush2.msra.mxu0 0.0
    %2037 = vmatprep.subr.mxu0 0.0
    %2038 = vmatpush2.msra.mxu0 0.0
    %2039 = vmatprep.subr.mxu0 0.0
    %2040 = vmatpush2.msra.mxu0 0.0
    %2041 = vmatprep.subr.mxu0 0.0
    %2042 = vmatpush2.msra.mxu0 0.0
    %2043 = vmatprep.subr.mxu0 0.0
    %2044 = vmatpush2.msra.mxu0 0.0
    %2045 = vmatprep.subr.mxu0 0.0
    %2046 = vmatpush2.msra.mxu0 0.0
    %2047 = vmatprep.subr.mxu0 0.0
    %2048 = vmatpush2.msra.mxu0 0.0
    %2049 = vmatprep.subr.mxu0 0.0
    %2050 = vmatpush2.msra.mxu0 0.0
    %2051 = vmatprep.subr.mxu0 0.0
    %2052 = vmatpush2.msra.mxu0 0.0
    %2053 = vmatprep.subr.mxu0 0.0
    %2054 = vmatpush2.msra.mxu0 0.0
    %2055 = vmatprep.subr.mxu0 0.0
    %2056 = vmatpush2.msra.mxu0 0.0
    %2057 = vmatprep.subr.mxu0 0.0
    %2058 = vmatpush2.msra.mxu0 0.0
    %2059 = vmatprep.subr.mxu0 0.0
    %2060 = vmatpush2.msra.mxu0 0.0
    %2061 = vmatprep.mubr.f32.mxu0 0.0
    %2062 = vmatmul.mubr.f32.gmra.mxu0 %v1925
    %v2063 = vpop.f32.mrf.mxu0
    %v2064 = vadd.f32 0.0, %v2063
    %v2065 = vpop.f32.mrf.mxu0
    %v2066 = vadd.f32 0.0, %v2065
    %2067 = vdwg.mxu0
    %2068 = vmatprep.subr.mxu0 %v1996
    %2069 = vmatpush1.msra.mxu0 %v1995
    %2070 = vmatprep.subr.mxu0 %v1992
    %2071 = vmatpush1.msra.mxu0 %v1991
    %2072 = vmatprep.subr.mxu0 %v1988
    %2073 = vmatpush1.msra.mxu0 %v1987
    %2074 = vmatprep.subr.mxu0 %v1984
    %2075 = vmatpush1.msra.mxu0 %v1983
    %2076 = vmatprep.subr.mxu0 %v1980
    %2077 = vmatpush1.msra.mxu0 %v1979
    %2078 = vmatprep.subr.mxu0 %v1976
    %2079 = vmatpush1.msra.mxu0 %v1975
    %2080 = vmatprep.subr.mxu0 %v1972
    %2081 = vmatpush1.msra.mxu0 %v1971
    %2082 = vmatprep.subr.mxu0 %v1968
    %2083 = vmatpush1.msra.mxu0 %v1967
    %2084 = vmatprep.subr.mxu0 %v1964
    %2085 = vmatpush1.msra.mxu0 %v1963
    %2086 = vmatprep.subr.mxu0 %v1960
    %2087 = vmatpush1.msra.mxu0 %v1959
    %2088 = vmatprep.subr.mxu0 %v1956
    %2089 = vmatpush1.msra.mxu0 %v1955
    %2090 = vmatprep.subr.mxu0 %v1952
    %2091 = vmatpush1.msra.mxu0 %v1951
    %2092 = vmatprep.subr.mxu0 %v1948
    %2093 = vmatpush1.msra.mxu0 %v1947
    %2094 = vmatprep.subr.mxu0 %v1944
    %2095 = vmatpush1.msra.mxu0 %v1943
    %2096 = vmatprep.subr.mxu0 %v1940
    %2097 = vmatpush1.msra.mxu0 %v1939
    %2098 = vmatprep.subr.mxu0 %v1936
    %2099 = vmatpush1.msra.mxu0 %v1935
    %2100 = vmatprep.subr.mxu0 0.0
    %2101 = vmatpush2.msra.mxu0 0.0
    %2102 = vmatprep.subr.mxu0 0.0
    %2103 = vmatpush2.msra.mxu0 0.0
    %2104 = vmatprep.subr.mxu0 0.0
    %2105 = vmatpush2.msra.mxu0 0.0
    %2106 = vmatprep.subr.mxu0 0.0
    %2107 = vmatpush2.msra.mxu0 0.0
    %2108 = vmatprep.subr.mxu0 0.0
    %2109 = vmatpush2.msra.mxu0 0.0
    %2110 = vmatprep.subr.mxu0 0.0
    %2111 = vmatpush2.msra.mxu0 0.0
    %2112 = vmatprep.subr.mxu0 0.0
    %2113 = vmatpush2.msra.mxu0 0.0
    %2114 = vmatprep.subr.mxu0 0.0
    %2115 = vmatpush2.msra.mxu0 0.0
    %2116 = vmatprep.subr.mxu0 0.0
    %2117 = vmatpush2.msra.mxu0 0.0
    %2118 = vmatprep.subr.mxu0 0.0
    %2119 = vmatpush2.msra.mxu0 0.0
    %2120 = vmatprep.subr.mxu0 0.0
    %2121 = vmatpush2.msra.mxu0 0.0
    %2122 = vmatprep.subr.mxu0 0.0
    %2123 = vmatpush2.msra.mxu0 0.0
    %2124 = vmatprep.subr.mxu0 0.0
    %2125 = vmatpush2.msra.mxu0 0.0
    %2126 = vmatprep.subr.mxu0 0.0
    %2127 = vmatpush2.msra.mxu0 0.0
    %2128 = vmatprep.subr.mxu0 0.0
    %2129 = vmatpush2.msra.mxu0 0.0
    %2130 = vmatprep.subr.mxu0 0.0
    %2131 = vmatpush2.msra.mxu0 0.0
    %2132 = vmatprep.mubr.f32.mxu0 0.0
    %2133 = vmatmul.mubr.f32.gmra.mxu0 %v1925
    %v2134 = vpop.f32.mrf.mxu0
    %v2135 = vadd.f32 0.0, %v2134
    %v2136 = vpop.f32.mrf.mxu0
    %v2137 = vadd.f32 0.0, %v2136
    %2138 = vdwg.mxu0
    %v2139 = vadd.f32 %v1929, %v2064
    %v2140 = vadd.f32 %v1930, %v2066
    %v2141 = vadd.f32 %v1931, %v2135
    %v2142 = vadd.f32 %v1932, %v2137
    %v2143 = vxor.u32 %v2139, 2147483648
    %v2144 = vmul.f32 %v2143, 1.442695
    %v2145 = vpow.pop %v2144
    %v2146 = vadd.f32 %v2145, 1.0
    %v2147 = vrcp.pop %v2146
    %v2148 = vmul.f32 1.0, %v2147
    %v2149 = vxor.u32 %v2140, 2147483648
    %v2150 = vmul.f32 %v2149, 1.442695
    %v2151 = vpow.pop %v2150
    %v2152 = vadd.f32 %v2151, 1.0
    %v2153 = vrcp.pop %v2152
    %v2154 = vmul.f32 1.0, %v2153
    %v2155 = vtanh.pop %v2141
    %v2156 = vxor.u32 %v2142, 2147483648
    %v2157 = vmul.f32 %v2156, 1.442695
    %v2158 = vpow.pop %v2157
    %v2159 = vadd.f32 %v2158, 1.0
    %v2160 = vrcp.pop %v2159
    %v2161 = vmul.f32 1.0, %v2160
    %v2162 = vmul.f32 %v2154, %v1923
    %v2163 = vmul.f32 %v2148, %v2155
    %v2164 = vadd.f32 %v2162, %v2163
    %v2165 = vtanh.pop %v2164
    %v2166 = vmul.f32 %v2161, %v2165
    %s2167 = scalar_lea.vmem [#allocation9], 48
    %2168 = vst [vmem:[%s2167] sm:$0xff] %v2166
    %s2169 = scalar_lea.vmem [#allocation2], 224
    %v2170 = vld [vmem:[%s2169] sm:$0xff]
    %v2171 = vld [vmem:[%s2169 + $0x8] sm:$0xff]
    %v2172 = vld [vmem:[%s2169 + $0x10] sm:$0xff]
    %v2173 = vld [vmem:[%s2169 + $0x18] sm:$0xff]
    %v2174 = vld [vmem:[#allocation8] sm:$0xff]
    %v2175 = vld [vmem:[#allocation8 + $0x8] sm:$0xff]
    %v2176 = vld [vmem:[#allocation8 + $0x10] sm:$0xff]
    %v2177 = vld [vmem:[#allocation8 + $0x18] sm:$0xff]
    %v2178 = vld [vmem:[#allocation8 + $0x20] sm:$0xff]
    %v2179 = vld [vmem:[#allocation8 + $0x28] sm:$0xff]
    %v2180 = vld [vmem:[#allocation8 + $0x30] sm:$0xff]
    %v2181 = vld [vmem:[#allocation8 + $0x38] sm:$0xff]
    %v2182 = vld [vmem:[#allocation8 + $0x40] sm:$0xff]
    %v2183 = vld [vmem:[#allocation8 + $0x48] sm:$0xff]
    %v2184 = vld [vmem:[#allocation8 + $0x50] sm:$0xff]
    %v2185 = vld [vmem:[#allocation8 + $0x58] sm:$0xff]
    %v2186 = vld [vmem:[#allocation8 + $0x60] sm:$0xff]
    %v2187 = vld [vmem:[#allocation8 + $0x68] sm:$0xff]
    %v2188 = vld [vmem:[#allocation8 + $0x70] sm:$0xff]
    %v2189 = vld [vmem:[#allocation8 + $0x78] sm:$0xff]
    %v2190 = vld [vmem:[#allocation8 + $0x80] sm:$0xff]
    %v2191 = vld [vmem:[#allocation8 + $0x88] sm:$0xff]
    %v2192 = vld [vmem:[#allocation8 + $0x90] sm:$0xff]
    %v2193 = vld [vmem:[#allocation8 + $0x98] sm:$0xff]
    %v2194 = vld [vmem:[#allocation8 + $0xa0] sm:$0xff]
    %v2195 = vld [vmem:[#allocation8 + $0xa8] sm:$0xff]
    %v2196 = vld [vmem:[#allocation8 + $0xb0] sm:$0xff]
    %v2197 = vld [vmem:[#allocation8 + $0xb8] sm:$0xff]
    %v2198 = vld [vmem:[#allocation8 + $0xc0] sm:$0xff]
    %v2199 = vld [vmem:[#allocation8 + $0xc8] sm:$0xff]
    %v2200 = vld [vmem:[#allocation8 + $0xd0] sm:$0xff]
    %v2201 = vld [vmem:[#allocation8 + $0xd8] sm:$0xff]
    %v2202 = vld [vmem:[#allocation8 + $0xe0] sm:$0xff]
    %v2203 = vld [vmem:[#allocation8 + $0xe8] sm:$0xff]
    %v2204 = vld [vmem:[#allocation8 + $0xf0] sm:$0xff]
    %v2205 = vld [vmem:[#allocation8 + $0xf8] sm:$0xff]
    %v2206 = vld [vmem:[#allocation8 + $0x100] sm:$0xff]
    %v2207 = vld [vmem:[#allocation8 + $0x108] sm:$0xff]
    %v2208 = vld [vmem:[#allocation8 + $0x110] sm:$0xff]
    %v2209 = vld [vmem:[#allocation8 + $0x118] sm:$0xff]
    %v2210 = vld [vmem:[#allocation8 + $0x120] sm:$0xff]
    %v2211 = vld [vmem:[#allocation8 + $0x128] sm:$0xff]
    %v2212 = vld [vmem:[#allocation8 + $0x130] sm:$0xff]
    %v2213 = vld [vmem:[#allocation8 + $0x138] sm:$0xff]
    %v2214 = vld [vmem:[#allocation8 + $0x140] sm:$0xff]
    %v2215 = vld [vmem:[#allocation8 + $0x148] sm:$0xff]
    %v2216 = vld [vmem:[#allocation8 + $0x150] sm:$0xff]
    %v2217 = vld [vmem:[#allocation8 + $0x158] sm:$0xff]
    %v2218 = vld [vmem:[#allocation8 + $0x160] sm:$0xff]
    %v2219 = vld [vmem:[#allocation8 + $0x168] sm:$0xff]
    %v2220 = vld [vmem:[#allocation8 + $0x170] sm:$0xff]
    %v2221 = vld [vmem:[#allocation8 + $0x178] sm:$0xff]
    %v2222 = vld [vmem:[#allocation8 + $0x180] sm:$0xff]
    %v2223 = vld [vmem:[#allocation8 + $0x188] sm:$0xff]
    %v2224 = vld [vmem:[#allocation8 + $0x190] sm:$0xff]
    %v2225 = vld [vmem:[#allocation8 + $0x198] sm:$0xff]
    %v2226 = vld [vmem:[#allocation8 + $0x1a0] sm:$0xff]
    %v2227 = vld [vmem:[#allocation8 + $0x1a8] sm:$0xff]
    %v2228 = vld [vmem:[#allocation8 + $0x1b0] sm:$0xff]
    %v2229 = vld [vmem:[#allocation8 + $0x1b8] sm:$0xff]
    %v2230 = vld [vmem:[#allocation8 + $0x1c0] sm:$0xff]
    %v2231 = vld [vmem:[#allocation8 + $0x1c8] sm:$0xff]
    %v2232 = vld [vmem:[#allocation8 + $0x1d0] sm:$0xff]
    %v2233 = vld [vmem:[#allocation8 + $0x1d8] sm:$0xff]
    %v2234 = vld [vmem:[#allocation8 + $0x1e0] sm:$0xff]
    %v2235 = vld [vmem:[#allocation8 + $0x1e8] sm:$0xff]
    %v2236 = vld [vmem:[#allocation8 + $0x1f0] sm:$0xff]
    %v2237 = vld [vmem:[#allocation8 + $0x1f8] sm:$0xff]
    %2238 = vmatprep.subr.mxu0 %v2235
    %2239 = vmatpush1.msra.mxu0 %v2234
    %2240 = vmatprep.subr.mxu0 %v2231
    %2241 = vmatpush1.msra.mxu0 %v2230
    %2242 = vmatprep.subr.mxu0 %v2227
    %2243 = vmatpush1.msra.mxu0 %v2226
    %2244 = vmatprep.subr.mxu0 %v2223
    %2245 = vmatpush1.msra.mxu0 %v2222
    %2246 = vmatprep.subr.mxu0 %v2219
    %2247 = vmatpush1.msra.mxu0 %v2218
    %2248 = vmatprep.subr.mxu0 %v2215
    %2249 = vmatpush1.msra.mxu0 %v2214
    %2250 = vmatprep.subr.mxu0 %v2211
    %2251 = vmatpush1.msra.mxu0 %v2210
    %2252 = vmatprep.subr.mxu0 %v2207
    %2253 = vmatpush1.msra.mxu0 %v2206
    %2254 = vmatprep.subr.mxu0 %v2203
    %2255 = vmatpush1.msra.mxu0 %v2202
    %2256 = vmatprep.subr.mxu0 %v2199
    %2257 = vmatpush1.msra.mxu0 %v2198
    %2258 = vmatprep.subr.mxu0 %v2195
    %2259 = vmatpush1.msra.mxu0 %v2194
    %2260 = vmatprep.subr.mxu0 %v2191
    %2261 = vmatpush1.msra.mxu0 %v2190
    %2262 = vmatprep.subr.mxu0 %v2187
    %2263 = vmatpush1.msra.mxu0 %v2186
    %2264 = vmatprep.subr.mxu0 %v2183
    %2265 = vmatpush1.msra.mxu0 %v2182
    %2266 = vmatprep.subr.mxu0 %v2179
    %2267 = vmatpush1.msra.mxu0 %v2178
    %2268 = vmatprep.subr.mxu0 %v2175
    %2269 = vmatpush1.msra.mxu0 %v2174
    %2270 = vmatprep.subr.mxu0 0.0
    %2271 = vmatpush2.msra.mxu0 0.0
    %2272 = vmatprep.subr.mxu0 0.0
    %2273 = vmatpush2.msra.mxu0 0.0
    %2274 = vmatprep.subr.mxu0 0.0
    %2275 = vmatpush2.msra.mxu0 0.0
    %2276 = vmatprep.subr.mxu0 0.0
    %2277 = vmatpush2.msra.mxu0 0.0
    %2278 = vmatprep.subr.mxu0 0.0
    %2279 = vmatpush2.msra.mxu0 0.0
    %2280 = vmatprep.subr.mxu0 0.0
    %2281 = vmatpush2.msra.mxu0 0.0
    %2282 = vmatprep.subr.mxu0 0.0
    %2283 = vmatpush2.msra.mxu0 0.0
    %2284 = vmatprep.subr.mxu0 0.0
    %2285 = vmatpush2.msra.mxu0 0.0
    %2286 = vmatprep.subr.mxu0 0.0
    %2287 = vmatpush2.msra.mxu0 0.0
    %2288 = vmatprep.subr.mxu0 0.0
    %2289 = vmatpush2.msra.mxu0 0.0
    %2290 = vmatprep.subr.mxu0 0.0
    %2291 = vmatpush2.msra.mxu0 0.0
    %2292 = vmatprep.subr.mxu0 0.0
    %2293 = vmatpush2.msra.mxu0 0.0
    %2294 = vmatprep.subr.mxu0 0.0
    %2295 = vmatpush2.msra.mxu0 0.0
    %2296 = vmatprep.subr.mxu0 0.0
    %2297 = vmatpush2.msra.mxu0 0.0
    %2298 = vmatprep.subr.mxu0 0.0
    %2299 = vmatpush2.msra.mxu0 0.0
    %2300 = vmatprep.subr.mxu0 0.0
    %2301 = vmatpush2.msra.mxu0 0.0
    %2302 = vmatprep.mubr.f32.mxu0 0.0
    %2303 = vmatmul.mubr.f32.gmra.mxu0 %v2166
    %v2304 = vpop.f32.mrf.mxu0
    %v2305 = vadd.f32 0.0, %v2304
    %v2306 = vpop.f32.mrf.mxu0
    %v2307 = vadd.f32 0.0, %v2306
    %2308 = vdwg.mxu0
    %2309 = vmatprep.subr.mxu0 %v2237
    %2310 = vmatpush1.msra.mxu0 %v2236
    %2311 = vmatprep.subr.mxu0 %v2233
    %2312 = vmatpush1.msra.mxu0 %v2232
    %2313 = vmatprep.subr.mxu0 %v2229
    %2314 = vmatpush1.msra.mxu0 %v2228
    %2315 = vmatprep.subr.mxu0 %v2225
    %2316 = vmatpush1.msra.mxu0 %v2224
    %2317 = vmatprep.subr.mxu0 %v2221
    %2318 = vmatpush1.msra.mxu0 %v2220
    %2319 = vmatprep.subr.mxu0 %v2217
    %2320 = vmatpush1.msra.mxu0 %v2216
    %2321 = vmatprep.subr.mxu0 %v2213
    %2322 = vmatpush1.msra.mxu0 %v2212
    %2323 = vmatprep.subr.mxu0 %v2209
    %2324 = vmatpush1.msra.mxu0 %v2208
    %2325 = vmatprep.subr.mxu0 %v2205
    %2326 = vmatpush1.msra.mxu0 %v2204
    %2327 = vmatprep.subr.mxu0 %v2201
    %2328 = vmatpush1.msra.mxu0 %v2200
    %2329 = vmatprep.subr.mxu0 %v2197
    %2330 = vmatpush1.msra.mxu0 %v2196
    %2331 = vmatprep.subr.mxu0 %v2193
    %2332 = vmatpush1.msra.mxu0 %v2192
    %2333 = vmatprep.subr.mxu0 %v2189
    %2334 = vmatpush1.msra.mxu0 %v2188
    %2335 = vmatprep.subr.mxu0 %v2185
    %2336 = vmatpush1.msra.mxu0 %v2184
    %2337 = vmatprep.subr.mxu0 %v2181
    %2338 = vmatpush1.msra.mxu0 %v2180
    %2339 = vmatprep.subr.mxu0 %v2177
    %2340 = vmatpush1.msra.mxu0 %v2176
    %2341 = vmatprep.subr.mxu0 0.0
    %2342 = vmatpush2.msra.mxu0 0.0
    %2343 = vmatprep.subr.mxu0 0.0
    %2344 = vmatpush2.msra.mxu0 0.0
    %2345 = vmatprep.subr.mxu0 0.0
    %2346 = vmatpush2.msra.mxu0 0.0
    %2347 = vmatprep.subr.mxu0 0.0
    %2348 = vmatpush2.msra.mxu0 0.0
    %2349 = vmatprep.subr.mxu0 0.0
    %2350 = vmatpush2.msra.mxu0 0.0
    %2351 = vmatprep.subr.mxu0 0.0
    %2352 = vmatpush2.msra.mxu0 0.0
    %2353 = vmatprep.subr.mxu0 0.0
    %2354 = vmatpush2.msra.mxu0 0.0
    %2355 = vmatprep.subr.mxu0 0.0
    %2356 = vmatpush2.msra.mxu0 0.0
    %2357 = vmatprep.subr.mxu0 0.0
    %2358 = vmatpush2.msra.mxu0 0.0
    %2359 = vmatprep.subr.mxu0 0.0
    %2360 = vmatpush2.msra.mxu0 0.0
    %2361 = vmatprep.subr.mxu0 0.0
    %2362 = vmatpush2.msra.mxu0 0.0
    %2363 = vmatprep.subr.mxu0 0.0
    %2364 = vmatpush2.msra.mxu0 0.0
    %2365 = vmatprep.subr.mxu0 0.0
    %2366 = vmatpush2.msra.mxu0 0.0
    %2367 = vmatprep.subr.mxu0 0.0
    %2368 = vmatpush2.msra.mxu0 0.0
    %2369 = vmatprep.subr.mxu0 0.0
    %2370 = vmatpush2.msra.mxu0 0.0
    %2371 = vmatprep.subr.mxu0 0.0
    %2372 = vmatpush2.msra.mxu0 0.0
    %2373 = vmatprep.mubr.f32.mxu0 0.0
    %2374 = vmatmul.mubr.f32.gmra.mxu0 %v2166
    %v2375 = vpop.f32.mrf.mxu0
    %v2376 = vadd.f32 0.0, %v2375
    %v2377 = vpop.f32.mrf.mxu0
    %v2378 = vadd.f32 0.0, %v2377
    %2379 = vdwg.mxu0
    %v2380 = vadd.f32 %v2170, %v2305
    %v2381 = vadd.f32 %v2171, %v2307
    %v2382 = vadd.f32 %v2172, %v2376
    %v2383 = vadd.f32 %v2173, %v2378
    %v2384 = vxor.u32 %v2380, 2147483648
    %v2385 = vmul.f32 %v2384, 1.442695
    %v2386 = vpow.pop %v2385
    %v2387 = vadd.f32 %v2386, 1.0
    %v2388 = vrcp.pop %v2387
    %v2389 = vmul.f32 1.0, %v2388
    %v2390 = vxor.u32 %v2381, 2147483648
    %v2391 = vmul.f32 %v2390, 1.442695
    %v2392 = vpow.pop %v2391
    %v2393 = vadd.f32 %v2392, 1.0
    %v2394 = vrcp.pop %v2393
    %v2395 = vmul.f32 1.0, %v2394
    %v2396 = vtanh.pop %v2382
    %v2397 = vxor.u32 %v2383, 2147483648
    %v2398 = vmul.f32 %v2397, 1.442695
    %v2399 = vpow.pop %v2398
    %v2400 = vadd.f32 %v2399, 1.0
    %v2401 = vrcp.pop %v2400
    %v2402 = vmul.f32 1.0, %v2401
    %v2403 = vmul.f32 %v2395, %v2164
    %v2404 = vmul.f32 %v2389, %v2396
    %v2405 = vadd.f32 %v2403, %v2404
    %v2406 = vtanh.pop %v2405
    %v2407 = vmul.f32 %v2402, %v2406
    %s2408 = scalar_lea.vmem [#allocation9], 56
    %2409 = vst [vmem:[%s2408] sm:$0xff] %v2407
    // Predicated region
    $region30: #{tpu_custom_call.1} parent=1 // pred_check
      _
    $region31: #{tpu_custom_call.1} parent=1 // pred_check_branch
      %2411 = sbr.rel (0) target = $region33
    $region32: #{tpu_custom_call.1} parent=1 // pred_region
      %s2413 = ssub.s32 1024, 1024
      %2414 = vsyncadd [#allocation5], %s2413
      %s2415 = sshll.u32 [#allocation9], 4
      %s2416 = int_to_ptr.vmem [resolvable:$true] %s2415
      %2421 = dma.vmem_to_hbm [thread:$0]  %s2416, 1024, %s4, [#allocation5], 128, 128, 8
    $region33: #{tpu_custom_call.1} parent=1 // pred_fallthru
      _
    // Predicated region
    $region34: #{tpu_custom_call.1} parent=1 // pred_check
      _
    $region35: #{tpu_custom_call.1} parent=1 // pred_check_branch
      %2423 = sbr.rel (0) target = $region37
    $region36: #{tpu_custom_call.1} parent=1 // pred_region
      %2424 = dma.done [#allocation5], 1024
    $region37: #{tpu_custom_call.1} parent=1 // pred_fallthru
      _
    %2425 = vsyncpa [#allocation4], 1
    %2426 = vsyncpa [#allocation7], 1
    %2427 = vsyncpa [#allocation5], 1

</llo_original>
